<compile_context>
chip_gen: v6e
topology: v6e:2x2x1
jax: 0.10.0
libtpu: 0.0.40
codegen_flags: <defaults>
</compile_context>

<pallas_src>
import numpy as np
import jax
import jax.numpy as jnp
from jax import lax
from jax.experimental import pallas as pl
from jax.experimental.pallas import tpu as pltpu

# ---- small, deterministic hyper-parameters (consistent with the module ctor) ----
VOCAB = 16            # input_size
D = 32                # hidden_size
OUT = 16              # output_size
NHEAD = 4
HEAD_DIM = D // NHEAD
FF = 2048             # nn.TransformerEncoderLayer default dim_feedforward
NUM_LAYERS = 1
B = 2                 # batch
S = 8                 # sequence length
EPS = 1e-5            # LayerNorm eps (PyTorch default)


def layer_norm(y, g, b):
    """PyTorch nn.LayerNorm over the last dim (biased variance)."""
    mu = jnp.mean(y, axis=-1, keepdims=True)
    var = jnp.mean(jnp.square(y - mu), axis=-1, keepdims=True)
    return (y - mu) * lax.rsqrt(var + EPS) * g + b


# --------------------------- Pallas kernel ---------------------------
def _char_transformer_kernel(
    ids_ref,     # (B*S, 1) int32
    tab_ref,     # (VOCAB + B*S + 8, D) f32 : [emb | pos (tiled over B) | bias rows]
    wqkv_ref,    # (D, 3D) f32
    bqkv_ref,    # (1, 3D) f32
    wofc_ref,    # (D, D + OUT) f32 : [wo | wfc]
    w1_ref,      # (D, FF) bf16
    b1_ref,      # (1, FF) f32
    w2_ref,      # (FF, D) bf16
    out_ref,     # (B*S, OUT) f32
):
    f32 = jnp.float32
    R = B * S

    tab = tab_ref[...]
    emb = tab[:VOCAB]                              # (VOCAB, D)
    pos = tab[VOCAB:VOCAB + R]                     # (R, D), already tiled over batch
    o = VOCAB + R
    bo, ln1g, ln1b = tab[o + 0:o + 1], tab[o + 1:o + 2], tab[o + 2:o + 3]
    b2, ln2g, ln2b = tab[o + 3:o + 4], tab[o + 4:o + 5], tab[o + 5:o + 6]
    bfc = tab[o + 6:o + 7, :OUT]

    # ---- embedding lookup as one-hot matmul (exact gather semantics) + pos enc ----
    ids = ids_ref[...]                                                # (R, 1) int32
    one_hot = (ids == lax.broadcasted_iota(jnp.int32, (R, VOCAB), 1)).astype(f32)
    x = jnp.dot(one_hot, emb, preferred_element_type=f32) + pos       # (R, D)

    # ---- fused QKV projection (one MXU push instead of three) ----
    qkv = jnp.dot(x, wqkv_ref[...], preferred_element_type=f32) + bqkv_ref[...]
    scale = 1.0 / float(np.sqrt(HEAD_DIM))
    q = qkv[:, :D] * scale
    k = qkv[:, D:2 * D]
    v = qkv[:, 2 * D:]

    # ---- multi-head self-attention (dropout == identity) ----
    # Per-head lane slices, reshaped to (B, S, HD); scores batched over B per head,
    # then all heads stacked -> ONE exp / row-sum / divide.
    qh = [q[:, h * HEAD_DIM:(h + 1) * HEAD_DIM].reshape(B, S, HEAD_DIM) for h in range(NHEAD)]
    kh = [k[:, h * HEAD_DIM:(h + 1) * HEAD_DIM].reshape(B, S, HEAD_DIM) for h in range(NHEAD)]
    vh = [v[:, h * HEAD_DIM:(h + 1) * HEAD_DIM].reshape(B, S, HEAD_DIM) for h in range(NHEAD)]

    scores = jnp.concatenate(
        [jnp.einsum("bqd,bkd->bqk", qh[h], kh[h], preferred_element_type=f32)
         for h in range(NHEAD)], axis=0)                              # (NHEAD*B, S, S)
    scores = scores - jnp.max(scores, axis=-1, keepdims=True)
    e = jnp.exp(scores)
    p = e / jnp.sum(e, axis=-1, keepdims=True)

    # Contexts for all heads, concatenated along lanes -> ONE output-proj matmul.
    ctx = jnp.concatenate(
        [jnp.einsum("bqk,bkd->bqd", p[h * B:(h + 1) * B], vh[h],
                    preferred_element_type=f32).reshape(R, HEAD_DIM)
         for h in range(NHEAD)], axis=-1)                             # (R, D)

    wofc = wofc_ref[...]
    attn = jnp.dot(ctx, wofc[:, :D], preferred_element_type=f32) + bo
    x = layer_norm(x + attn, ln1g, ln1b)

    # ---- feed-forward (bf16 weights, f32 accumulation, ReLU; element-wise in f32) ----
    h1 = jnp.dot(x.astype(jnp.bfloat16), w1_ref[...],
                 preferred_element_type=f32) + b1_ref[...]
    h1 = jnp.maximum(h1, 0.0)
    ff = jnp.dot(h1.astype(jnp.bfloat16), w2_ref[...],
                 preferred_element_type=f32) + b2
    x = layer_norm(x + ff, ln2g, ln2b)

    # ---- final Linear + Softmax over the output dim ----
    logits = jnp.dot(x, wofc[:, D:], preferred_element_type=f32) + bfc    # (R, OUT)
    m = jnp.max(logits, axis=-1, keepdims=True)
    e2 = jnp.exp(logits - m)
    out_ref[...] = e2 / jnp.sum(e2, axis=-1, keepdims=True)


# --------------------------- host-side packing ---------------------------
def pack_params(P):
    """Pack logical parameters into the few slabs the kernel consumes."""
    bias_rows = jnp.concatenate([
        P["bo"], P["ln1g"], P["ln1b"], P["b2"], P["ln2g"], P["ln2b"],
        jnp.pad(P["bfc"], ((0, 0), (0, D - OUT))),
        jnp.zeros((1, D), jnp.float32),
    ], axis=0)                                                        # (8, D)
    tab = jnp.concatenate(
        [P["emb_tab"], jnp.tile(P["pos"], (B, 1)), bias_rows], axis=0)  # (40, D)
    return dict(
        tab=tab,
        wqkv=jnp.concatenate([P["wq"], P["wk"], P["wv"]], axis=1),    # (D, 3D)
        bqkv=jnp.concatenate([P["bq"], P["bk"], P["bv"]], axis=1),    # (1, 3D)
        wofc=jnp.concatenate([P["wo"], P["wfc"]], axis=1),            # (D, D+OUT)
        w1=P["w1"], b1=P["b1"], w2=P["w2"],
    )


# --------------------------- wrapper ---------------------------
def char_transformer(ids, K):
    """ids: (B, S) int32 token ids -> (B, S, OUT) softmax probabilities."""
    ids2 = ids.astype(jnp.int32).reshape(B * S, 1)
    in_arrays = [ids2, K["tab"], K["wqkv"], K["bqkv"], K["wofc"],
                 K["w1"], K["b1"], K["w2"]]

    def full_spec(a):
        return pl.BlockSpec(a.shape, lambda i: (0, 0))    # all inputs are 2-D

    out = pl.pallas_call(
        _char_transformer_kernel,
        out_shape=jax.ShapeDtypeStruct((B * S, OUT), jnp.float32),
        grid_spec=pltpu.PrefetchScalarGridSpec(
            num_scalar_prefetch=0,
            grid=(1,),                                    # whole batch in one step
            in_specs=[full_spec(a) for a in in_arrays],
            out_specs=pl.BlockSpec((B * S, OUT), lambda i: (0, 0)),
        ),
        compiler_params=pltpu.CompilerParams(dimension_semantics=("arbitrary",)),
    )(*in_arrays)
    return out.reshape(B, S, OUT)


# --------------------------- pure-JAX reference ---------------------------
def ref_forward(ids, P):
    x = jnp.take(P["emb_tab"], ids, axis=0) + P["pos"][None]          # (B,S,D)
    q = x @ P["wq"] + P["bq"]
    k = x @ P["wk"] + P["bk"]
    v = x @ P["wv"] + P["bv"]

    def split(z):
        return z.reshape(B, S, NHEAD, HEAD_DIM).transpose(0, 2, 1, 3)

    qh, kh, vh = split(q), split(k), split(v)
    scores = jnp.einsum("bhqd,bhkd->bhqk", qh, kh) / np.sqrt(HEAD_DIM)
    p = jax.nn.softmax(scores, axis=-1)
    ctx = jnp.einsum("bhqk,bhkd->bhqd", p, vh).transpose(0, 2, 1, 3).reshape(B, S, D)
    attn = ctx @ P["wo"] + P["bo"]
    x = layer_norm(x + attn, P["ln1g"], P["ln1b"])
    w1 = P["w1"].astype(jnp.float32)
    w2 = P["w2"].astype(jnp.float32)
    ff = jnp.maximum(x @ w1 + P["b1"], 0.0) @ w2 + P["b2"]
    x = layer_norm(x + ff, P["ln2g"], P["ln2b"])
    logits = x @ P["wfc"] + P["bfc"]
    return jax.nn.softmax(logits, axis=-1)


# --------------------------- deterministic parameter init ---------------------------
def positional_encoding(seq_len, d_model):
    position = np.arange(seq_len, dtype=np.float32)[:, None]
    div_term = np.exp(np.arange(0, d_model, 2, dtype=np.float32)
                      * (-np.log(10000.0) / d_model))
    pe = np.zeros((seq_len, d_model), np.float32)
    pe[:, 0::2] = np.sin(position * div_term)
    pe[:, 1::2] = np.cos(position * div_term)
    return jnp.asarray(pe)


def init_params(key):
    ks = jax.random.split(key, 16)
    s = 0.05

    def n(k, shape):
        return jax.random.normal(k, shape, jnp.float32) * s

    in_proj_w = n(ks[0], (3 * D, D))       # PyTorch MHA in_proj_weight layout
    in_proj_b = n(ks[1], (3 * D,))
    return dict(
        emb_tab=n(ks[2], (VOCAB, D)),
        pos=positional_encoding(S, D),
        wq=in_proj_w[:D].T, wk=in_proj_w[D:2 * D].T, wv=in_proj_w[2 * D:].T,
        bq=in_proj_b[:D].reshape(1, D),
        bk=in_proj_b[D:2 * D].reshape(1, D),
        bv=in_proj_b[2 * D:].reshape(1, D),
        wo=n(ks[3], (D, D)).T, bo=n(ks[4], (D,)).reshape(1, D),
        ln1g=(1.0 + 0.1 * jax.random.normal(ks[5], (D,), jnp.float32)).reshape(1, D),
        ln1b=(0.1 * jax.random.normal(ks[6], (D,), jnp.float32)).reshape(1, D),
        # FFN weights stored in bf16 (halves dominant HBM traffic); accumulation is f32.
        w1=n(ks[7], (FF, D)).T.astype(jnp.bfloat16), b1=n(ks[8], (FF,)).reshape(1, FF),
        w2=n(ks[9], (D, FF)).T.astype(jnp.bfloat16), b2=n(ks[10], (D,)).reshape(1, D),
        ln2g=(1.0 + 0.1 * jax.random.normal(ks[11], (D,), jnp.float32)).reshape(1, D),
        ln2b=(0.1 * jax.random.normal(ks[12], (D,), jnp.float32)).reshape(1, D),
        wfc=n(ks[13], (OUT, D)).T, bfc=n(ks[14], (OUT,)).reshape(1, OUT),
    )


if __name__ == "__main__":
    key = jax.random.PRNGKey(0)
    k_par, k_ids = jax.random.split(key)
    params = init_params(k_par)
    packed = pack_params(params)
    ids = jax.random.randint(k_ids, (B, S), 0, VOCAB, dtype=jnp.int32)

    out = char_transformer(ids, packed)
    out = jax.block_until_ready(out)

    assert out.shape == (B, S, OUT) and bool(jnp.all(jnp.isfinite(out)))
    ref = jax.block_until_ready(ref_forward(ids, params))
    np.testing.assert_allclose(np.asarray(out), np.asarray(ref), rtol=5e-2, atol=2e-3)
    # rows of the softmax output should sum to 1
    np.testing.assert_allclose(np.asarray(out).sum(-1), np.ones((B, S)), atol=1e-4)

    print("KERNEL_OK")
</pallas_src>

<mosaic_0001>
module attributes {stable_mosaic.version = 11 : i64} {
  func.func @_char_transformer_kernel(%arg0: i32, %arg1: memref<16x1xi32, #tpu.memory_space<vmem>>, %arg2: memref<40x32xf32, #tpu.memory_space<vmem>>, %arg3: memref<32x96xf32, #tpu.memory_space<vmem>>, %arg4: memref<1x96xf32, #tpu.memory_space<vmem>>, %arg5: memref<32x48xf32, #tpu.memory_space<vmem>>, %arg6: memref<32x2048xbf16, #tpu.memory_space<vmem>>, %arg7: memref<1x2048xf32, #tpu.memory_space<vmem>>, %arg8: memref<2048x32xbf16, #tpu.memory_space<vmem>>, %arg9: memref<16x16xf32, #tpu.memory_space<vmem>>) attributes {dimension_semantics = [#tpu.dimension_semantics<arbitrary>], iteration_bounds = array<i64: 1>, scalar_prefetch = 0 : i64, scratch_operands = 0 : i64, tpu.core_type = #tpu.core_type<tc>, window_params = [{pipeline_mode = #tpu.pipeline_mode<synchronous>, transform_indices = @transform_0, window_bounds = array<i64: 16, 1>}, {pipeline_mode = #tpu.pipeline_mode<synchronous>, transform_indices = @transform_1, window_bounds = array<i64: 40, 32>}, {pipeline_mode = #tpu.pipeline_mode<synchronous>, transform_indices = @transform_2, window_bounds = array<i64: 32, 96>}, {pipeline_mode = #tpu.pipeline_mode<synchronous>, transform_indices = @transform_3, window_bounds = array<i64: 1, 96>}, {pipeline_mode = #tpu.pipeline_mode<synchronous>, transform_indices = @transform_4, window_bounds = array<i64: 32, 48>}, {pipeline_mode = #tpu.pipeline_mode<synchronous>, transform_indices = @transform_5, window_bounds = array<i64: 32, 2048>}, {pipeline_mode = #tpu.pipeline_mode<synchronous>, transform_indices = @transform_6, window_bounds = array<i64: 1, 2048>}, {pipeline_mode = #tpu.pipeline_mode<synchronous>, transform_indices = @transform_7, window_bounds = array<i64: 2048, 32>}, {pipeline_mode = #tpu.pipeline_mode<synchronous>, transform_indices = @transform_8, window_bounds = array<i64: 16, 16>}]} {
    %c0 = arith.constant 0 : index
    %c0_0 = arith.constant 0 : index
    %0 = vector.load %arg2[%c0, %c0_0] : memref<40x32xf32, #tpu.memory_space<vmem>>, vector<40x32xf32>
    %1 = vector.extract_strided_slice %0 {offsets = [0, 0], sizes = [16, 32], strides = [1, 1]} : vector<40x32xf32> to vector<16x32xf32>
    %2 = vector.extract_strided_slice %0 {offsets = [16, 0], sizes = [16, 32], strides = [1, 1]} : vector<40x32xf32> to vector<16x32xf32>
    %3 = vector.extract_strided_slice %0 {offsets = [32, 0], sizes = [1, 32], strides = [1, 1]} : vector<40x32xf32> to vector<1x32xf32>
    %4 = vector.extract_strided_slice %0 {offsets = [33, 0], sizes = [1, 32], strides = [1, 1]} : vector<40x32xf32> to vector<1x32xf32>
    %5 = vector.extract_strided_slice %0 {offsets = [34, 0], sizes = [1, 32], strides = [1, 1]} : vector<40x32xf32> to vector<1x32xf32>
    %6 = vector.extract_strided_slice %0 {offsets = [35, 0], sizes = [1, 32], strides = [1, 1]} : vector<40x32xf32> to vector<1x32xf32>
    %7 = vector.extract_strided_slice %0 {offsets = [36, 0], sizes = [1, 32], strides = [1, 1]} : vector<40x32xf32> to vector<1x32xf32>
    %8 = vector.extract_strided_slice %0 {offsets = [37, 0], sizes = [1, 32], strides = [1, 1]} : vector<40x32xf32> to vector<1x32xf32>
    %9 = vector.extract_strided_slice %0 {offsets = [38, 0], sizes = [1, 16], strides = [1, 1]} : vector<40x32xf32> to vector<1x16xf32>
    %c0_1 = arith.constant 0 : index
    %c0_2 = arith.constant 0 : index
    %10 = vector.load %arg1[%c0_1, %c0_2] : memref<16x1xi32, #tpu.memory_space<vmem>>, vector<16x1xi32>
    %11 = tpu.iota {dimensions = array<i32: 1>} : vector<16x16xi32>
    %12 = vector.broadcast %10 : vector<16x1xi32> to vector<16x16xi32>
    %13 = arith.cmpi eq, %12, %11 : vector<16x16xi32>
    %14 = arith.extui %13 : vector<16x16xi1> to vector<16x16xi32>
    %15 = arith.sitofp %14 : vector<16x16xi32> to vector<16x16xf32>
    %cst = arith.constant dense<0.000000e+00> : vector<16x32xf32>
    %16 = tpu.matmul %15, %1, %cst {dimension_numbers = #tpu.dot_dimension_numbers<[1], [0], [0], [1], [0, 0, 1, 1], [], []>} : vector<16x16xf32>, vector<16x32xf32>, vector<16x32xf32> -> vector<16x32xf32>
    %17 = arith.addf %16, %2 : vector<16x32xf32>
    %c0_3 = arith.constant 0 : index
    %c0_4 = arith.constant 0 : index
    %18 = vector.load %arg3[%c0_3, %c0_4] : memref<32x96xf32, #tpu.memory_space<vmem>>, vector<32x96xf32>
    %cst_5 = arith.constant dense<0.000000e+00> : vector<16x96xf32>
    %19 = tpu.matmul %17, %18, %cst_5 {dimension_numbers = #tpu.dot_dimension_numbers<[1], [0], [0], [1], [0, 0, 1, 1], [], []>} : vector<16x32xf32>, vector<32x96xf32>, vector<16x96xf32> -> vector<16x96xf32>
    %c0_6 = arith.constant 0 : index
    %c0_7 = arith.constant 0 : index
    %20 = vector.load %arg4[%c0_6, %c0_7] : memref<1x96xf32, #tpu.memory_space<vmem>>, vector<1x96xf32>
    %21 = vector.broadcast %20 : vector<1x96xf32> to vector<16x96xf32>
    %22 = arith.addf %19, %21 : vector<16x96xf32>
    %23 = vector.extract_strided_slice %22 {offsets = [0, 0], sizes = [16, 32], strides = [1, 1]} : vector<16x96xf32> to vector<16x32xf32>
    %cst_8 = arith.constant 0.353553385 : f32
    %24 = vector.broadcast %cst_8 : f32 to vector<16x32xf32>
    %25 = arith.mulf %23, %24 : vector<16x32xf32>
    %26 = vector.extract_strided_slice %22 {offsets = [0, 32], sizes = [16, 32], strides = [1, 1]} : vector<16x96xf32> to vector<16x32xf32>
    %27 = vector.extract_strided_slice %22 {offsets = [0, 64], sizes = [16, 32], strides = [1, 1]} : vector<16x96xf32> to vector<16x32xf32>
    %28 = vector.extract_strided_slice %25 {offsets = [0, 0], sizes = [16, 8], strides = [1, 1]} : vector<16x32xf32> to vector<16x8xf32>
    %29 = vector.shape_cast %28 : vector<16x8xf32> to vector<2x8x8xf32>
    %30 = vector.extract_strided_slice %25 {offsets = [0, 8], sizes = [16, 8], strides = [1, 1]} : vector<16x32xf32> to vector<16x8xf32>
    %31 = vector.shape_cast %30 : vector<16x8xf32> to vector<2x8x8xf32>
    %32 = vector.extract_strided_slice %25 {offsets = [0, 16], sizes = [16, 8], strides = [1, 1]} : vector<16x32xf32> to vector<16x8xf32>
    %33 = vector.shape_cast %32 : vector<16x8xf32> to vector<2x8x8xf32>
    %34 = vector.extract_strided_slice %25 {offsets = [0, 24], sizes = [16, 8], strides = [1, 1]} : vector<16x32xf32> to vector<16x8xf32>
    %35 = vector.shape_cast %34 : vector<16x8xf32> to vector<2x8x8xf32>
    %36 = vector.extract_strided_slice %26 {offsets = [0, 0], sizes = [16, 8], strides = [1, 1]} : vector<16x32xf32> to vector<16x8xf32>
    %37 = vector.shape_cast %36 : vector<16x8xf32> to vector<2x8x8xf32>
    %38 = vector.extract_strided_slice %26 {offsets = [0, 8], sizes = [16, 8], strides = [1, 1]} : vector<16x32xf32> to vector<16x8xf32>
    %39 = vector.shape_cast %38 : vector<16x8xf32> to vector<2x8x8xf32>
    %40 = vector.extract_strided_slice %26 {offsets = [0, 16], sizes = [16, 8], strides = [1, 1]} : vector<16x32xf32> to vector<16x8xf32>
    %41 = vector.shape_cast %40 : vector<16x8xf32> to vector<2x8x8xf32>
    %42 = vector.extract_strided_slice %26 {offsets = [0, 24], sizes = [16, 8], strides = [1, 1]} : vector<16x32xf32> to vector<16x8xf32>
    %43 = vector.shape_cast %42 : vector<16x8xf32> to vector<2x8x8xf32>
    %44 = vector.extract_strided_slice %27 {offsets = [0, 0], sizes = [16, 8], strides = [1, 1]} : vector<16x32xf32> to vector<16x8xf32>
    %45 = vector.shape_cast %44 : vector<16x8xf32> to vector<2x8x8xf32>
    %46 = vector.extract_strided_slice %27 {offsets = [0, 8], sizes = [16, 8], strides = [1, 1]} : vector<16x32xf32> to vector<16x8xf32>
    %47 = vector.shape_cast %46 : vector<16x8xf32> to vector<2x8x8xf32>
    %48 = vector.extract_strided_slice %27 {offsets = [0, 16], sizes = [16, 8], strides = [1, 1]} : vector<16x32xf32> to vector<16x8xf32>
    %49 = vector.shape_cast %48 : vector<16x8xf32> to vector<2x8x8xf32>
    %50 = vector.extract_strided_slice %27 {offsets = [0, 24], sizes = [16, 8], strides = [1, 1]} : vector<16x32xf32> to vector<16x8xf32>
    %51 = vector.shape_cast %50 : vector<16x8xf32> to vector<2x8x8xf32>
    "tpu.trace_start"() <{level = 10 : i32, message = "bqd,bkd->bqk"}> : () -> ()
    %cst_9 = arith.constant dense<0.000000e+00> : vector<2x8x8xf32>
    %52 = tpu.matmul %29, %37, %cst_9 {dimension_numbers = #tpu.dot_dimension_numbers<[2], [2], [1], [1], [0, 0, 0, 1, 1, 1], [0], [0]>} : vector<2x8x8xf32>, vector<2x8x8xf32>, vector<2x8x8xf32> -> vector<2x8x8xf32>
    %cst_10 = arith.constant dense<0.000000e+00> : vector<2x8x8xf32>
    %53 = tpu.matmul %31, %39, %cst_10 {dimension_numbers = #tpu.dot_dimension_numbers<[2], [2], [1], [1], [0, 0, 0, 1, 1, 1], [0], [0]>} : vector<2x8x8xf32>, vector<2x8x8xf32>, vector<2x8x8xf32> -> vector<2x8x8xf32>
    %cst_11 = arith.constant dense<0.000000e+00> : vector<2x8x8xf32>
    %54 = tpu.matmul %33, %41, %cst_11 {dimension_numbers = #tpu.dot_dimension_numbers<[2], [2], [1], [1], [0, 0, 0, 1, 1, 1], [0], [0]>} : vector<2x8x8xf32>, vector<2x8x8xf32>, vector<2x8x8xf32> -> vector<2x8x8xf32>
    %cst_12 = arith.constant dense<0.000000e+00> : vector<2x8x8xf32>
    %55 = tpu.matmul %35, %43, %cst_12 {dimension_numbers = #tpu.dot_dimension_numbers<[2], [2], [1], [1], [0, 0, 0, 1, 1, 1], [0], [0]>} : vector<2x8x8xf32>, vector<2x8x8xf32>, vector<2x8x8xf32> -> vector<2x8x8xf32>
    "tpu.trace_stop"() : () -> ()
    %56 = tpu.concatenate %52, %53, %54, %55 in 0 : vector<2x8x8xf32>, vector<2x8x8xf32>, vector<2x8x8xf32>, vector<2x8x8xf32> -> vector<8x8x8xf32>
    %cst_13 = arith.constant dense<0xFF800000> : vector<8x8xf32>
    %57 = vector.multi_reduction <maximumf>, %56, %cst_13 [2] : vector<8x8x8xf32> to vector<8x8xf32>
    %58 = vector.shape_cast %57 : vector<8x8xf32> to vector<8x8x1xf32>
    %59 = vector.broadcast %58 : vector<8x8x1xf32> to vector<8x8x8xf32>
    %60 = arith.subf %56, %59 : vector<8x8x8xf32>
    %61 = math.exp %60 : vector<8x8x8xf32>
    %cst_14 = arith.constant dense<0.000000e+00> : vector<8x8xf32>
    %62 = vector.multi_reduction <add>, %61, %cst_14 [2] : vector<8x8x8xf32> to vector<8x8xf32>
    %63 = vector.shape_cast %62 : vector<8x8xf32> to vector<8x8x1xf32>
    %64 = vector.broadcast %63 : vector<8x8x1xf32> to vector<8x8x8xf32>
    %65 = arith.divf %61, %64 : vector<8x8x8xf32>
    %66 = vector.extract_strided_slice %65 {offsets = [0, 0, 0], sizes = [2, 8, 8], strides = [1, 1, 1]} : vector<8x8x8xf32> to vector<2x8x8xf32>
    "tpu.trace_start"() <{level = 10 : i32, message = "bqk,bkd->bqd"}> : () -> ()
    %cst_15 = arith.constant dense<0.000000e+00> : vector<2x8x8xf32>
    %67 = tpu.matmul %66, %45, %cst_15 {dimension_numbers = #tpu.dot_dimension_numbers<[2], [1], [1], [2], [0, 0, 0, 1, 1, 2], [0], [0]>} : vector<2x8x8xf32>, vector<2x8x8xf32>, vector<2x8x8xf32> -> vector<2x8x8xf32>
    "tpu.trace_stop"() : () -> ()
    %68 = vector.shape_cast %67 : vector<2x8x8xf32> to vector<16x8xf32>
    %69 = vector.extract_strided_slice %65 {offsets = [2, 0, 0], sizes = [2, 8, 8], strides = [1, 1, 1]} : vector<8x8x8xf32> to vector<2x8x8xf32>
    "tpu.trace_start"() <{level = 10 : i32, message = "bqk,bkd->bqd"}> : () -> ()
    %cst_16 = arith.constant dense<0.000000e+00> : vector<2x8x8xf32>
    %70 = tpu.matmul %69, %47, %cst_16 {dimension_numbers = #tpu.dot_dimension_numbers<[2], [1], [1], [2], [0, 0, 0, 1, 1, 2], [0], [0]>} : vector<2x8x8xf32>, vector<2x8x8xf32>, vector<2x8x8xf32> -> vector<2x8x8xf32>
    "tpu.trace_stop"() : () -> ()
    %71 = vector.shape_cast %70 : vector<2x8x8xf32> to vector<16x8xf32>
    %72 = vector.extract_strided_slice %65 {offsets = [4, 0, 0], sizes = [2, 8, 8], strides = [1, 1, 1]} : vector<8x8x8xf32> to vector<2x8x8xf32>
    "tpu.trace_start"() <{level = 10 : i32, message = "bqk,bkd->bqd"}> : () -> ()
    %cst_17 = arith.constant dense<0.000000e+00> : vector<2x8x8xf32>
    %73 = tpu.matmul %72, %49, %cst_17 {dimension_numbers = #tpu.dot_dimension_numbers<[2], [1], [1], [2], [0, 0, 0, 1, 1, 2], [0], [0]>} : vector<2x8x8xf32>, vector<2x8x8xf32>, vector<2x8x8xf32> -> vector<2x8x8xf32>
    "tpu.trace_stop"() : () -> ()
    %74 = vector.shape_cast %73 : vector<2x8x8xf32> to vector<16x8xf32>
    %75 = vector.extract_strided_slice %65 {offsets = [6, 0, 0], sizes = [2, 8, 8], strides = [1, 1, 1]} : vector<8x8x8xf32> to vector<2x8x8xf32>
    "tpu.trace_start"() <{level = 10 : i32, message = "bqk,bkd->bqd"}> : () -> ()
    %cst_18 = arith.constant dense<0.000000e+00> : vector<2x8x8xf32>
    %76 = tpu.matmul %75, %51, %cst_18 {dimension_numbers = #tpu.dot_dimension_numbers<[2], [1], [1], [2], [0, 0, 0, 1, 1, 2], [0], [0]>} : vector<2x8x8xf32>, vector<2x8x8xf32>, vector<2x8x8xf32> -> vector<2x8x8xf32>
    "tpu.trace_stop"() : () -> ()
    %77 = vector.shape_cast %76 : vector<2x8x8xf32> to vector<16x8xf32>
    %78 = tpu.concatenate %68, %71, %74, %77 in 1 : vector<16x8xf32>, vector<16x8xf32>, vector<16x8xf32>, vector<16x8xf32> -> vector<16x32xf32>
    %c0_19 = arith.constant 0 : index
    %c0_20 = arith.constant 0 : index
    %79 = vector.load %arg5[%c0_19, %c0_20] : memref<32x48xf32, #tpu.memory_space<vmem>>, vector<32x48xf32>
    %80 = vector.extract_strided_slice %79 {offsets = [0, 0], sizes = [32, 32], strides = [1, 1]} : vector<32x48xf32> to vector<32x32xf32>
    %cst_21 = arith.constant dense<0.000000e+00> : vector<16x32xf32>
    %81 = tpu.matmul %78, %80, %cst_21 {dimension_numbers = #tpu.dot_dimension_numbers<[1], [0], [0], [1], [0, 0, 1, 1], [], []>} : vector<16x32xf32>, vector<32x32xf32>, vector<16x32xf32> -> vector<16x32xf32>
    %82 = vector.broadcast %3 : vector<1x32xf32> to vector<16x32xf32>
    %83 = arith.addf %81, %82 : vector<16x32xf32>
    %84 = arith.addf %17, %83 : vector<16x32xf32>
    %cst_22 = arith.constant dense<0.000000e+00> : vector<16xf32>
    %85 = vector.multi_reduction <add>, %84, %cst_22 [1] : vector<16x32xf32> to vector<16xf32>
    %86 = vector.shape_cast %85 : vector<16xf32> to vector<16x1xf32>
    %cst_23 = arith.constant 3.200000e+01 : f32
    %87 = vector.broadcast %cst_23 : f32 to vector<16x1xf32>
    %88 = arith.divf %86, %87 : vector<16x1xf32>
    %89 = vector.broadcast %88 : vector<16x1xf32> to vector<16x32xf32>
    %90 = arith.subf %84, %89 : vector<16x32xf32>
    %91 = arith.mulf %90, %90 : vector<16x32xf32>
    %cst_24 = arith.constant dense<0.000000e+00> : vector<16xf32>
    %92 = vector.multi_reduction <add>, %91, %cst_24 [1] : vector<16x32xf32> to vector<16xf32>
    %93 = vector.shape_cast %92 : vector<16xf32> to vector<16x1xf32>
    %cst_25 = arith.constant 3.200000e+01 : f32
    %94 = vector.broadcast %cst_25 : f32 to vector<16x1xf32>
    %95 = arith.divf %93, %94 : vector<16x1xf32>
    %96 = vector.broadcast %88 : vector<16x1xf32> to vector<16x32xf32>
    %97 = arith.subf %84, %96 : vector<16x32xf32>
    %cst_26 = arith.constant 9.99999974E-6 : f32
    %98 = vector.broadcast %cst_26 : f32 to vector<16x1xf32>
    %99 = arith.addf %95, %98 : vector<16x1xf32>
    %100 = math.rsqrt %99 : vector<16x1xf32>
    %101 = vector.broadcast %100 : vector<16x1xf32> to vector<16x32xf32>
    %102 = arith.mulf %97, %101 : vector<16x32xf32>
    %103 = vector.broadcast %4 : vector<1x32xf32> to vector<16x32xf32>
    %104 = arith.mulf %102, %103 : vector<16x32xf32>
    %105 = vector.broadcast %5 : vector<1x32xf32> to vector<16x32xf32>
    %106 = arith.addf %104, %105 : vector<16x32xf32>
    %107 = arith.truncf %106 : vector<16x32xf32> to vector<16x32xbf16>
    %c0_27 = arith.constant 0 : index
    %c0_28 = arith.constant 0 : index
    %108 = vector.load %arg6[%c0_27, %c0_28] : memref<32x2048xbf16, #tpu.memory_space<vmem>>, vector<32x2048xbf16>
    %cst_29 = arith.constant dense<0.000000e+00> : vector<16x2048xf32>
    %109 = tpu.matmul %107, %108, %cst_29 {dimension_numbers = #tpu.dot_dimension_numbers<[1], [0], [0], [1], [0, 0, 1, 1], [], []>} : vector<16x32xbf16>, vector<32x2048xbf16>, vector<16x2048xf32> -> vector<16x2048xf32>
    %c0_30 = arith.constant 0 : index
    %c0_31 = arith.constant 0 : index
    %110 = vector.load %arg7[%c0_30, %c0_31] : memref<1x2048xf32, #tpu.memory_space<vmem>>, vector<1x2048xf32>
    %111 = vector.broadcast %110 : vector<1x2048xf32> to vector<16x2048xf32>
    %112 = arith.addf %109, %111 : vector<16x2048xf32>
    %cst_32 = arith.constant 0.000000e+00 : f32
    %113 = vector.broadcast %cst_32 : f32 to vector<16x2048xf32>
    %114 = arith.maximumf %112, %113 : vector<16x2048xf32>
    %115 = arith.truncf %114 : vector<16x2048xf32> to vector<16x2048xbf16>
    %c0_33 = arith.constant 0 : index
    %c0_34 = arith.constant 0 : index
    %116 = vector.load %arg8[%c0_33, %c0_34] : memref<2048x32xbf16, #tpu.memory_space<vmem>>, vector<2048x32xbf16>
    %cst_35 = arith.constant dense<0.000000e+00> : vector<16x32xf32>
    %117 = tpu.matmul %115, %116, %cst_35 {dimension_numbers = #tpu.dot_dimension_numbers<[1], [0], [0], [1], [0, 0, 1, 1], [], []>} : vector<16x2048xbf16>, vector<2048x32xbf16>, vector<16x32xf32> -> vector<16x32xf32>
    %118 = vector.broadcast %6 : vector<1x32xf32> to vector<16x32xf32>
    %119 = arith.addf %117, %118 : vector<16x32xf32>
    %120 = arith.addf %106, %119 : vector<16x32xf32>
    %cst_36 = arith.constant dense<0.000000e+00> : vector<16xf32>
    %121 = vector.multi_reduction <add>, %120, %cst_36 [1] : vector<16x32xf32> to vector<16xf32>
    %122 = vector.shape_cast %121 : vector<16xf32> to vector<16x1xf32>
    %cst_37 = arith.constant 3.200000e+01 : f32
    %123 = vector.broadcast %cst_37 : f32 to vector<16x1xf32>
    %124 = arith.divf %122, %123 : vector<16x1xf32>
    %125 = vector.broadcast %124 : vector<16x1xf32> to vector<16x32xf32>
    %126 = arith.subf %120, %125 : vector<16x32xf32>
    %127 = arith.mulf %126, %126 : vector<16x32xf32>
    %cst_38 = arith.constant dense<0.000000e+00> : vector<16xf32>
    %128 = vector.multi_reduction <add>, %127, %cst_38 [1] : vector<16x32xf32> to vector<16xf32>
    %129 = vector.shape_cast %128 : vector<16xf32> to vector<16x1xf32>
    %cst_39 = arith.constant 3.200000e+01 : f32
    %130 = vector.broadcast %cst_39 : f32 to vector<16x1xf32>
    %131 = arith.divf %129, %130 : vector<16x1xf32>
    %132 = vector.broadcast %124 : vector<16x1xf32> to vector<16x32xf32>
    %133 = arith.subf %120, %132 : vector<16x32xf32>
    %cst_40 = arith.constant 9.99999974E-6 : f32
    %134 = vector.broadcast %cst_40 : f32 to vector<16x1xf32>
    %135 = arith.addf %131, %134 : vector<16x1xf32>
    %136 = math.rsqrt %135 : vector<16x1xf32>
    %137 = vector.broadcast %136 : vector<16x1xf32> to vector<16x32xf32>
    %138 = arith.mulf %133, %137 : vector<16x32xf32>
    %139 = vector.broadcast %7 : vector<1x32xf32> to vector<16x32xf32>
    %140 = arith.mulf %138, %139 : vector<16x32xf32>
    %141 = vector.broadcast %8 : vector<1x32xf32> to vector<16x32xf32>
    %142 = arith.addf %140, %141 : vector<16x32xf32>
    %143 = vector.extract_strided_slice %79 {offsets = [0, 32], sizes = [32, 16], strides = [1, 1]} : vector<32x48xf32> to vector<32x16xf32>
    %cst_41 = arith.constant dense<0.000000e+00> : vector<16x16xf32>
    %144 = tpu.matmul %142, %143, %cst_41 {dimension_numbers = #tpu.dot_dimension_numbers<[1], [0], [0], [1], [0, 0, 1, 1], [], []>} : vector<16x32xf32>, vector<32x16xf32>, vector<16x16xf32> -> vector<16x16xf32>
    %145 = vector.broadcast %9 : vector<1x16xf32> to vector<16x16xf32>
    %146 = arith.addf %144, %145 : vector<16x16xf32>
    %cst_42 = arith.constant dense<0xFF800000> : vector<16xf32>
    %147 = vector.multi_reduction <maximumf>, %146, %cst_42 [1] : vector<16x16xf32> to vector<16xf32>
    %148 = vector.shape_cast %147 : vector<16xf32> to vector<16x1xf32>
    %149 = vector.broadcast %148 : vector<16x1xf32> to vector<16x16xf32>
    %150 = arith.subf %146, %149 : vector<16x16xf32>
    %151 = math.exp %150 : vector<16x16xf32>
    %cst_43 = arith.constant dense<0.000000e+00> : vector<16xf32>
    %152 = vector.multi_reduction <add>, %151, %cst_43 [1] : vector<16x16xf32> to vector<16xf32>
    %153 = vector.shape_cast %152 : vector<16xf32> to vector<16x1xf32>
    %154 = vector.broadcast %153 : vector<16x1xf32> to vector<16x16xf32>
    %155 = arith.divf %151, %154 : vector<16x16xf32>
    %c0_44 = arith.constant 0 : index
    %c0_45 = arith.constant 0 : index
    %156 = vector.load %arg9[%c0_44, %c0_45] : memref<16x16xf32, #tpu.memory_space<vmem>>, vector<16x16xf32>
    tpu.vector_store %arg9[%c0_44, %c0_45], %155 {strides = array<i32>} : memref<16x16xf32, #tpu.memory_space<vmem>>, vector<16x16xf32>,
    return
  }
  func.func @transform_0(%arg0: i32) -> (i32, i32) {
    %c0_i32 = arith.constant 0 : i32
    %c0_i32_0 = arith.constant 0 : i32
    %c0_i32_1 = arith.constant 0 : i32
    return %c0_i32, %c0_i32_0 : i32, i32
  }
  func.func @transform_1(%arg0: i32) -> (i32, i32) {
    %c0_i32 = arith.constant 0 : i32
    %c0_i32_0 = arith.constant 0 : i32
    %c0_i32_1 = arith.constant 0 : i32
    return %c0_i32, %c0_i32_0 : i32, i32
  }
  func.func @transform_2(%arg0: i32) -> (i32, i32) {
    %c0_i32 = arith.constant 0 : i32
    %c0_i32_0 = arith.constant 0 : i32
    %c0_i32_1 = arith.constant 0 : i32
    return %c0_i32, %c0_i32_0 : i32, i32
  }
  func.func @transform_3(%arg0: i32) -> (i32, i32) {
    %c0_i32 = arith.constant 0 : i32
    %c0_i32_0 = arith.constant 0 : i32
    %c0_i32_1 = arith.constant 0 : i32
    return %c0_i32, %c0_i32_0 : i32, i32
  }
  func.func @transform_4(%arg0: i32) -> (i32, i32) {
    %c0_i32 = arith.constant 0 : i32
    %c0_i32_0 = arith.constant 0 : i32
    %c0_i32_1 = arith.constant 0 : i32
    return %c0_i32, %c0_i32_0 : i32, i32
  }
  func.func @transform_5(%arg0: i32) -> (i32, i32) {
    %c0_i32 = arith.constant 0 : i32
    %c0_i32_0 = arith.constant 0 : i32
    %c0_i32_1 = arith.constant 0 : i32
    return %c0_i32, %c0_i32_0 : i32, i32
  }
  func.func @transform_6(%arg0: i32) -> (i32, i32) {
    %c0_i32 = arith.constant 0 : i32
    %c0_i32_0 = arith.constant 0 : i32
    %c0_i32_1 = arith.constant 0 : i32
    return %c0_i32, %c0_i32_0 : i32, i32
  }
  func.func @transform_7(%arg0: i32) -> (i32, i32) {
    %c0_i32 = arith.constant 0 : i32
    %c0_i32_0 = arith.constant 0 : i32
    %c0_i32_1 = arith.constant 0 : i32
    return %c0_i32, %c0_i32_0 : i32, i32
  }
  func.func @transform_8(%arg0: i32) -> (i32, i32) {
    %c0_i32 = arith.constant 0 : i32
    %c0_i32_0 = arith.constant 0 : i32
    %c0_i32_1 = arith.constant 0 : i32
    return %c0_i32, %c0_i32_0 : i32, i32
  }
}

</mosaic_0001>

<llo_original>
// kernel: tpu_custom_call.1
$region0: #{tpu_custom_call.1}
  #allocation0 [shape = 'u32[]', space=smem, size = 0x4, offset = 0x4, fixed_abs, tag = 'smem constant byte address 0x4 - core index']
  #allocation1 [shape = 'u32[144,128]{1,0:T(1,128)}', space=vmem, size = 0x12000, scoped, tag = 'internal scratch']
  %s0 = inlined_call_operand.vmem [shape: s32[16,1], index: 0, kind: input, shape index: {}]
  %s1 = inlined_call_operand.vmem [shape: f32[40,32], index: 1, kind: input, shape index: {}]
  %s2 = inlined_call_operand.vmem [shape: f32[32,96], index: 2, kind: input, shape index: {}]
  %s3 = inlined_call_operand.vmem [shape: f32[1,96], index: 3, kind: input, shape index: {}]
  %s4 = inlined_call_operand.vmem [shape: f32[32,48], index: 4, kind: input, shape index: {}]
  %s5 = inlined_call_operand.vmem [shape: bf16[32,2048], index: 5, kind: input, shape index: {}]
  %s6 = inlined_call_operand.vmem [shape: f32[1,2048], index: 6, kind: input, shape index: {}]
  %s7 = inlined_call_operand.vmem [shape: bf16[2048,32], index: 7, kind: input, shape index: {}]
  %s8 = inlined_call_operand.hbm [shape: f32[16,16], index: 8, kind: output, shape index: {}]
  %s9 = sld [smem:[#allocation0]]
  $region42: #{tpu_custom_call.1} parent=0
    _
  %s11 = ssub.s32 1, %s9
  %s12 = scalar_select 0, %s11, %s9
  $region1: #{tpu_custom_call.1} parent=0
    #allocation2 [shape = 'u8[8192]{0}', space=vmem, size = 0x2000, scoped, tag = 'output window, operand 0, single buffered']
    #allocation3 [shape = 's32[1]{0}', space=sflag, size = 0x4, scoped, tag = 'scoped memory for tpu_custom_call.1']
    %13 = vsyncpa [#allocation3], 0
    // Predicated region
    $region2: #{tpu_custom_call.1} parent=1 // pred_check
      _
    $region3: #{tpu_custom_call.1} parent=1 // pred_check_branch
      %15 = sbr.rel (0) target = $region5
    $region4: #{tpu_custom_call.1} parent=1 // pred_region
      _
    $region5: #{tpu_custom_call.1} parent=1 // pred_fallthru
      _
    // Predicated region
    $region6: #{tpu_custom_call.1} parent=1 // pred_check
      _
    $region7: #{tpu_custom_call.1} parent=1 // pred_check_branch
      %17 = sbr.rel (0) target = $region9
    $region8: #{tpu_custom_call.1} parent=1 // pred_region
      _
    $region9: #{tpu_custom_call.1} parent=1 // pred_fallthru
      _
    // Predicated region
    $region10: #{tpu_custom_call.1} parent=1 // pred_check
      _
    $region11: #{tpu_custom_call.1} parent=1 // pred_check_branch
      %19 = sbr.rel (0) target = $region13
    $region12: #{tpu_custom_call.1} parent=1 // pred_region
      _
    $region13: #{tpu_custom_call.1} parent=1 // pred_fallthru
      _
    // Predicated region
    $region14: #{tpu_custom_call.1} parent=1 // pred_check
      _
    $region15: #{tpu_custom_call.1} parent=1 // pred_check_branch
      %21 = sbr.rel (0) target = $region17
    $region16: #{tpu_custom_call.1} parent=1 // pred_region
      _
    $region17: #{tpu_custom_call.1} parent=1 // pred_fallthru
      _
    // Predicated region
    $region18: #{tpu_custom_call.1} parent=1 // pred_check
      _
    $region19: #{tpu_custom_call.1} parent=1 // pred_check_branch
      %23 = sbr.rel (0) target = $region21
    $region20: #{tpu_custom_call.1} parent=1 // pred_region
      _
    $region21: #{tpu_custom_call.1} parent=1 // pred_fallthru
      _
    // Predicated region
    $region22: #{tpu_custom_call.1} parent=1 // pred_check
      _
    $region23: #{tpu_custom_call.1} parent=1 // pred_check_branch
      %25 = sbr.rel (0) target = $region25
    $region24: #{tpu_custom_call.1} parent=1 // pred_region
      _
    $region25: #{tpu_custom_call.1} parent=1 // pred_fallthru
      _
    // Predicated region
    $region26: #{tpu_custom_call.1} parent=1 // pred_check
      _
    $region27: #{tpu_custom_call.1} parent=1 // pred_check_branch
      %27 = sbr.rel (0) target = $region29
    $region28: #{tpu_custom_call.1} parent=1 // pred_region
      _
    $region29: #{tpu_custom_call.1} parent=1 // pred_fallthru
      _
    // Predicated region
    $region30: #{tpu_custom_call.1} parent=1 // pred_check
      _
    $region31: #{tpu_custom_call.1} parent=1 // pred_check_branch
      %29 = sbr.rel (0) target = $region33
    $region32: #{tpu_custom_call.1} parent=1 // pred_region
      _
    $region33: #{tpu_custom_call.1} parent=1 // pred_fallthru
      _
    %v31 = vld [vmem:[%s1] sm:$0xff]
    %v32 = vld [vmem:[%s1 + $0x8] sm:$0xff]
    %v33 = vld [vmem:[%s1 + $0x10] sm:$0xff]
    %v34 = vld [vmem:[%s1 + $0x18] sm:$0xff]
    %v35 = vld [vmem:[%s1 + $0x20] sm:$0xff]
    %v36 = vld [vmem:[%s0] sm:$0xff]
    %v37 = vld [vmem:[%s0 + $0x8] sm:$0xff]
    %v38 = vlaneseq
    %v39 = vand.u32 %v38, 127
    %40 = vset.pattern.permute.xlu0 0
    %41 = vperm.xlu0 %40, %v36
    %v42 = vpop.permute.xlu0 %41
    %43 = vset.pattern.permute.xlu0 0
    %44 = vperm.xlu0 %43, %v37
    %v45 = vpop.permute.xlu0 %44
    %vm46 = vcmp.eq.s32.totalorder %v42, %v39
    %vm47 = vcmp.eq.s32.totalorder %v45, %v39
    %v48 = vsel %vm46, 1, 0
    %v49 = vsel %vm47, 1, 0
    %v50 = vcvt.s32.f32 %v48
    %v51 = vcvt.s32.f32 %v49
    %vm52 = vcmask 130048
    %v54 = vsel %vm52, %v50, 0
    %v57 = vsel %vm52, %v51, 0
    %59 = vmatprep.subr.mxu0 0.0
    %60 = vmatpush1.msra.mxu0 0.0
    %61 = vmatprep.subr.mxu0 0.0
    %62 = vmatpush1.msra.mxu0 0.0
    %63 = vmatprep.subr.mxu0 0.0
    %64 = vmatpush1.msra.mxu0 0.0
    %65 = vmatprep.subr.mxu0 0.0
    %66 = vmatpush1.msra.mxu0 0.0
    %67 = vmatprep.subr.mxu0 0.0
    %68 = vmatpush1.msra.mxu0 0.0
    %69 = vmatprep.subr.mxu0 0.0
    %70 = vmatpush1.msra.mxu0 0.0
    %71 = vmatprep.subr.mxu0 0.0
    %72 = vmatpush1.msra.mxu0 0.0
    %73 = vmatprep.subr.mxu0 0.0
    %74 = vmatpush1.msra.mxu0 0.0
    %75 = vmatprep.subr.mxu0 0.0
    %76 = vmatpush1.msra.mxu0 0.0
    %77 = vmatprep.subr.mxu0 0.0
    %78 = vmatpush1.msra.mxu0 0.0
    %79 = vmatprep.subr.mxu0 0.0
    %80 = vmatpush1.msra.mxu0 0.0
    %81 = vmatprep.subr.mxu0 0.0
    %82 = vmatpush1.msra.mxu0 0.0
    %83 = vmatprep.subr.mxu0 0.0
    %84 = vmatpush1.msra.mxu0 0.0
    %85 = vmatprep.subr.mxu0 0.0
    %86 = vmatpush1.msra.mxu0 0.0
    %87 = vmatprep.subr.mxu0 0.0
    %88 = vmatpush1.msra.mxu0 %v32
    %89 = vmatprep.subr.mxu0 0.0
    %90 = vmatpush1.msra.mxu0 %v31
    %91 = vmatprep.subr.mxu0 0.0
    %92 = vmatpush2.msra.mxu0 0.0
    %93 = vmatprep.subr.mxu0 0.0
    %94 = vmatpush2.msra.mxu0 0.0
    %95 = vmatprep.subr.mxu0 0.0
    %96 = vmatpush2.msra.mxu0 0.0
    %97 = vmatprep.subr.mxu0 0.0
    %98 = vmatpush2.msra.mxu0 0.0
    %99 = vmatprep.subr.mxu0 0.0
    %100 = vmatpush2.msra.mxu0 0.0
    %101 = vmatprep.subr.mxu0 0.0
    %102 = vmatpush2.msra.mxu0 0.0
    %103 = vmatprep.subr.mxu0 0.0
    %104 = vmatpush2.msra.mxu0 0.0
    %105 = vmatprep.subr.mxu0 0.0
    %106 = vmatpush2.msra.mxu0 0.0
    %107 = vmatprep.subr.mxu0 0.0
    %108 = vmatpush2.msra.mxu0 0.0
    %109 = vmatprep.subr.mxu0 0.0
    %110 = vmatpush2.msra.mxu0 0.0
    %111 = vmatprep.subr.mxu0 0.0
    %112 = vmatpush2.msra.mxu0 0.0
    %113 = vmatprep.subr.mxu0 0.0
    %114 = vmatpush2.msra.mxu0 0.0
    %115 = vmatprep.subr.mxu0 0.0
    %116 = vmatpush2.msra.mxu0 0.0
    %117 = vmatprep.subr.mxu0 0.0
    %118 = vmatpush2.msra.mxu0 0.0
    %119 = vmatprep.subr.mxu0 0.0
    %120 = vmatpush2.msra.mxu0 0.0
    %121 = vmatprep.subr.mxu0 0.0
    %122 = vmatpush2.msra.mxu0 0.0
    %123 = vmatprep.mubr.f32.mxu0 0.0
    %124 = vmatmul.mubr.f32.gmra.mxu0 %v54
    %v125 = vpop.f32.mrf.mxu0
    %v126 = vadd.f32 %v33, %v125
    %v127 = vpop.f32.mrf.mxu0
    %128 = vmatprep.mubr.f32.mxu0 0.0
    %129 = vmatmul.mubr.f32.gmra.mxu0 %v57
    %v130 = vpop.f32.mrf.mxu0
    %v131 = vadd.f32 %v34, %v130
    %v132 = vpop.f32.mrf.mxu0
    %133 = vdwg.mxu0
    %v134 = vld [vmem:[%s2] sm:$0xff]
    %v135 = vld [vmem:[%s2 + $0x8] sm:$0xff]
    %v136 = vld [vmem:[%s2 + $0x10] sm:$0xff]
    %v137 = vld [vmem:[%s2 + $0x18] sm:$0xff]
    %v138 = vld [vmem:[%s3] sm:$0x1]
    %v140 = vlaneseq
    %v141 = vshrl.u32 %v140, 7
    %v142 = vsub.s32 0, %v141
    %v143 = vrot.slane %v138, %v142
    %vm145 = vcmask 261120
    %v147 = vsel %vm145, %v126, 0
    %v150 = vsel %vm145, %v131, 0
    %152 = vmatprep.subr.mxu0 0.0
    %153 = vmatpush1.msra.mxu0 0.0
    %154 = vmatprep.subr.mxu0 0.0
    %155 = vmatpush1.msra.mxu0 0.0
    %156 = vmatprep.subr.mxu0 0.0
    %157 = vmatpush1.msra.mxu0 0.0
    %158 = vmatprep.subr.mxu0 0.0
    %159 = vmatpush1.msra.mxu0 0.0
    %160 = vmatprep.subr.mxu0 0.0
    %161 = vmatpush1.msra.mxu0 0.0
    %162 = vmatprep.subr.mxu0 0.0
    %163 = vmatpush1.msra.mxu0 0.0
    %164 = vmatprep.subr.mxu0 0.0
    %165 = vmatpush1.msra.mxu0 0.0
    %166 = vmatprep.subr.mxu0 0.0
    %167 = vmatpush1.msra.mxu0 0.0
    %168 = vmatprep.subr.mxu0 0.0
    %169 = vmatpush1.msra.mxu0 0.0
    %170 = vmatprep.subr.mxu0 0.0
    %171 = vmatpush1.msra.mxu0 0.0
    %172 = vmatprep.subr.mxu0 0.0
    %173 = vmatpush1.msra.mxu0 0.0
    %174 = vmatprep.subr.mxu0 0.0
    %175 = vmatpush1.msra.mxu0 0.0
    %176 = vmatprep.subr.mxu0 0.0
    %177 = vmatpush1.msra.mxu0 %v137
    %178 = vmatprep.subr.mxu0 0.0
    %179 = vmatpush1.msra.mxu0 %v136
    %180 = vmatprep.subr.mxu0 0.0
    %181 = vmatpush1.msra.mxu0 %v135
    %182 = vmatprep.subr.mxu0 0.0
    %183 = vmatpush1.msra.mxu0 %v134
    %184 = vmatprep.subr.mxu0 0.0
    %185 = vmatpush2.msra.mxu0 0.0
    %186 = vmatprep.subr.mxu0 0.0
    %187 = vmatpush2.msra.mxu0 0.0
    %188 = vmatprep.subr.mxu0 0.0
    %189 = vmatpush2.msra.mxu0 0.0
    %190 = vmatprep.subr.mxu0 0.0
    %191 = vmatpush2.msra.mxu0 0.0
    %192 = vmatprep.subr.mxu0 0.0
    %193 = vmatpush2.msra.mxu0 0.0
    %194 = vmatprep.subr.mxu0 0.0
    %195 = vmatpush2.msra.mxu0 0.0
    %196 = vmatprep.subr.mxu0 0.0
    %197 = vmatpush2.msra.mxu0 0.0
    %198 = vmatprep.subr.mxu0 0.0
    %199 = vmatpush2.msra.mxu0 0.0
    %200 = vmatprep.subr.mxu0 0.0
    %201 = vmatpush2.msra.mxu0 0.0
    %202 = vmatprep.subr.mxu0 0.0
    %203 = vmatpush2.msra.mxu0 0.0
    %204 = vmatprep.subr.mxu0 0.0
    %205 = vmatpush2.msra.mxu0 0.0
    %206 = vmatprep.subr.mxu0 0.0
    %207 = vmatpush2.msra.mxu0 0.0
    %208 = vmatprep.subr.mxu0 0.0
    %209 = vmatpush2.msra.mxu0 0.0
    %210 = vmatprep.subr.mxu0 0.0
    %211 = vmatpush2.msra.mxu0 0.0
    %212 = vmatprep.subr.mxu0 0.0
    %213 = vmatpush2.msra.mxu0 0.0
    %214 = vmatprep.subr.mxu0 0.0
    %215 = vmatpush2.msra.mxu0 0.0
    %216 = vmatprep.mubr.f32.mxu0 0.0
    %217 = vmatmul.mubr.f32.gmra.mxu0 %v147
    %v218 = vpop.f32.mrf.mxu0
    %v219 = vadd.f32 %v143, %v218
    %v220 = vpop.f32.mrf.mxu0
    %221 = vmatprep.mubr.f32.mxu0 0.0
    %222 = vmatmul.mubr.f32.gmra.mxu0 %v150
    %v223 = vpop.f32.mrf.mxu0
    %v224 = vadd.f32 %v143, %v223
    %v225 = vpop.f32.mrf.mxu0
    %226 = vdwg.mxu0
    %v227 = vmul.f32 %v219, 0.35355338
    %v228 = vmul.f32 %v224, 0.35355338
    %230 = vrot.lane.b32.xlu0 %v219, 96
    %v231 = vpop.permute.xlu0 %230
    %vm232 = vcmask 64512
    %v234 = vsel %vm232, %v227, 0
    %v236 = vsel %vm232, %v231, 0
    %238 = vmatprep.subr.mxu0 0.0
    %239 = vmatpush1.xpose.msra.mxu0 0.0
    %240 = vmatprep.subr.mxu0 0.0
    %241 = vmatpush1.xpose.msra.mxu0 0.0
    %242 = vmatprep.subr.mxu0 0.0
    %243 = vmatpush1.xpose.msra.mxu0 0.0
    %244 = vmatprep.subr.mxu0 0.0
    %245 = vmatpush1.xpose.msra.mxu0 0.0
    %246 = vmatprep.subr.mxu0 0.0
    %247 = vmatpush1.xpose.msra.mxu0 0.0
    %248 = vmatprep.subr.mxu0 0.0
    %249 = vmatpush1.xpose.msra.mxu0 0.0
    %250 = vmatprep.subr.mxu0 0.0
    %251 = vmatpush1.xpose.msra.mxu0 0.0
    %252 = vmatprep.subr.mxu0 0.0
    %253 = vmatpush1.xpose.msra.mxu0 0.0
    %254 = vmatprep.subr.mxu0 0.0
    %255 = vmatpush1.xpose.msra.mxu0 0.0
    %256 = vmatprep.subr.mxu0 0.0
    %257 = vmatpush1.xpose.msra.mxu0 0.0
    %258 = vmatprep.subr.mxu0 0.0
    %259 = vmatpush1.xpose.msra.mxu0 0.0
    %260 = vmatprep.subr.mxu0 0.0
    %261 = vmatpush1.xpose.msra.mxu0 0.0
    %262 = vmatprep.subr.mxu0 0.0
    %263 = vmatpush1.xpose.msra.mxu0 0.0
    %264 = vmatprep.subr.mxu0 0.0
    %265 = vmatpush1.xpose.msra.mxu0 0.0
    %266 = vmatprep.subr.mxu0 0.0
    %267 = vmatpush1.xpose.msra.mxu0 0.0
    %268 = vmatprep.subr.mxu0 0.0
    %269 = vmatpush1.xpose.msra.mxu0 %v236
    %270 = vmatprep.subr.mxu0 0.0
    %271 = vmatpush2.xpose.msra.mxu0 0.0
    %272 = vmatprep.subr.mxu0 0.0
    %273 = vmatpush2.xpose.msra.mxu0 0.0
    %274 = vmatprep.subr.mxu0 0.0
    %275 = vmatpush2.xpose.msra.mxu0 0.0
    %276 = vmatprep.subr.mxu0 0.0
    %277 = vmatpush2.xpose.msra.mxu0 0.0
    %278 = vmatprep.subr.mxu0 0.0
    %279 = vmatpush2.xpose.msra.mxu0 0.0
    %280 = vmatprep.subr.mxu0 0.0
    %281 = vmatpush2.xpose.msra.mxu0 0.0
    %282 = vmatprep.subr.mxu0 0.0
    %283 = vmatpush2.xpose.msra.mxu0 0.0
    %284 = vmatprep.subr.mxu0 0.0
    %285 = vmatpush2.xpose.msra.mxu0 0.0
    %286 = vmatprep.subr.mxu0 0.0
    %287 = vmatpush2.xpose.msra.mxu0 0.0
    %288 = vmatprep.subr.mxu0 0.0
    %289 = vmatpush2.xpose.msra.mxu0 0.0
    %290 = vmatprep.subr.mxu0 0.0
    %291 = vmatpush2.xpose.msra.mxu0 0.0
    %292 = vmatprep.subr.mxu0 0.0
    %293 = vmatpush2.xpose.msra.mxu0 0.0
    %294 = vmatprep.subr.mxu0 0.0
    %295 = vmatpush2.xpose.msra.mxu0 0.0
    %296 = vmatprep.subr.mxu0 0.0
    %297 = vmatpush2.xpose.msra.mxu0 0.0
    %298 = vmatprep.subr.mxu0 0.0
    %299 = vmatpush2.xpose.msra.mxu0 0.0
    %300 = vmatprep.subr.mxu0 0.0
    %301 = vmatpush2.xpose.msra.mxu0 0.0
    %302 = vmatprep.mubr.f32.mxu0 0.0
    %303 = vmatmul.mubr.f32.gmra.mxu0 %v234
    %v304 = vpop.f32.mrf.mxu0
    %v305 = vadd.f32 0.0, %v304
    %v306 = vpop.f32.mrf.mxu0
    %307 = vdwg.mxu0
    %309 = vrot.lane.b32.xlu0 %v224, 96
    %v310 = vpop.permute.xlu0 %309
    %v312 = vsel %vm232, %v228, 0
    %v314 = vsel %vm232, %v310, 0
    %316 = vmatprep.subr.mxu0 0.0
    %317 = vmatpush1.xpose.msra.mxu0 0.0
    %318 = vmatprep.subr.mxu0 0.0
    %319 = vmatpush1.xpose.msra.mxu0 0.0
    %320 = vmatprep.subr.mxu0 0.0
    %321 = vmatpush1.xpose.msra.mxu0 0.0
    %322 = vmatprep.subr.mxu0 0.0
    %323 = vmatpush1.xpose.msra.mxu0 0.0
    %324 = vmatprep.subr.mxu0 0.0
    %325 = vmatpush1.xpose.msra.mxu0 0.0
    %326 = vmatprep.subr.mxu0 0.0
    %327 = vmatpush1.xpose.msra.mxu0 0.0
    %328 = vmatprep.subr.mxu0 0.0
    %329 = vmatpush1.xpose.msra.mxu0 0.0
    %330 = vmatprep.subr.mxu0 0.0
    %331 = vmatpush1.xpose.msra.mxu0 0.0
    %332 = vmatprep.subr.mxu0 0.0
    %333 = vmatpush1.xpose.msra.mxu0 0.0
    %334 = vmatprep.subr.mxu0 0.0
    %335 = vmatpush1.xpose.msra.mxu0 0.0
    %336 = vmatprep.subr.mxu0 0.0
    %337 = vmatpush1.xpose.msra.mxu0 0.0
    %338 = vmatprep.subr.mxu0 0.0
    %339 = vmatpush1.xpose.msra.mxu0 0.0
    %340 = vmatprep.subr.mxu0 0.0
    %341 = vmatpush1.xpose.msra.mxu0 0.0
    %342 = vmatprep.subr.mxu0 0.0
    %343 = vmatpush1.xpose.msra.mxu0 0.0
    %344 = vmatprep.subr.mxu0 0.0
    %345 = vmatpush1.xpose.msra.mxu0 0.0
    %346 = vmatprep.subr.mxu0 0.0
    %347 = vmatpush1.xpose.msra.mxu0 %v314
    %348 = vmatprep.subr.mxu0 0.0
    %349 = vmatpush2.xpose.msra.mxu0 0.0
    %350 = vmatprep.subr.mxu0 0.0
    %351 = vmatpush2.xpose.msra.mxu0 0.0
    %352 = vmatprep.subr.mxu0 0.0
    %353 = vmatpush2.xpose.msra.mxu0 0.0
    %354 = vmatprep.subr.mxu0 0.0
    %355 = vmatpush2.xpose.msra.mxu0 0.0
    %356 = vmatprep.subr.mxu0 0.0
    %357 = vmatpush2.xpose.msra.mxu0 0.0
    %358 = vmatprep.subr.mxu0 0.0
    %359 = vmatpush2.xpose.msra.mxu0 0.0
    %360 = vmatprep.subr.mxu0 0.0
    %361 = vmatpush2.xpose.msra.mxu0 0.0
    %362 = vmatprep.subr.mxu0 0.0
    %363 = vmatpush2.xpose.msra.mxu0 0.0
    %364 = vmatprep.subr.mxu0 0.0
    %365 = vmatpush2.xpose.msra.mxu0 0.0
    %366 = vmatprep.subr.mxu0 0.0
    %367 = vmatpush2.xpose.msra.mxu0 0.0
    %368 = vmatprep.subr.mxu0 0.0
    %369 = vmatpush2.xpose.msra.mxu0 0.0
    %370 = vmatprep.subr.mxu0 0.0
    %371 = vmatpush2.xpose.msra.mxu0 0.0
    %372 = vmatprep.subr.mxu0 0.0
    %373 = vmatpush2.xpose.msra.mxu0 0.0
    %374 = vmatprep.subr.mxu0 0.0
    %375 = vmatpush2.xpose.msra.mxu0 0.0
    %376 = vmatprep.subr.mxu0 0.0
    %377 = vmatpush2.xpose.msra.mxu0 0.0
    %378 = vmatprep.subr.mxu0 0.0
    %379 = vmatpush2.xpose.msra.mxu0 0.0
    %380 = vmatprep.mubr.f32.mxu0 0.0
    %381 = vmatmul.mubr.f32.gmra.mxu0 %v312
    %v382 = vpop.f32.mrf.mxu0
    %v383 = vadd.f32 0.0, %v382
    %v384 = vpop.f32.mrf.mxu0
    %385 = vdwg.mxu0
    %386 = vrot.lane.b32.xlu0 %v227, 120
    %v387 = vpop.permute.xlu0 %386
    %388 = vrot.lane.b32.xlu0 %v219, 88
    %v389 = vpop.permute.xlu0 %388
    %v390 = vsel %vm232, %v387, 0
    %v392 = vsel %vm232, %v389, 0
    %394 = vmatprep.subr.mxu0 0.0
    %395 = vmatpush1.xpose.msra.mxu0 0.0
    %396 = vmatprep.subr.mxu0 0.0
    %397 = vmatpush1.xpose.msra.mxu0 0.0
    %398 = vmatprep.subr.mxu0 0.0
    %399 = vmatpush1.xpose.msra.mxu0 0.0
    %400 = vmatprep.subr.mxu0 0.0
    %401 = vmatpush1.xpose.msra.mxu0 0.0
    %402 = vmatprep.subr.mxu0 0.0
    %403 = vmatpush1.xpose.msra.mxu0 0.0
    %404 = vmatprep.subr.mxu0 0.0
    %405 = vmatpush1.xpose.msra.mxu0 0.0
    %406 = vmatprep.subr.mxu0 0.0
    %407 = vmatpush1.xpose.msra.mxu0 0.0
    %408 = vmatprep.subr.mxu0 0.0
    %409 = vmatpush1.xpose.msra.mxu0 0.0
    %410 = vmatprep.subr.mxu0 0.0
    %411 = vmatpush1.xpose.msra.mxu0 0.0
    %412 = vmatprep.subr.mxu0 0.0
    %413 = vmatpush1.xpose.msra.mxu0 0.0
    %414 = vmatprep.subr.mxu0 0.0
    %415 = vmatpush1.xpose.msra.mxu0 0.0
    %416 = vmatprep.subr.mxu0 0.0
    %417 = vmatpush1.xpose.msra.mxu0 0.0
    %418 = vmatprep.subr.mxu0 0.0
    %419 = vmatpush1.xpose.msra.mxu0 0.0
    %420 = vmatprep.subr.mxu0 0.0
    %421 = vmatpush1.xpose.msra.mxu0 0.0
    %422 = vmatprep.subr.mxu0 0.0
    %423 = vmatpush1.xpose.msra.mxu0 0.0
    %424 = vmatprep.subr.mxu0 0.0
    %425 = vmatpush1.xpose.msra.mxu0 %v392
    %426 = vmatprep.subr.mxu0 0.0
    %427 = vmatpush2.xpose.msra.mxu0 0.0
    %428 = vmatprep.subr.mxu0 0.0
    %429 = vmatpush2.xpose.msra.mxu0 0.0
    %430 = vmatprep.subr.mxu0 0.0
    %431 = vmatpush2.xpose.msra.mxu0 0.0
    %432 = vmatprep.subr.mxu0 0.0
    %433 = vmatpush2.xpose.msra.mxu0 0.0
    %434 = vmatprep.subr.mxu0 0.0
    %435 = vmatpush2.xpose.msra.mxu0 0.0
    %436 = vmatprep.subr.mxu0 0.0
    %437 = vmatpush2.xpose.msra.mxu0 0.0
    %438 = vmatprep.subr.mxu0 0.0
    %439 = vmatpush2.xpose.msra.mxu0 0.0
    %440 = vmatprep.subr.mxu0 0.0
    %441 = vmatpush2.xpose.msra.mxu0 0.0
    %442 = vmatprep.subr.mxu0 0.0
    %443 = vmatpush2.xpose.msra.mxu0 0.0
    %444 = vmatprep.subr.mxu0 0.0
    %445 = vmatpush2.xpose.msra.mxu0 0.0
    %446 = vmatprep.subr.mxu0 0.0
    %447 = vmatpush2.xpose.msra.mxu0 0.0
    %448 = vmatprep.subr.mxu0 0.0
    %449 = vmatpush2.xpose.msra.mxu0 0.0
    %450 = vmatprep.subr.mxu0 0.0
    %451 = vmatpush2.xpose.msra.mxu0 0.0
    %452 = vmatprep.subr.mxu0 0.0
    %453 = vmatpush2.xpose.msra.mxu0 0.0
    %454 = vmatprep.subr.mxu0 0.0
    %455 = vmatpush2.xpose.msra.mxu0 0.0
    %456 = vmatprep.subr.mxu0 0.0
    %457 = vmatpush2.xpose.msra.mxu0 0.0
    %458 = vmatprep.mubr.f32.mxu0 0.0
    %459 = vmatmul.mubr.f32.gmra.mxu0 %v390
    %v460 = vpop.f32.mrf.mxu0
    %v461 = vadd.f32 0.0, %v460
    %v462 = vpop.f32.mrf.mxu0
    %463 = vdwg.mxu0
    %464 = vrot.lane.b32.xlu0 %v228, 120
    %v465 = vpop.permute.xlu0 %464
    %466 = vrot.lane.b32.xlu0 %v224, 88
    %v467 = vpop.permute.xlu0 %466
    %v468 = vsel %vm232, %v465, 0
    %v470 = vsel %vm232, %v467, 0
    %472 = vmatprep.subr.mxu0 0.0
    %473 = vmatpush1.xpose.msra.mxu0 0.0
    %474 = vmatprep.subr.mxu0 0.0
    %475 = vmatpush1.xpose.msra.mxu0 0.0
    %476 = vmatprep.subr.mxu0 0.0
    %477 = vmatpush1.xpose.msra.mxu0 0.0
    %478 = vmatprep.subr.mxu0 0.0
    %479 = vmatpush1.xpose.msra.mxu0 0.0
    %480 = vmatprep.subr.mxu0 0.0
    %481 = vmatpush1.xpose.msra.mxu0 0.0
    %482 = vmatprep.subr.mxu0 0.0
    %483 = vmatpush1.xpose.msra.mxu0 0.0
    %484 = vmatprep.subr.mxu0 0.0
    %485 = vmatpush1.xpose.msra.mxu0 0.0
    %486 = vmatprep.subr.mxu0 0.0
    %487 = vmatpush1.xpose.msra.mxu0 0.0
    %488 = vmatprep.subr.mxu0 0.0
    %489 = vmatpush1.xpose.msra.mxu0 0.0
    %490 = vmatprep.subr.mxu0 0.0
    %491 = vmatpush1.xpose.msra.mxu0 0.0
    %492 = vmatprep.subr.mxu0 0.0
    %493 = vmatpush1.xpose.msra.mxu0 0.0
    %494 = vmatprep.subr.mxu0 0.0
    %495 = vmatpush1.xpose.msra.mxu0 0.0
    %496 = vmatprep.subr.mxu0 0.0
    %497 = vmatpush1.xpose.msra.mxu0 0.0
    %498 = vmatprep.subr.mxu0 0.0
    %499 = vmatpush1.xpose.msra.mxu0 0.0
    %500 = vmatprep.subr.mxu0 0.0
    %501 = vmatpush1.xpose.msra.mxu0 0.0
    %502 = vmatprep.subr.mxu0 0.0
    %503 = vmatpush1.xpose.msra.mxu0 %v470
    %504 = vmatprep.subr.mxu0 0.0
    %505 = vmatpush2.xpose.msra.mxu0 0.0
    %506 = vmatprep.subr.mxu0 0.0
    %507 = vmatpush2.xpose.msra.mxu0 0.0
    %508 = vmatprep.subr.mxu0 0.0
    %509 = vmatpush2.xpose.msra.mxu0 0.0
    %510 = vmatprep.subr.mxu0 0.0
    %511 = vmatpush2.xpose.msra.mxu0 0.0
    %512 = vmatprep.subr.mxu0 0.0
    %513 = vmatpush2.xpose.msra.mxu0 0.0
    %514 = vmatprep.subr.mxu0 0.0
    %515 = vmatpush2.xpose.msra.mxu0 0.0
    %516 = vmatprep.subr.mxu0 0.0
    %517 = vmatpush2.xpose.msra.mxu0 0.0
    %518 = vmatprep.subr.mxu0 0.0
    %519 = vmatpush2.xpose.msra.mxu0 0.0
    %520 = vmatprep.subr.mxu0 0.0
    %521 = vmatpush2.xpose.msra.mxu0 0.0
    %522 = vmatprep.subr.mxu0 0.0
    %523 = vmatpush2.xpose.msra.mxu0 0.0
    %524 = vmatprep.subr.mxu0 0.0
    %525 = vmatpush2.xpose.msra.mxu0 0.0
    %526 = vmatprep.subr.mxu0 0.0
    %527 = vmatpush2.xpose.msra.mxu0 0.0
    %528 = vmatprep.subr.mxu0 0.0
    %529 = vmatpush2.xpose.msra.mxu0 0.0
    %530 = vmatprep.subr.mxu0 0.0
    %531 = vmatpush2.xpose.msra.mxu0 0.0
    %532 = vmatprep.subr.mxu0 0.0
    %533 = vmatpush2.xpose.msra.mxu0 0.0
    %534 = vmatprep.subr.mxu0 0.0
    %535 = vmatpush2.xpose.msra.mxu0 0.0
    %536 = vmatprep.mubr.f32.mxu0 0.0
    %537 = vmatmul.mubr.f32.gmra.mxu0 %v468
    %v538 = vpop.f32.mrf.mxu0
    %v539 = vadd.f32 0.0, %v538
    %v540 = vpop.f32.mrf.mxu0
    %541 = vdwg.mxu0
    %542 = vrot.lane.b32.xlu0 %v227, 112
    %v543 = vpop.permute.xlu0 %542
    %544 = vrot.lane.b32.xlu0 %v219, 80
    %v545 = vpop.permute.xlu0 %544
    %v546 = vsel %vm232, %v543, 0
    %v548 = vsel %vm232, %v545, 0
    %550 = vmatprep.subr.mxu0 0.0
    %551 = vmatpush1.xpose.msra.mxu0 0.0
    %552 = vmatprep.subr.mxu0 0.0
    %553 = vmatpush1.xpose.msra.mxu0 0.0
    %554 = vmatprep.subr.mxu0 0.0
    %555 = vmatpush1.xpose.msra.mxu0 0.0
    %556 = vmatprep.subr.mxu0 0.0
    %557 = vmatpush1.xpose.msra.mxu0 0.0
    %558 = vmatprep.subr.mxu0 0.0
    %559 = vmatpush1.xpose.msra.mxu0 0.0
    %560 = vmatprep.subr.mxu0 0.0
    %561 = vmatpush1.xpose.msra.mxu0 0.0
    %562 = vmatprep.subr.mxu0 0.0
    %563 = vmatpush1.xpose.msra.mxu0 0.0
    %564 = vmatprep.subr.mxu0 0.0
    %565 = vmatpush1.xpose.msra.mxu0 0.0
    %566 = vmatprep.subr.mxu0 0.0
    %567 = vmatpush1.xpose.msra.mxu0 0.0
    %568 = vmatprep.subr.mxu0 0.0
    %569 = vmatpush1.xpose.msra.mxu0 0.0
    %570 = vmatprep.subr.mxu0 0.0
    %571 = vmatpush1.xpose.msra.mxu0 0.0
    %572 = vmatprep.subr.mxu0 0.0
    %573 = vmatpush1.xpose.msra.mxu0 0.0
    %574 = vmatprep.subr.mxu0 0.0
    %575 = vmatpush1.xpose.msra.mxu0 0.0
    %576 = vmatprep.subr.mxu0 0.0
    %577 = vmatpush1.xpose.msra.mxu0 0.0
    %578 = vmatprep.subr.mxu0 0.0
    %579 = vmatpush1.xpose.msra.mxu0 0.0
    %580 = vmatprep.subr.mxu0 0.0
    %581 = vmatpush1.xpose.msra.mxu0 %v548
    %582 = vmatprep.subr.mxu0 0.0
    %583 = vmatpush2.xpose.msra.mxu0 0.0
    %584 = vmatprep.subr.mxu0 0.0
    %585 = vmatpush2.xpose.msra.mxu0 0.0
    %586 = vmatprep.subr.mxu0 0.0
    %587 = vmatpush2.xpose.msra.mxu0 0.0
    %588 = vmatprep.subr.mxu0 0.0
    %589 = vmatpush2.xpose.msra.mxu0 0.0
    %590 = vmatprep.subr.mxu0 0.0
    %591 = vmatpush2.xpose.msra.mxu0 0.0
    %592 = vmatprep.subr.mxu0 0.0
    %593 = vmatpush2.xpose.msra.mxu0 0.0
    %594 = vmatprep.subr.mxu0 0.0
    %595 = vmatpush2.xpose.msra.mxu0 0.0
    %596 = vmatprep.subr.mxu0 0.0
    %597 = vmatpush2.xpose.msra.mxu0 0.0
    %598 = vmatprep.subr.mxu0 0.0
    %599 = vmatpush2.xpose.msra.mxu0 0.0
    %600 = vmatprep.subr.mxu0 0.0
    %601 = vmatpush2.xpose.msra.mxu0 0.0
    %602 = vmatprep.subr.mxu0 0.0
    %603 = vmatpush2.xpose.msra.mxu0 0.0
    %604 = vmatprep.subr.mxu0 0.0
    %605 = vmatpush2.xpose.msra.mxu0 0.0
    %606 = vmatprep.subr.mxu0 0.0
    %607 = vmatpush2.xpose.msra.mxu0 0.0
    %608 = vmatprep.subr.mxu0 0.0
    %609 = vmatpush2.xpose.msra.mxu0 0.0
    %610 = vmatprep.subr.mxu0 0.0
    %611 = vmatpush2.xpose.msra.mxu0 0.0
    %612 = vmatprep.subr.mxu0 0.0
    %613 = vmatpush2.xpose.msra.mxu0 0.0
    %614 = vmatprep.mubr.f32.mxu0 0.0
    %615 = vmatmul.mubr.f32.gmra.mxu0 %v546
    %v616 = vpop.f32.mrf.mxu0
    %v617 = vadd.f32 0.0, %v616
    %v618 = vpop.f32.mrf.mxu0
    %619 = vdwg.mxu0
    %620 = vrot.lane.b32.xlu0 %v228, 112
    %v621 = vpop.permute.xlu0 %620
    %622 = vrot.lane.b32.xlu0 %v224, 80
    %v623 = vpop.permute.xlu0 %622
    %v624 = vsel %vm232, %v621, 0
    %v626 = vsel %vm232, %v623, 0
    %628 = vmatprep.subr.mxu0 0.0
    %629 = vmatpush1.xpose.msra.mxu0 0.0
    %630 = vmatprep.subr.mxu0 0.0
    %631 = vmatpush1.xpose.msra.mxu0 0.0
    %632 = vmatprep.subr.mxu0 0.0
    %633 = vmatpush1.xpose.msra.mxu0 0.0
    %634 = vmatprep.subr.mxu0 0.0
    %635 = vmatpush1.xpose.msra.mxu0 0.0
    %636 = vmatprep.subr.mxu0 0.0
    %637 = vmatpush1.xpose.msra.mxu0 0.0
    %638 = vmatprep.subr.mxu0 0.0
    %639 = vmatpush1.xpose.msra.mxu0 0.0
    %640 = vmatprep.subr.mxu0 0.0
    %641 = vmatpush1.xpose.msra.mxu0 0.0
    %642 = vmatprep.subr.mxu0 0.0
    %643 = vmatpush1.xpose.msra.mxu0 0.0
    %644 = vmatprep.subr.mxu0 0.0
    %645 = vmatpush1.xpose.msra.mxu0 0.0
    %646 = vmatprep.subr.mxu0 0.0
    %647 = vmatpush1.xpose.msra.mxu0 0.0
    %648 = vmatprep.subr.mxu0 0.0
    %649 = vmatpush1.xpose.msra.mxu0 0.0
    %650 = vmatprep.subr.mxu0 0.0
    %651 = vmatpush1.xpose.msra.mxu0 0.0
    %652 = vmatprep.subr.mxu0 0.0
    %653 = vmatpush1.xpose.msra.mxu0 0.0
    %654 = vmatprep.subr.mxu0 0.0
    %655 = vmatpush1.xpose.msra.mxu0 0.0
    %656 = vmatprep.subr.mxu0 0.0
    %657 = vmatpush1.xpose.msra.mxu0 0.0
    %658 = vmatprep.subr.mxu0 0.0
    %659 = vmatpush1.xpose.msra.mxu0 %v626
    %660 = vmatprep.subr.mxu0 0.0
    %661 = vmatpush2.xpose.msra.mxu0 0.0
    %662 = vmatprep.subr.mxu0 0.0
    %663 = vmatpush2.xpose.msra.mxu0 0.0
    %664 = vmatprep.subr.mxu0 0.0
    %665 = vmatpush2.xpose.msra.mxu0 0.0
    %666 = vmatprep.subr.mxu0 0.0
    %667 = vmatpush2.xpose.msra.mxu0 0.0
    %668 = vmatprep.subr.mxu0 0.0
    %669 = vmatpush2.xpose.msra.mxu0 0.0
    %670 = vmatprep.subr.mxu0 0.0
    %671 = vmatpush2.xpose.msra.mxu0 0.0
    %672 = vmatprep.subr.mxu0 0.0
    %673 = vmatpush2.xpose.msra.mxu0 0.0
    %674 = vmatprep.subr.mxu0 0.0
    %675 = vmatpush2.xpose.msra.mxu0 0.0
    %676 = vmatprep.subr.mxu0 0.0
    %677 = vmatpush2.xpose.msra.mxu0 0.0
    %678 = vmatprep.subr.mxu0 0.0
    %679 = vmatpush2.xpose.msra.mxu0 0.0
    %680 = vmatprep.subr.mxu0 0.0
    %681 = vmatpush2.xpose.msra.mxu0 0.0
    %682 = vmatprep.subr.mxu0 0.0
    %683 = vmatpush2.xpose.msra.mxu0 0.0
    %684 = vmatprep.subr.mxu0 0.0
    %685 = vmatpush2.xpose.msra.mxu0 0.0
    %686 = vmatprep.subr.mxu0 0.0
    %687 = vmatpush2.xpose.msra.mxu0 0.0
    %688 = vmatprep.subr.mxu0 0.0
    %689 = vmatpush2.xpose.msra.mxu0 0.0
    %690 = vmatprep.subr.mxu0 0.0
    %691 = vmatpush2.xpose.msra.mxu0 0.0
    %692 = vmatprep.mubr.f32.mxu0 0.0
    %693 = vmatmul.mubr.f32.gmra.mxu0 %v624
    %v694 = vpop.f32.mrf.mxu0
    %v695 = vadd.f32 0.0, %v694
    %v696 = vpop.f32.mrf.mxu0
    %697 = vdwg.mxu0
    %698 = vrot.lane.b32.xlu0 %v227, 104
    %v699 = vpop.permute.xlu0 %698
    %700 = vrot.lane.b32.xlu0 %v219, 72
    %v701 = vpop.permute.xlu0 %700
    %v702 = vsel %vm232, %v699, 0
    %v704 = vsel %vm232, %v701, 0
    %706 = vmatprep.subr.mxu0 0.0
    %707 = vmatpush1.xpose.msra.mxu0 0.0
    %708 = vmatprep.subr.mxu0 0.0
    %709 = vmatpush1.xpose.msra.mxu0 0.0
    %710 = vmatprep.subr.mxu0 0.0
    %711 = vmatpush1.xpose.msra.mxu0 0.0
    %712 = vmatprep.subr.mxu0 0.0
    %713 = vmatpush1.xpose.msra.mxu0 0.0
    %714 = vmatprep.subr.mxu0 0.0
    %715 = vmatpush1.xpose.msra.mxu0 0.0
    %716 = vmatprep.subr.mxu0 0.0
    %717 = vmatpush1.xpose.msra.mxu0 0.0
    %718 = vmatprep.subr.mxu0 0.0
    %719 = vmatpush1.xpose.msra.mxu0 0.0
    %720 = vmatprep.subr.mxu0 0.0
    %721 = vmatpush1.xpose.msra.mxu0 0.0
    %722 = vmatprep.subr.mxu0 0.0
    %723 = vmatpush1.xpose.msra.mxu0 0.0
    %724 = vmatprep.subr.mxu0 0.0
    %725 = vmatpush1.xpose.msra.mxu0 0.0
    %726 = vmatprep.subr.mxu0 0.0
    %727 = vmatpush1.xpose.msra.mxu0 0.0
    %728 = vmatprep.subr.mxu0 0.0
    %729 = vmatpush1.xpose.msra.mxu0 0.0
    %730 = vmatprep.subr.mxu0 0.0
    %731 = vmatpush1.xpose.msra.mxu0 0.0
    %732 = vmatprep.subr.mxu0 0.0
    %733 = vmatpush1.xpose.msra.mxu0 0.0
    %734 = vmatprep.subr.mxu0 0.0
    %735 = vmatpush1.xpose.msra.mxu0 0.0
    %736 = vmatprep.subr.mxu0 0.0
    %737 = vmatpush1.xpose.msra.mxu0 %v704
    %738 = vmatprep.subr.mxu0 0.0
    %739 = vmatpush2.xpose.msra.mxu0 0.0
    %740 = vmatprep.subr.mxu0 0.0
    %741 = vmatpush2.xpose.msra.mxu0 0.0
    %742 = vmatprep.subr.mxu0 0.0
    %743 = vmatpush2.xpose.msra.mxu0 0.0
    %744 = vmatprep.subr.mxu0 0.0
    %745 = vmatpush2.xpose.msra.mxu0 0.0
    %746 = vmatprep.subr.mxu0 0.0
    %747 = vmatpush2.xpose.msra.mxu0 0.0
    %748 = vmatprep.subr.mxu0 0.0
    %749 = vmatpush2.xpose.msra.mxu0 0.0
    %750 = vmatprep.subr.mxu0 0.0
    %751 = vmatpush2.xpose.msra.mxu0 0.0
    %752 = vmatprep.subr.mxu0 0.0
    %753 = vmatpush2.xpose.msra.mxu0 0.0
    %754 = vmatprep.subr.mxu0 0.0
    %755 = vmatpush2.xpose.msra.mxu0 0.0
    %756 = vmatprep.subr.mxu0 0.0
    %757 = vmatpush2.xpose.msra.mxu0 0.0
    %758 = vmatprep.subr.mxu0 0.0
    %759 = vmatpush2.xpose.msra.mxu0 0.0
    %760 = vmatprep.subr.mxu0 0.0
    %761 = vmatpush2.xpose.msra.mxu0 0.0
    %762 = vmatprep.subr.mxu0 0.0
    %763 = vmatpush2.xpose.msra.mxu0 0.0
    %764 = vmatprep.subr.mxu0 0.0
    %765 = vmatpush2.xpose.msra.mxu0 0.0
    %766 = vmatprep.subr.mxu0 0.0
    %767 = vmatpush2.xpose.msra.mxu0 0.0
    %768 = vmatprep.subr.mxu0 0.0
    %769 = vmatpush2.xpose.msra.mxu0 0.0
    %770 = vmatprep.mubr.f32.mxu0 0.0
    %771 = vmatmul.mubr.f32.gmra.mxu0 %v702
    %v772 = vpop.f32.mrf.mxu0
    %v773 = vadd.f32 0.0, %v772
    %v774 = vpop.f32.mrf.mxu0
    %775 = vdwg.mxu0
    %776 = vrot.lane.b32.xlu0 %v228, 104
    %v777 = vpop.permute.xlu0 %776
    %778 = vrot.lane.b32.xlu0 %v224, 72
    %v779 = vpop.permute.xlu0 %778
    %v780 = vsel %vm232, %v777, 0
    %v782 = vsel %vm232, %v779, 0
    %784 = vmatprep.subr.mxu0 0.0
    %785 = vmatpush1.xpose.msra.mxu0 0.0
    %786 = vmatprep.subr.mxu0 0.0
    %787 = vmatpush1.xpose.msra.mxu0 0.0
    %788 = vmatprep.subr.mxu0 0.0
    %789 = vmatpush1.xpose.msra.mxu0 0.0
    %790 = vmatprep.subr.mxu0 0.0
    %791 = vmatpush1.xpose.msra.mxu0 0.0
    %792 = vmatprep.subr.mxu0 0.0
    %793 = vmatpush1.xpose.msra.mxu0 0.0
    %794 = vmatprep.subr.mxu0 0.0
    %795 = vmatpush1.xpose.msra.mxu0 0.0
    %796 = vmatprep.subr.mxu0 0.0
    %797 = vmatpush1.xpose.msra.mxu0 0.0
    %798 = vmatprep.subr.mxu0 0.0
    %799 = vmatpush1.xpose.msra.mxu0 0.0
    %800 = vmatprep.subr.mxu0 0.0
    %801 = vmatpush1.xpose.msra.mxu0 0.0
    %802 = vmatprep.subr.mxu0 0.0
    %803 = vmatpush1.xpose.msra.mxu0 0.0
    %804 = vmatprep.subr.mxu0 0.0
    %805 = vmatpush1.xpose.msra.mxu0 0.0
    %806 = vmatprep.subr.mxu0 0.0
    %807 = vmatpush1.xpose.msra.mxu0 0.0
    %808 = vmatprep.subr.mxu0 0.0
    %809 = vmatpush1.xpose.msra.mxu0 0.0
    %810 = vmatprep.subr.mxu0 0.0
    %811 = vmatpush1.xpose.msra.mxu0 0.0
    %812 = vmatprep.subr.mxu0 0.0
    %813 = vmatpush1.xpose.msra.mxu0 0.0
    %814 = vmatprep.subr.mxu0 0.0
    %815 = vmatpush1.xpose.msra.mxu0 %v782
    %816 = vmatprep.subr.mxu0 0.0
    %817 = vmatpush2.xpose.msra.mxu0 0.0
    %818 = vmatprep.subr.mxu0 0.0
    %819 = vmatpush2.xpose.msra.mxu0 0.0
    %820 = vmatprep.subr.mxu0 0.0
    %821 = vmatpush2.xpose.msra.mxu0 0.0
    %822 = vmatprep.subr.mxu0 0.0
    %823 = vmatpush2.xpose.msra.mxu0 0.0
    %824 = vmatprep.subr.mxu0 0.0
    %825 = vmatpush2.xpose.msra.mxu0 0.0
    %826 = vmatprep.subr.mxu0 0.0
    %827 = vmatpush2.xpose.msra.mxu0 0.0
    %828 = vmatprep.subr.mxu0 0.0
    %829 = vmatpush2.xpose.msra.mxu0 0.0
    %830 = vmatprep.subr.mxu0 0.0
    %831 = vmatpush2.xpose.msra.mxu0 0.0
    %832 = vmatprep.subr.mxu0 0.0
    %833 = vmatpush2.xpose.msra.mxu0 0.0
    %834 = vmatprep.subr.mxu0 0.0
    %835 = vmatpush2.xpose.msra.mxu0 0.0
    %836 = vmatprep.subr.mxu0 0.0
    %837 = vmatpush2.xpose.msra.mxu0 0.0
    %838 = vmatprep.subr.mxu0 0.0
    %839 = vmatpush2.xpose.msra.mxu0 0.0
    %840 = vmatprep.subr.mxu0 0.0
    %841 = vmatpush2.xpose.msra.mxu0 0.0
    %842 = vmatprep.subr.mxu0 0.0
    %843 = vmatpush2.xpose.msra.mxu0 0.0
    %844 = vmatprep.subr.mxu0 0.0
    %845 = vmatpush2.xpose.msra.mxu0 0.0
    %846 = vmatprep.subr.mxu0 0.0
    %847 = vmatpush2.xpose.msra.mxu0 0.0
    %848 = vmatprep.mubr.f32.mxu0 0.0
    %849 = vmatmul.mubr.f32.gmra.mxu0 %v780
    %v850 = vpop.f32.mrf.mxu0
    %v851 = vadd.f32 0.0, %v850
    %v852 = vpop.f32.mrf.mxu0
    %853 = vdwg.mxu0
    %v854 = vsel %vm232, %v305, -inf
    %855 = vmax.xlane.f32.xlu0 %v854
    %v856 = vpop.xlane.xlu0 %855
    %v857 = vsel %vm232, %v383, -inf
    %858 = vmax.xlane.f32.xlu0 %v857
    %v859 = vpop.xlane.xlu0 %858
    %v860 = vsel %vm232, %v461, -inf
    %861 = vmax.xlane.f32.xlu0 %v860
    %v862 = vpop.xlane.xlu0 %861
    %v863 = vsel %vm232, %v539, -inf
    %864 = vmax.xlane.f32.xlu0 %v863
    %v865 = vpop.xlane.xlu0 %864
    %v866 = vsel %vm232, %v617, -inf
    %867 = vmax.xlane.f32.xlu0 %v866
    %v868 = vpop.xlane.xlu0 %867
    %v869 = vsel %vm232, %v695, -inf
    %870 = vmax.xlane.f32.xlu0 %v869
    %v871 = vpop.xlane.xlu0 %870
    %v872 = vsel %vm232, %v773, -inf
    %873 = vmax.xlane.f32.xlu0 %v872
    %v874 = vpop.xlane.xlu0 %873
    %v875 = vsel %vm232, %v851, -inf
    %876 = vmax.xlane.f32.xlu0 %v875
    %v877 = vpop.xlane.xlu0 %876
    %v878 = vsub.f32 %v305, %v856
    %v879 = vsub.f32 %v383, %v859
    %v880 = vsub.f32 %v461, %v862
    %v881 = vsub.f32 %v539, %v865
    %v882 = vsub.f32 %v617, %v868
    %v883 = vsub.f32 %v695, %v871
    %v884 = vsub.f32 %v773, %v874
    %v885 = vsub.f32 %v851, %v877
    %v886 = vmul.f32 %v878, 1.442695
    %v887 = vpow.pop %v886
    %v888 = vmul.f32 %v879, 1.442695
    %v889 = vpow.pop %v888
    %v890 = vmul.f32 %v880, 1.442695
    %v891 = vpow.pop %v890
    %v892 = vmul.f32 %v881, 1.442695
    %v893 = vpow.pop %v892
    %v894 = vmul.f32 %v882, 1.442695
    %v895 = vpow.pop %v894
    %v896 = vmul.f32 %v883, 1.442695
    %v897 = vpow.pop %v896
    %v898 = vmul.f32 %v884, 1.442695
    %v899 = vpow.pop %v898
    %v900 = vmul.f32 %v885, 1.442695
    %v901 = vpow.pop %v900
    %v902 = vsel %vm232, %v887, 0.0
    %903 = vadd.xlane.f32.xlu0 %v902
    %v904 = vpop.xlane.xlu0 %903
    %v905 = vsel %vm232, %v889, 0.0
    %906 = vadd.xlane.f32.xlu0 %v905
    %v907 = vpop.xlane.xlu0 %906
    %v908 = vsel %vm232, %v891, 0.0
    %909 = vadd.xlane.f32.xlu0 %v908
    %v910 = vpop.xlane.xlu0 %909
    %v911 = vsel %vm232, %v893, 0.0
    %912 = vadd.xlane.f32.xlu0 %v911
    %v913 = vpop.xlane.xlu0 %912
    %v914 = vsel %vm232, %v895, 0.0
    %915 = vadd.xlane.f32.xlu0 %v914
    %v916 = vpop.xlane.xlu0 %915
    %v917 = vsel %vm232, %v897, 0.0
    %918 = vadd.xlane.f32.xlu0 %v917
    %v919 = vpop.xlane.xlu0 %918
    %v920 = vsel %vm232, %v899, 0.0
    %921 = vadd.xlane.f32.xlu0 %v920
    %v922 = vpop.xlane.xlu0 %921
    %v923 = vsel %vm232, %v901, 0.0
    %924 = vadd.xlane.f32.xlu0 %v923
    %v925 = vpop.xlane.xlu0 %924
    %v926 = vrcp.pop %v904
    %v927 = vmul.f32 %v887, %v926
    %v928 = vrcp.pop %v907
    %v929 = vmul.f32 %v889, %v928
    %v930 = vrcp.pop %v910
    %v931 = vmul.f32 %v891, %v930
    %v932 = vrcp.pop %v913
    %v933 = vmul.f32 %v893, %v932
    %v934 = vrcp.pop %v916
    %v935 = vmul.f32 %v895, %v934
    %v936 = vrcp.pop %v919
    %v937 = vmul.f32 %v897, %v936
    %v938 = vrcp.pop %v922
    %v939 = vmul.f32 %v899, %v938
    %v940 = vrcp.pop %v925
    %v941 = vmul.f32 %v901, %v940
    %942 = vrot.lane.b32.xlu0 %v219, 64
    %v943 = vpop.permute.xlu0 %942
    %v946 = vsel %vm232, %v927, 0
    %948 = vmatprep.subr.mxu0 0.0
    %949 = vmatpush1.msra.mxu0 0.0
    %950 = vmatprep.subr.mxu0 0.0
    %951 = vmatpush1.msra.mxu0 0.0
    %952 = vmatprep.subr.mxu0 0.0
    %953 = vmatpush1.msra.mxu0 0.0
    %954 = vmatprep.subr.mxu0 0.0
    %955 = vmatpush1.msra.mxu0 0.0
    %956 = vmatprep.subr.mxu0 0.0
    %957 = vmatpush1.msra.mxu0 0.0
    %958 = vmatprep.subr.mxu0 0.0
    %959 = vmatpush1.msra.mxu0 0.0
    %960 = vmatprep.subr.mxu0 0.0
    %961 = vmatpush1.msra.mxu0 0.0
    %962 = vmatprep.subr.mxu0 0.0
    %963 = vmatpush1.msra.mxu0 0.0
    %964 = vmatprep.subr.mxu0 0.0
    %965 = vmatpush1.msra.mxu0 0.0
    %966 = vmatprep.subr.mxu0 0.0
    %967 = vmatpush1.msra.mxu0 0.0
    %968 = vmatprep.subr.mxu0 0.0
    %969 = vmatpush1.msra.mxu0 0.0
    %970 = vmatprep.subr.mxu0 0.0
    %971 = vmatpush1.msra.mxu0 0.0
    %972 = vmatprep.subr.mxu0 0.0
    %973 = vmatpush1.msra.mxu0 0.0
    %974 = vmatprep.subr.mxu0 0.0
    %975 = vmatpush1.msra.mxu0 0.0
    %976 = vmatprep.subr.mxu0 0.0
    %977 = vmatpush1.msra.mxu0 0.0
    %978 = vmatprep.subr.mxu0 0.0
    %979 = vmatpush1.msra.mxu0 %v943
    %980 = vmatprep.subr.mxu0 0.0
    %981 = vmatpush2.msra.mxu0 0.0
    %982 = vmatprep.subr.mxu0 0.0
    %983 = vmatpush2.msra.mxu0 0.0
    %984 = vmatprep.subr.mxu0 0.0
    %985 = vmatpush2.msra.mxu0 0.0
    %986 = vmatprep.subr.mxu0 0.0
    %987 = vmatpush2.msra.mxu0 0.0
    %988 = vmatprep.subr.mxu0 0.0
    %989 = vmatpush2.msra.mxu0 0.0
    %990 = vmatprep.subr.mxu0 0.0
    %991 = vmatpush2.msra.mxu0 0.0
    %992 = vmatprep.subr.mxu0 0.0
    %993 = vmatpush2.msra.mxu0 0.0
    %994 = vmatprep.subr.mxu0 0.0
    %995 = vmatpush2.msra.mxu0 0.0
    %996 = vmatprep.subr.mxu0 0.0
    %997 = vmatpush2.msra.mxu0 0.0
    %998 = vmatprep.subr.mxu0 0.0
    %999 = vmatpush2.msra.mxu0 0.0
    %1000 = vmatprep.subr.mxu0 0.0
    %1001 = vmatpush2.msra.mxu0 0.0
    %1002 = vmatprep.subr.mxu0 0.0
    %1003 = vmatpush2.msra.mxu0 0.0
    %1004 = vmatprep.subr.mxu0 0.0
    %1005 = vmatpush2.msra.mxu0 0.0
    %1006 = vmatprep.subr.mxu0 0.0
    %1007 = vmatpush2.msra.mxu0 0.0
    %1008 = vmatprep.subr.mxu0 0.0
    %1009 = vmatpush2.msra.mxu0 0.0
    %1010 = vmatprep.subr.mxu0 0.0
    %1011 = vmatpush2.msra.mxu0 0.0
    %1012 = vmatprep.mubr.f32.mxu0 0.0
    %1013 = vmatmul.mubr.f32.gmra.mxu0 %v946
    %v1014 = vpop.f32.mrf.mxu0
    %v1015 = vadd.f32 0.0, %v1014
    %v1016 = vpop.f32.mrf.mxu0
    %1017 = vdwg.mxu0
    %1018 = vrot.lane.b32.xlu0 %v224, 64
    %v1019 = vpop.permute.xlu0 %1018
    %v1022 = vsel %vm232, %v929, 0
    %1024 = vmatprep.subr.mxu0 0.0
    %1025 = vmatpush1.msra.mxu0 0.0
    %1026 = vmatprep.subr.mxu0 0.0
    %1027 = vmatpush1.msra.mxu0 0.0
    %1028 = vmatprep.subr.mxu0 0.0
    %1029 = vmatpush1.msra.mxu0 0.0
    %1030 = vmatprep.subr.mxu0 0.0
    %1031 = vmatpush1.msra.mxu0 0.0
    %1032 = vmatprep.subr.mxu0 0.0
    %1033 = vmatpush1.msra.mxu0 0.0
    %1034 = vmatprep.subr.mxu0 0.0
    %1035 = vmatpush1.msra.mxu0 0.0
    %1036 = vmatprep.subr.mxu0 0.0
    %1037 = vmatpush1.msra.mxu0 0.0
    %1038 = vmatprep.subr.mxu0 0.0
    %1039 = vmatpush1.msra.mxu0 0.0
    %1040 = vmatprep.subr.mxu0 0.0
    %1041 = vmatpush1.msra.mxu0 0.0
    %1042 = vmatprep.subr.mxu0 0.0
    %1043 = vmatpush1.msra.mxu0 0.0
    %1044 = vmatprep.subr.mxu0 0.0
    %1045 = vmatpush1.msra.mxu0 0.0
    %1046 = vmatprep.subr.mxu0 0.0
    %1047 = vmatpush1.msra.mxu0 0.0
    %1048 = vmatprep.subr.mxu0 0.0
    %1049 = vmatpush1.msra.mxu0 0.0
    %1050 = vmatprep.subr.mxu0 0.0
    %1051 = vmatpush1.msra.mxu0 0.0
    %1052 = vmatprep.subr.mxu0 0.0
    %1053 = vmatpush1.msra.mxu0 0.0
    %1054 = vmatprep.subr.mxu0 0.0
    %1055 = vmatpush1.msra.mxu0 %v1019
    %1056 = vmatprep.subr.mxu0 0.0
    %1057 = vmatpush2.msra.mxu0 0.0
    %1058 = vmatprep.subr.mxu0 0.0
    %1059 = vmatpush2.msra.mxu0 0.0
    %1060 = vmatprep.subr.mxu0 0.0
    %1061 = vmatpush2.msra.mxu0 0.0
    %1062 = vmatprep.subr.mxu0 0.0
    %1063 = vmatpush2.msra.mxu0 0.0
    %1064 = vmatprep.subr.mxu0 0.0
    %1065 = vmatpush2.msra.mxu0 0.0
    %1066 = vmatprep.subr.mxu0 0.0
    %1067 = vmatpush2.msra.mxu0 0.0
    %1068 = vmatprep.subr.mxu0 0.0
    %1069 = vmatpush2.msra.mxu0 0.0
    %1070 = vmatprep.subr.mxu0 0.0
    %1071 = vmatpush2.msra.mxu0 0.0
    %1072 = vmatprep.subr.mxu0 0.0
    %1073 = vmatpush2.msra.mxu0 0.0
    %1074 = vmatprep.subr.mxu0 0.0
    %1075 = vmatpush2.msra.mxu0 0.0
    %1076 = vmatprep.subr.mxu0 0.0
    %1077 = vmatpush2.msra.mxu0 0.0
    %1078 = vmatprep.subr.mxu0 0.0
    %1079 = vmatpush2.msra.mxu0 0.0
    %1080 = vmatprep.subr.mxu0 0.0
    %1081 = vmatpush2.msra.mxu0 0.0
    %1082 = vmatprep.subr.mxu0 0.0
    %1083 = vmatpush2.msra.mxu0 0.0
    %1084 = vmatprep.subr.mxu0 0.0
    %1085 = vmatpush2.msra.mxu0 0.0
    %1086 = vmatprep.subr.mxu0 0.0
    %1087 = vmatpush2.msra.mxu0 0.0
    %1088 = vmatprep.mubr.f32.mxu0 0.0
    %1089 = vmatmul.mubr.f32.gmra.mxu0 %v1022
    %v1090 = vpop.f32.mrf.mxu0
    %v1091 = vadd.f32 0.0, %v1090
    %v1092 = vpop.f32.mrf.mxu0
    %1093 = vdwg.mxu0
    %1094 = vrot.lane.b32.xlu0 %v219, 56
    %v1095 = vpop.permute.xlu0 %1094
    %v1098 = vsel %vm232, %v931, 0
    %1100 = vmatprep.subr.mxu0 0.0
    %1101 = vmatpush1.msra.mxu0 0.0
    %1102 = vmatprep.subr.mxu0 0.0
    %1103 = vmatpush1.msra.mxu0 0.0
    %1104 = vmatprep.subr.mxu0 0.0
    %1105 = vmatpush1.msra.mxu0 0.0
    %1106 = vmatprep.subr.mxu0 0.0
    %1107 = vmatpush1.msra.mxu0 0.0
    %1108 = vmatprep.subr.mxu0 0.0
    %1109 = vmatpush1.msra.mxu0 0.0
    %1110 = vmatprep.subr.mxu0 0.0
    %1111 = vmatpush1.msra.mxu0 0.0
    %1112 = vmatprep.subr.mxu0 0.0
    %1113 = vmatpush1.msra.mxu0 0.0
    %1114 = vmatprep.subr.mxu0 0.0
    %1115 = vmatpush1.msra.mxu0 0.0
    %1116 = vmatprep.subr.mxu0 0.0
    %1117 = vmatpush1.msra.mxu0 0.0
    %1118 = vmatprep.subr.mxu0 0.0
    %1119 = vmatpush1.msra.mxu0 0.0
    %1120 = vmatprep.subr.mxu0 0.0
    %1121 = vmatpush1.msra.mxu0 0.0
    %1122 = vmatprep.subr.mxu0 0.0
    %1123 = vmatpush1.msra.mxu0 0.0
    %1124 = vmatprep.subr.mxu0 0.0
    %1125 = vmatpush1.msra.mxu0 0.0
    %1126 = vmatprep.subr.mxu0 0.0
    %1127 = vmatpush1.msra.mxu0 0.0
    %1128 = vmatprep.subr.mxu0 0.0
    %1129 = vmatpush1.msra.mxu0 0.0
    %1130 = vmatprep.subr.mxu0 0.0
    %1131 = vmatpush1.msra.mxu0 %v1095
    %1132 = vmatprep.subr.mxu0 0.0
    %1133 = vmatpush2.msra.mxu0 0.0
    %1134 = vmatprep.subr.mxu0 0.0
    %1135 = vmatpush2.msra.mxu0 0.0
    %1136 = vmatprep.subr.mxu0 0.0
    %1137 = vmatpush2.msra.mxu0 0.0
    %1138 = vmatprep.subr.mxu0 0.0
    %1139 = vmatpush2.msra.mxu0 0.0
    %1140 = vmatprep.subr.mxu0 0.0
    %1141 = vmatpush2.msra.mxu0 0.0
    %1142 = vmatprep.subr.mxu0 0.0
    %1143 = vmatpush2.msra.mxu0 0.0
    %1144 = vmatprep.subr.mxu0 0.0
    %1145 = vmatpush2.msra.mxu0 0.0
    %1146 = vmatprep.subr.mxu0 0.0
    %1147 = vmatpush2.msra.mxu0 0.0
    %1148 = vmatprep.subr.mxu0 0.0
    %1149 = vmatpush2.msra.mxu0 0.0
    %1150 = vmatprep.subr.mxu0 0.0
    %1151 = vmatpush2.msra.mxu0 0.0
    %1152 = vmatprep.subr.mxu0 0.0
    %1153 = vmatpush2.msra.mxu0 0.0
    %1154 = vmatprep.subr.mxu0 0.0
    %1155 = vmatpush2.msra.mxu0 0.0
    %1156 = vmatprep.subr.mxu0 0.0
    %1157 = vmatpush2.msra.mxu0 0.0
    %1158 = vmatprep.subr.mxu0 0.0
    %1159 = vmatpush2.msra.mxu0 0.0
    %1160 = vmatprep.subr.mxu0 0.0
    %1161 = vmatpush2.msra.mxu0 0.0
    %1162 = vmatprep.subr.mxu0 0.0
    %1163 = vmatpush2.msra.mxu0 0.0
    %1164 = vmatprep.mubr.f32.mxu0 0.0
    %1165 = vmatmul.mubr.f32.gmra.mxu0 %v1098
    %v1166 = vpop.f32.mrf.mxu0
    %v1167 = vadd.f32 0.0, %v1166
    %v1168 = vpop.f32.mrf.mxu0
    %1169 = vdwg.mxu0
    %1170 = vrot.lane.b32.xlu0 %v224, 56
    %v1171 = vpop.permute.xlu0 %1170
    %v1174 = vsel %vm232, %v933, 0
    %1176 = vmatprep.subr.mxu0 0.0
    %1177 = vmatpush1.msra.mxu0 0.0
    %1178 = vmatprep.subr.mxu0 0.0
    %1179 = vmatpush1.msra.mxu0 0.0
    %1180 = vmatprep.subr.mxu0 0.0
    %1181 = vmatpush1.msra.mxu0 0.0
    %1182 = vmatprep.subr.mxu0 0.0
    %1183 = vmatpush1.msra.mxu0 0.0
    %1184 = vmatprep.subr.mxu0 0.0
    %1185 = vmatpush1.msra.mxu0 0.0
    %1186 = vmatprep.subr.mxu0 0.0
    %1187 = vmatpush1.msra.mxu0 0.0
    %1188 = vmatprep.subr.mxu0 0.0
    %1189 = vmatpush1.msra.mxu0 0.0
    %1190 = vmatprep.subr.mxu0 0.0
    %1191 = vmatpush1.msra.mxu0 0.0
    %1192 = vmatprep.subr.mxu0 0.0
    %1193 = vmatpush1.msra.mxu0 0.0
    %1194 = vmatprep.subr.mxu0 0.0
    %1195 = vmatpush1.msra.mxu0 0.0
    %1196 = vmatprep.subr.mxu0 0.0
    %1197 = vmatpush1.msra.mxu0 0.0
    %1198 = vmatprep.subr.mxu0 0.0
    %1199 = vmatpush1.msra.mxu0 0.0
    %1200 = vmatprep.subr.mxu0 0.0
    %1201 = vmatpush1.msra.mxu0 0.0
    %1202 = vmatprep.subr.mxu0 0.0
    %1203 = vmatpush1.msra.mxu0 0.0
    %1204 = vmatprep.subr.mxu0 0.0
    %1205 = vmatpush1.msra.mxu0 0.0
    %1206 = vmatprep.subr.mxu0 0.0
    %1207 = vmatpush1.msra.mxu0 %v1171
    %1208 = vmatprep.subr.mxu0 0.0
    %1209 = vmatpush2.msra.mxu0 0.0
    %1210 = vmatprep.subr.mxu0 0.0
    %1211 = vmatpush2.msra.mxu0 0.0
    %1212 = vmatprep.subr.mxu0 0.0
    %1213 = vmatpush2.msra.mxu0 0.0
    %1214 = vmatprep.subr.mxu0 0.0
    %1215 = vmatpush2.msra.mxu0 0.0
    %1216 = vmatprep.subr.mxu0 0.0
    %1217 = vmatpush2.msra.mxu0 0.0
    %1218 = vmatprep.subr.mxu0 0.0
    %1219 = vmatpush2.msra.mxu0 0.0
    %1220 = vmatprep.subr.mxu0 0.0
    %1221 = vmatpush2.msra.mxu0 0.0
    %1222 = vmatprep.subr.mxu0 0.0
    %1223 = vmatpush2.msra.mxu0 0.0
    %1224 = vmatprep.subr.mxu0 0.0
    %1225 = vmatpush2.msra.mxu0 0.0
    %1226 = vmatprep.subr.mxu0 0.0
    %1227 = vmatpush2.msra.mxu0 0.0
    %1228 = vmatprep.subr.mxu0 0.0
    %1229 = vmatpush2.msra.mxu0 0.0
    %1230 = vmatprep.subr.mxu0 0.0
    %1231 = vmatpush2.msra.mxu0 0.0
    %1232 = vmatprep.subr.mxu0 0.0
    %1233 = vmatpush2.msra.mxu0 0.0
    %1234 = vmatprep.subr.mxu0 0.0
    %1235 = vmatpush2.msra.mxu0 0.0
    %1236 = vmatprep.subr.mxu0 0.0
    %1237 = vmatpush2.msra.mxu0 0.0
    %1238 = vmatprep.subr.mxu0 0.0
    %1239 = vmatpush2.msra.mxu0 0.0
    %1240 = vmatprep.mubr.f32.mxu0 0.0
    %1241 = vmatmul.mubr.f32.gmra.mxu0 %v1174
    %v1242 = vpop.f32.mrf.mxu0
    %v1243 = vadd.f32 0.0, %v1242
    %v1244 = vpop.f32.mrf.mxu0
    %1245 = vdwg.mxu0
    %1246 = vrot.lane.b32.xlu0 %v219, 48
    %v1247 = vpop.permute.xlu0 %1246
    %v1250 = vsel %vm232, %v935, 0
    %1252 = vmatprep.subr.mxu0 0.0
    %1253 = vmatpush1.msra.mxu0 0.0
    %1254 = vmatprep.subr.mxu0 0.0
    %1255 = vmatpush1.msra.mxu0 0.0
    %1256 = vmatprep.subr.mxu0 0.0
    %1257 = vmatpush1.msra.mxu0 0.0
    %1258 = vmatprep.subr.mxu0 0.0
    %1259 = vmatpush1.msra.mxu0 0.0
    %1260 = vmatprep.subr.mxu0 0.0
    %1261 = vmatpush1.msra.mxu0 0.0
    %1262 = vmatprep.subr.mxu0 0.0
    %1263 = vmatpush1.msra.mxu0 0.0
    %1264 = vmatprep.subr.mxu0 0.0
    %1265 = vmatpush1.msra.mxu0 0.0
    %1266 = vmatprep.subr.mxu0 0.0
    %1267 = vmatpush1.msra.mxu0 0.0
    %1268 = vmatprep.subr.mxu0 0.0
    %1269 = vmatpush1.msra.mxu0 0.0
    %1270 = vmatprep.subr.mxu0 0.0
    %1271 = vmatpush1.msra.mxu0 0.0
    %1272 = vmatprep.subr.mxu0 0.0
    %1273 = vmatpush1.msra.mxu0 0.0
    %1274 = vmatprep.subr.mxu0 0.0
    %1275 = vmatpush1.msra.mxu0 0.0
    %1276 = vmatprep.subr.mxu0 0.0
    %1277 = vmatpush1.msra.mxu0 0.0
    %1278 = vmatprep.subr.mxu0 0.0
    %1279 = vmatpush1.msra.mxu0 0.0
    %1280 = vmatprep.subr.mxu0 0.0
    %1281 = vmatpush1.msra.mxu0 0.0
    %1282 = vmatprep.subr.mxu0 0.0
    %1283 = vmatpush1.msra.mxu0 %v1247
    %1284 = vmatprep.subr.mxu0 0.0
    %1285 = vmatpush2.msra.mxu0 0.0
    %1286 = vmatprep.subr.mxu0 0.0
    %1287 = vmatpush2.msra.mxu0 0.0
    %1288 = vmatprep.subr.mxu0 0.0
    %1289 = vmatpush2.msra.mxu0 0.0
    %1290 = vmatprep.subr.mxu0 0.0
    %1291 = vmatpush2.msra.mxu0 0.0
    %1292 = vmatprep.subr.mxu0 0.0
    %1293 = vmatpush2.msra.mxu0 0.0
    %1294 = vmatprep.subr.mxu0 0.0
    %1295 = vmatpush2.msra.mxu0 0.0
    %1296 = vmatprep.subr.mxu0 0.0
    %1297 = vmatpush2.msra.mxu0 0.0
    %1298 = vmatprep.subr.mxu0 0.0
    %1299 = vmatpush2.msra.mxu0 0.0
    %1300 = vmatprep.subr.mxu0 0.0
    %1301 = vmatpush2.msra.mxu0 0.0
    %1302 = vmatprep.subr.mxu0 0.0
    %1303 = vmatpush2.msra.mxu0 0.0
    %1304 = vmatprep.subr.mxu0 0.0
    %1305 = vmatpush2.msra.mxu0 0.0
    %1306 = vmatprep.subr.mxu0 0.0
    %1307 = vmatpush2.msra.mxu0 0.0
    %1308 = vmatprep.subr.mxu0 0.0
    %1309 = vmatpush2.msra.mxu0 0.0
    %1310 = vmatprep.subr.mxu0 0.0
    %1311 = vmatpush2.msra.mxu0 0.0
    %1312 = vmatprep.subr.mxu0 0.0
    %1313 = vmatpush2.msra.mxu0 0.0
    %1314 = vmatprep.subr.mxu0 0.0
    %1315 = vmatpush2.msra.mxu0 0.0
    %1316 = vmatprep.mubr.f32.mxu0 0.0
    %1317 = vmatmul.mubr.f32.gmra.mxu0 %v1250
    %v1318 = vpop.f32.mrf.mxu0
    %v1319 = vadd.f32 0.0, %v1318
    %v1320 = vpop.f32.mrf.mxu0
    %1321 = vdwg.mxu0
    %1322 = vrot.lane.b32.xlu0 %v224, 48
    %v1323 = vpop.permute.xlu0 %1322
    %v1326 = vsel %vm232, %v937, 0
    %1328 = vmatprep.subr.mxu0 0.0
    %1329 = vmatpush1.msra.mxu0 0.0
    %1330 = vmatprep.subr.mxu0 0.0
    %1331 = vmatpush1.msra.mxu0 0.0
    %1332 = vmatprep.subr.mxu0 0.0
    %1333 = vmatpush1.msra.mxu0 0.0
    %1334 = vmatprep.subr.mxu0 0.0
    %1335 = vmatpush1.msra.mxu0 0.0
    %1336 = vmatprep.subr.mxu0 0.0
    %1337 = vmatpush1.msra.mxu0 0.0
    %1338 = vmatprep.subr.mxu0 0.0
    %1339 = vmatpush1.msra.mxu0 0.0
    %1340 = vmatprep.subr.mxu0 0.0
    %1341 = vmatpush1.msra.mxu0 0.0
    %1342 = vmatprep.subr.mxu0 0.0
    %1343 = vmatpush1.msra.mxu0 0.0
    %1344 = vmatprep.subr.mxu0 0.0
    %1345 = vmatpush1.msra.mxu0 0.0
    %1346 = vmatprep.subr.mxu0 0.0
    %1347 = vmatpush1.msra.mxu0 0.0
    %1348 = vmatprep.subr.mxu0 0.0
    %1349 = vmatpush1.msra.mxu0 0.0
    %1350 = vmatprep.subr.mxu0 0.0
    %1351 = vmatpush1.msra.mxu0 0.0
    %1352 = vmatprep.subr.mxu0 0.0
    %1353 = vmatpush1.msra.mxu0 0.0
    %1354 = vmatprep.subr.mxu0 0.0
    %1355 = vmatpush1.msra.mxu0 0.0
    %1356 = vmatprep.subr.mxu0 0.0
    %1357 = vmatpush1.msra.mxu0 0.0
    %1358 = vmatprep.subr.mxu0 0.0
    %1359 = vmatpush1.msra.mxu0 %v1323
    %1360 = vmatprep.subr.mxu0 0.0
    %1361 = vmatpush2.msra.mxu0 0.0
    %1362 = vmatprep.subr.mxu0 0.0
    %1363 = vmatpush2.msra.mxu0 0.0
    %1364 = vmatprep.subr.mxu0 0.0
    %1365 = vmatpush2.msra.mxu0 0.0
    %1366 = vmatprep.subr.mxu0 0.0
    %1367 = vmatpush2.msra.mxu0 0.0
    %1368 = vmatprep.subr.mxu0 0.0
    %1369 = vmatpush2.msra.mxu0 0.0
    %1370 = vmatprep.subr.mxu0 0.0
    %1371 = vmatpush2.msra.mxu0 0.0
    %1372 = vmatprep.subr.mxu0 0.0
    %1373 = vmatpush2.msra.mxu0 0.0
    %1374 = vmatprep.subr.mxu0 0.0
    %1375 = vmatpush2.msra.mxu0 0.0
    %1376 = vmatprep.subr.mxu0 0.0
    %1377 = vmatpush2.msra.mxu0 0.0
    %1378 = vmatprep.subr.mxu0 0.0
    %1379 = vmatpush2.msra.mxu0 0.0
    %1380 = vmatprep.subr.mxu0 0.0
    %1381 = vmatpush2.msra.mxu0 0.0
    %1382 = vmatprep.subr.mxu0 0.0
    %1383 = vmatpush2.msra.mxu0 0.0
    %1384 = vmatprep.subr.mxu0 0.0
    %1385 = vmatpush2.msra.mxu0 0.0
    %1386 = vmatprep.subr.mxu0 0.0
    %1387 = vmatpush2.msra.mxu0 0.0
    %1388 = vmatprep.subr.mxu0 0.0
    %1389 = vmatpush2.msra.mxu0 0.0
    %1390 = vmatprep.subr.mxu0 0.0
    %1391 = vmatpush2.msra.mxu0 0.0
    %1392 = vmatprep.mubr.f32.mxu0 0.0
    %1393 = vmatmul.mubr.f32.gmra.mxu0 %v1326
    %v1394 = vpop.f32.mrf.mxu0
    %v1395 = vadd.f32 0.0, %v1394
    %v1396 = vpop.f32.mrf.mxu0
    %1397 = vdwg.mxu0
    %1398 = vrot.lane.b32.xlu0 %v219, 40
    %v1399 = vpop.permute.xlu0 %1398
    %v1402 = vsel %vm232, %v939, 0
    %1404 = vmatprep.subr.mxu0 0.0
    %1405 = vmatpush1.msra.mxu0 0.0
    %1406 = vmatprep.subr.mxu0 0.0
    %1407 = vmatpush1.msra.mxu0 0.0
    %1408 = vmatprep.subr.mxu0 0.0
    %1409 = vmatpush1.msra.mxu0 0.0
    %1410 = vmatprep.subr.mxu0 0.0
    %1411 = vmatpush1.msra.mxu0 0.0
    %1412 = vmatprep.subr.mxu0 0.0
    %1413 = vmatpush1.msra.mxu0 0.0
    %1414 = vmatprep.subr.mxu0 0.0
    %1415 = vmatpush1.msra.mxu0 0.0
    %1416 = vmatprep.subr.mxu0 0.0
    %1417 = vmatpush1.msra.mxu0 0.0
    %1418 = vmatprep.subr.mxu0 0.0
    %1419 = vmatpush1.msra.mxu0 0.0
    %1420 = vmatprep.subr.mxu0 0.0
    %1421 = vmatpush1.msra.mxu0 0.0
    %1422 = vmatprep.subr.mxu0 0.0
    %1423 = vmatpush1.msra.mxu0 0.0
    %1424 = vmatprep.subr.mxu0 0.0
    %1425 = vmatpush1.msra.mxu0 0.0
    %1426 = vmatprep.subr.mxu0 0.0
    %1427 = vmatpush1.msra.mxu0 0.0
    %1428 = vmatprep.subr.mxu0 0.0
    %1429 = vmatpush1.msra.mxu0 0.0
    %1430 = vmatprep.subr.mxu0 0.0
    %1431 = vmatpush1.msra.mxu0 0.0
    %1432 = vmatprep.subr.mxu0 0.0
    %1433 = vmatpush1.msra.mxu0 0.0
    %1434 = vmatprep.subr.mxu0 0.0
    %1435 = vmatpush1.msra.mxu0 %v1399
    %1436 = vmatprep.subr.mxu0 0.0
    %1437 = vmatpush2.msra.mxu0 0.0
    %1438 = vmatprep.subr.mxu0 0.0
    %1439 = vmatpush2.msra.mxu0 0.0
    %1440 = vmatprep.subr.mxu0 0.0
    %1441 = vmatpush2.msra.mxu0 0.0
    %1442 = vmatprep.subr.mxu0 0.0
    %1443 = vmatpush2.msra.mxu0 0.0
    %1444 = vmatprep.subr.mxu0 0.0
    %1445 = vmatpush2.msra.mxu0 0.0
    %1446 = vmatprep.subr.mxu0 0.0
    %1447 = vmatpush2.msra.mxu0 0.0
    %1448 = vmatprep.subr.mxu0 0.0
    %1449 = vmatpush2.msra.mxu0 0.0
    %1450 = vmatprep.subr.mxu0 0.0
    %1451 = vmatpush2.msra.mxu0 0.0
    %1452 = vmatprep.subr.mxu0 0.0
    %1453 = vmatpush2.msra.mxu0 0.0
    %1454 = vmatprep.subr.mxu0 0.0
    %1455 = vmatpush2.msra.mxu0 0.0
    %1456 = vmatprep.subr.mxu0 0.0
    %1457 = vmatpush2.msra.mxu0 0.0
    %1458 = vmatprep.subr.mxu0 0.0
    %1459 = vmatpush2.msra.mxu0 0.0
    %1460 = vmatprep.subr.mxu0 0.0
    %1461 = vmatpush2.msra.mxu0 0.0
    %1462 = vmatprep.subr.mxu0 0.0
    %1463 = vmatpush2.msra.mxu0 0.0
    %1464 = vmatprep.subr.mxu0 0.0
    %1465 = vmatpush2.msra.mxu0 0.0
    %1466 = vmatprep.subr.mxu0 0.0
    %1467 = vmatpush2.msra.mxu0 0.0
    %1468 = vmatprep.mubr.f32.mxu0 0.0
    %1469 = vmatmul.mubr.f32.gmra.mxu0 %v1402
    %v1470 = vpop.f32.mrf.mxu0
    %v1471 = vadd.f32 0.0, %v1470
    %v1472 = vpop.f32.mrf.mxu0
    %1473 = vdwg.mxu0
    %1474 = vrot.lane.b32.xlu0 %v224, 40
    %v1475 = vpop.permute.xlu0 %1474
    %v1478 = vsel %vm232, %v941, 0
    %1480 = vmatprep.subr.mxu0 0.0
    %1481 = vmatpush1.msra.mxu0 0.0
    %1482 = vmatprep.subr.mxu0 0.0
    %1483 = vmatpush1.msra.mxu0 0.0
    %1484 = vmatprep.subr.mxu0 0.0
    %1485 = vmatpush1.msra.mxu0 0.0
    %1486 = vmatprep.subr.mxu0 0.0
    %1487 = vmatpush1.msra.mxu0 0.0
    %1488 = vmatprep.subr.mxu0 0.0
    %1489 = vmatpush1.msra.mxu0 0.0
    %1490 = vmatprep.subr.mxu0 0.0
    %1491 = vmatpush1.msra.mxu0 0.0
    %1492 = vmatprep.subr.mxu0 0.0
    %1493 = vmatpush1.msra.mxu0 0.0
    %1494 = vmatprep.subr.mxu0 0.0
    %1495 = vmatpush1.msra.mxu0 0.0
    %1496 = vmatprep.subr.mxu0 0.0
    %1497 = vmatpush1.msra.mxu0 0.0
    %1498 = vmatprep.subr.mxu0 0.0
    %1499 = vmatpush1.msra.mxu0 0.0
    %1500 = vmatprep.subr.mxu0 0.0
    %1501 = vmatpush1.msra.mxu0 0.0
    %1502 = vmatprep.subr.mxu0 0.0
    %1503 = vmatpush1.msra.mxu0 0.0
    %1504 = vmatprep.subr.mxu0 0.0
    %1505 = vmatpush1.msra.mxu0 0.0
    %1506 = vmatprep.subr.mxu0 0.0
    %1507 = vmatpush1.msra.mxu0 0.0
    %1508 = vmatprep.subr.mxu0 0.0
    %1509 = vmatpush1.msra.mxu0 0.0
    %1510 = vmatprep.subr.mxu0 0.0
    %1511 = vmatpush1.msra.mxu0 %v1475
    %1512 = vmatprep.subr.mxu0 0.0
    %1513 = vmatpush2.msra.mxu0 0.0
    %1514 = vmatprep.subr.mxu0 0.0
    %1515 = vmatpush2.msra.mxu0 0.0
    %1516 = vmatprep.subr.mxu0 0.0
    %1517 = vmatpush2.msra.mxu0 0.0
    %1518 = vmatprep.subr.mxu0 0.0
    %1519 = vmatpush2.msra.mxu0 0.0
    %1520 = vmatprep.subr.mxu0 0.0
    %1521 = vmatpush2.msra.mxu0 0.0
    %1522 = vmatprep.subr.mxu0 0.0
    %1523 = vmatpush2.msra.mxu0 0.0
    %1524 = vmatprep.subr.mxu0 0.0
    %1525 = vmatpush2.msra.mxu0 0.0
    %1526 = vmatprep.subr.mxu0 0.0
    %1527 = vmatpush2.msra.mxu0 0.0
    %1528 = vmatprep.subr.mxu0 0.0
    %1529 = vmatpush2.msra.mxu0 0.0
    %1530 = vmatprep.subr.mxu0 0.0
    %1531 = vmatpush2.msra.mxu0 0.0
    %1532 = vmatprep.subr.mxu0 0.0
    %1533 = vmatpush2.msra.mxu0 0.0
    %1534 = vmatprep.subr.mxu0 0.0
    %1535 = vmatpush2.msra.mxu0 0.0
    %1536 = vmatprep.subr.mxu0 0.0
    %1537 = vmatpush2.msra.mxu0 0.0
    %1538 = vmatprep.subr.mxu0 0.0
    %1539 = vmatpush2.msra.mxu0 0.0
    %1540 = vmatprep.subr.mxu0 0.0
    %1541 = vmatpush2.msra.mxu0 0.0
    %1542 = vmatprep.subr.mxu0 0.0
    %1543 = vmatpush2.msra.mxu0 0.0
    %1544 = vmatprep.mubr.f32.mxu0 0.0
    %1545 = vmatmul.mubr.f32.gmra.mxu0 %v1478
    %v1546 = vpop.f32.mrf.mxu0
    %v1547 = vadd.f32 0.0, %v1546
    %v1548 = vpop.f32.mrf.mxu0
    %1549 = vdwg.mxu0
    %1552 = vrot.lane.b32.xlu0 %v1167, 8
    %v1553 = vpop.permute.xlu0 %1552
    %1554 = vrot.lane.b32.xlu0 %v1243, 8
    %v1555 = vpop.permute.xlu0 %1554
    %1560 = vrot.lane.b32.xlu0 %v1319, 16
    %v1561 = vpop.permute.xlu0 %1560
    %1562 = vrot.lane.b32.xlu0 %v1395, 16
    %v1563 = vpop.permute.xlu0 %1562
    %1568 = vrot.lane.b32.xlu0 %v1471, 24
    %v1569 = vpop.permute.xlu0 %1568
    %1570 = vrot.lane.b32.xlu0 %v1547, 24
    %v1571 = vpop.permute.xlu0 %1570
    %v1574 = vsel %vm232, %v1015, %v1553
    %v1575 = vsel %vm232, %v1091, %v1555
    %v1576 = vsel %vm52, %v1574, %v1561
    %v1577 = vsel %vm52, %v1575, %v1563
    %vm1578 = vcmask 195584
    %v1579 = vsel %vm1578, %v1576, %v1569
    %v1580 = vsel %vm1578, %v1577, %v1571
    %v1581 = vld [vmem:[%s4] sm:$0xff]
    %v1582 = vld [vmem:[%s4 + $0x8] sm:$0xff]
    %v1583 = vld [vmem:[%s4 + $0x10] sm:$0xff]
    %v1584 = vld [vmem:[%s4 + $0x18] sm:$0xff]
    %v1585 = vlaneseq
    %v1586 = vshrl.u32 %v1585, 7
    %v1587 = vsub.s32 0, %v1586
    %v1588 = vrot.slane %v35, %v1587
    %v1590 = vsel %vm145, %v1579, 0
    %v1593 = vsel %vm145, %v1580, 0
    %1595 = vmatprep.subr.mxu0 0.0
    %1596 = vmatpush1.msra.mxu0 0.0
    %1597 = vmatprep.subr.mxu0 0.0
    %1598 = vmatpush1.msra.mxu0 0.0
    %1599 = vmatprep.subr.mxu0 0.0
    %1600 = vmatpush1.msra.mxu0 0.0
    %1601 = vmatprep.subr.mxu0 0.0
    %1602 = vmatpush1.msra.mxu0 0.0
    %1603 = vmatprep.subr.mxu0 0.0
    %1604 = vmatpush1.msra.mxu0 0.0
    %1605 = vmatprep.subr.mxu0 0.0
    %1606 = vmatpush1.msra.mxu0 0.0
    %1607 = vmatprep.subr.mxu0 0.0
    %1608 = vmatpush1.msra.mxu0 0.0
    %1609 = vmatprep.subr.mxu0 0.0
    %1610 = vmatpush1.msra.mxu0 0.0
    %1611 = vmatprep.subr.mxu0 0.0
    %1612 = vmatpush1.msra.mxu0 0.0
    %1613 = vmatprep.subr.mxu0 0.0
    %1614 = vmatpush1.msra.mxu0 0.0
    %1615 = vmatprep.subr.mxu0 0.0
    %1616 = vmatpush1.msra.mxu0 0.0
    %1617 = vmatprep.subr.mxu0 0.0
    %1618 = vmatpush1.msra.mxu0 0.0
    %1619 = vmatprep.subr.mxu0 0.0
    %1620 = vmatpush1.msra.mxu0 %v1584
    %1621 = vmatprep.subr.mxu0 0.0
    %1622 = vmatpush1.msra.mxu0 %v1583
    %1623 = vmatprep.subr.mxu0 0.0
    %1624 = vmatpush1.msra.mxu0 %v1582
    %1625 = vmatprep.subr.mxu0 0.0
    %1626 = vmatpush1.msra.mxu0 %v1581
    %1627 = vmatprep.subr.mxu0 0.0
    %1628 = vmatpush2.msra.mxu0 0.0
    %1629 = vmatprep.subr.mxu0 0.0
    %1630 = vmatpush2.msra.mxu0 0.0
    %1631 = vmatprep.subr.mxu0 0.0
    %1632 = vmatpush2.msra.mxu0 0.0
    %1633 = vmatprep.subr.mxu0 0.0
    %1634 = vmatpush2.msra.mxu0 0.0
    %1635 = vmatprep.subr.mxu0 0.0
    %1636 = vmatpush2.msra.mxu0 0.0
    %1637 = vmatprep.subr.mxu0 0.0
    %1638 = vmatpush2.msra.mxu0 0.0
    %1639 = vmatprep.subr.mxu0 0.0
    %1640 = vmatpush2.msra.mxu0 0.0
    %1641 = vmatprep.subr.mxu0 0.0
    %1642 = vmatpush2.msra.mxu0 0.0
    %1643 = vmatprep.subr.mxu0 0.0
    %1644 = vmatpush2.msra.mxu0 0.0
    %1645 = vmatprep.subr.mxu0 0.0
    %1646 = vmatpush2.msra.mxu0 0.0
    %1647 = vmatprep.subr.mxu0 0.0
    %1648 = vmatpush2.msra.mxu0 0.0
    %1649 = vmatprep.subr.mxu0 0.0
    %1650 = vmatpush2.msra.mxu0 0.0
    %1651 = vmatprep.subr.mxu0 0.0
    %1652 = vmatpush2.msra.mxu0 0.0
    %1653 = vmatprep.subr.mxu0 0.0
    %1654 = vmatpush2.msra.mxu0 0.0
    %1655 = vmatprep.subr.mxu0 0.0
    %1656 = vmatpush2.msra.mxu0 0.0
    %1657 = vmatprep.subr.mxu0 0.0
    %1658 = vmatpush2.msra.mxu0 0.0
    %1659 = vmatprep.mubr.f32.mxu0 0.0
    %1660 = vmatmul.mubr.f32.gmra.mxu0 %v1590
    %v1661 = vpop.f32.mrf.mxu0
    %v1662 = vadd.f32 %v1588, %v1661
    %v1663 = vpop.f32.mrf.mxu0
    %1664 = vmatprep.mubr.f32.mxu0 0.0
    %1665 = vmatmul.mubr.f32.gmra.mxu0 %v1593
    %v1666 = vpop.f32.mrf.mxu0
    %v1667 = vadd.f32 %v1588, %v1666
    %v1668 = vpop.f32.mrf.mxu0
    %1669 = vdwg.mxu0
    %v1670 = vadd.f32 %v126, %v1662
    %v1671 = vadd.f32 %v131, %v1667
    %v1672 = vsel %vm145, %v1670, 0.0
    %1673 = vadd.xlane.f32.xlu0 %v1672
    %v1674 = vpop.xlane.xlu0 %1673
    %v1675 = vsel %vm145, %v1671, 0.0
    %1676 = vadd.xlane.f32.xlu0 %v1675
    %v1677 = vpop.xlane.xlu0 %1676
    %v1678 = vrcp.pop 32.0
    %v1679 = vmul.f32 %v1674, %v1678
    %v1680 = vmul.f32 %v1677, %v1678
    %v1681 = vsub.f32 %v1670, %v1679
    %v1682 = vsub.f32 %v1671, %v1680
    %v1683 = vmul.f32 %v1681, %v1681
    %v1684 = vmul.f32 %v1682, %v1682
    %v1685 = vsel %vm145, %v1683, 0.0
    %1686 = vadd.xlane.f32.xlu0 %v1685
    %v1687 = vpop.xlane.xlu0 %1686
    %v1688 = vsel %vm145, %v1684, 0.0
    %1689 = vadd.xlane.f32.xlu0 %v1688
    %v1690 = vpop.xlane.xlu0 %1689
    %v1691 = vmul.f32 %v1687, %v1678
    %v1692 = vmul.f32 %v1690, %v1678
    %v1693 = vadd.f32 %v1691, 1e-05
    %v1694 = vadd.f32 %v1692, 1e-05
    %v1695 = vrsqrt.pop %v1693
    %v1696 = vrsqrt.pop %v1694
    %v1697 = vmul.f32 %v1681, %v1695
    %v1698 = vmul.f32 %v1682, %v1696
    %v1699 = vlaneseq
    %v1700 = vshrl.u32 %v1699, 7
    %v1701 = vsub.s32 1, %v1700
    %v1702 = vrot.slane %v35, %v1701
    %v1703 = vmul.f32 %v1697, %v1702
    %v1704 = vmul.f32 %v1698, %v1702
    %v1705 = vlaneseq
    %v1706 = vshrl.u32 %v1705, 7
    %v1707 = vsub.s32 2, %v1706
    %v1708 = vrot.slane %v35, %v1707
    %v1709 = vadd.f32 %v1703, %v1708
    %v1710 = vadd.f32 %v1704, %v1708
    %v1711 = vpack.c.bf16 %v1710, %v1709
    %v1712 = vld [vmem:[%s5] sm:$0xff]
    %v1713 = vld [vmem:[%s5 + $0x8] sm:$0xff]
    %v1714 = vld [vmem:[%s5 + $0x10] sm:$0xff]
    %v1715 = vld [vmem:[%s5 + $0x18] sm:$0xff]
    %v1716 = vld [vmem:[%s5 + $0x20] sm:$0xff]
    %v1717 = vld [vmem:[%s5 + $0x28] sm:$0xff]
    %v1718 = vld [vmem:[%s5 + $0x30] sm:$0xff]
    %v1719 = vld [vmem:[%s5 + $0x38] sm:$0xff]
    %v1720 = vld [vmem:[%s5 + $0x40] sm:$0xff]
    %v1721 = vld [vmem:[%s5 + $0x48] sm:$0xff]
    %v1722 = vld [vmem:[%s5 + $0x50] sm:$0xff]
    %v1723 = vld [vmem:[%s5 + $0x58] sm:$0xff]
    %v1724 = vld [vmem:[%s5 + $0x60] sm:$0xff]
    %v1725 = vld [vmem:[%s5 + $0x68] sm:$0xff]
    %v1726 = vld [vmem:[%s5 + $0x70] sm:$0xff]
    %v1727 = vld [vmem:[%s5 + $0x78] sm:$0xff]
    %v1728 = vld [vmem:[%s5 + $0x80] sm:$0xff]
    %v1729 = vld [vmem:[%s5 + $0x88] sm:$0xff]
    %v1730 = vld [vmem:[%s5 + $0x90] sm:$0xff]
    %v1731 = vld [vmem:[%s5 + $0x98] sm:$0xff]
    %v1732 = vld [vmem:[%s5 + $0xa0] sm:$0xff]
    %v1733 = vld [vmem:[%s5 + $0xa8] sm:$0xff]
    %v1734 = vld [vmem:[%s5 + $0xb0] sm:$0xff]
    %v1735 = vld [vmem:[%s5 + $0xb8] sm:$0xff]
    %v1736 = vld [vmem:[%s5 + $0xc0] sm:$0xff]
    %v1737 = vld [vmem:[%s5 + $0xc8] sm:$0xff]
    %v1738 = vld [vmem:[%s5 + $0xd0] sm:$0xff]
    %v1739 = vld [vmem:[%s5 + $0xd8] sm:$0xff]
    %v1740 = vld [vmem:[%s5 + $0xe0] sm:$0xff]
    %v1741 = vld [vmem:[%s5 + $0xe8] sm:$0xff]
    %v1742 = vld [vmem:[%s5 + $0xf0] sm:$0xff]
    %v1743 = vld [vmem:[%s5 + $0xf8] sm:$0xff]
    %v1744 = vld [vmem:[%s6] sm:$0xff]
    %v1745 = vld [vmem:[%s6 + $0x8] sm:$0xff]
    %v1748 = vlaneseq
    %v1749 = vshrl.u32 %v1748, 7
    %v1750 = vsub.s32 0, %v1749
    %v1751 = vrot.slane %v1744, %v1750
    %v1752 = vlaneseq
    %v1753 = vshrl.u32 %v1752, 7
    %v1754 = vsub.s32 1, %v1753
    %v1755 = vrot.slane %v1744, %v1754
    %v1756 = vlaneseq
    %v1757 = vshrl.u32 %v1756, 7
    %v1758 = vsub.s32 2, %v1757
    %v1759 = vrot.slane %v1744, %v1758
    %v1760 = vlaneseq
    %v1761 = vshrl.u32 %v1760, 7
    %v1762 = vsub.s32 3, %v1761
    %v1763 = vrot.slane %v1744, %v1762
    %v1764 = vlaneseq
    %v1765 = vshrl.u32 %v1764, 7
    %v1766 = vsub.s32 4, %v1765
    %v1767 = vrot.slane %v1744, %v1766
    %v1768 = vlaneseq
    %v1769 = vshrl.u32 %v1768, 7
    %v1770 = vsub.s32 5, %v1769
    %v1771 = vrot.slane %v1744, %v1770
    %v1772 = vlaneseq
    %v1773 = vshrl.u32 %v1772, 7
    %v1774 = vsub.s32 6, %v1773
    %v1775 = vrot.slane %v1744, %v1774
    %v1776 = vlaneseq
    %v1777 = vshrl.u32 %v1776, 7
    %v1778 = vsub.s32 7, %v1777
    %v1779 = vrot.slane %v1744, %v1778
    %v1780 = vlaneseq
    %v1781 = vshrl.u32 %v1780, 7
    %v1782 = vsub.s32 0, %v1781
    %v1783 = vrot.slane %v1745, %v1782
    %v1784 = vlaneseq
    %v1785 = vshrl.u32 %v1784, 7
    %v1786 = vsub.s32 1, %v1785
    %v1787 = vrot.slane %v1745, %v1786
    %v1788 = vlaneseq
    %v1789 = vshrl.u32 %v1788, 7
    %v1790 = vsub.s32 2, %v1789
    %v1791 = vrot.slane %v1745, %v1790
    %v1792 = vlaneseq
    %v1793 = vshrl.u32 %v1792, 7
    %v1794 = vsub.s32 3, %v1793
    %v1795 = vrot.slane %v1745, %v1794
    %v1796 = vlaneseq
    %v1797 = vshrl.u32 %v1796, 7
    %v1798 = vsub.s32 4, %v1797
    %v1799 = vrot.slane %v1745, %v1798
    %v1800 = vlaneseq
    %v1801 = vshrl.u32 %v1800, 7
    %v1802 = vsub.s32 5, %v1801
    %v1803 = vrot.slane %v1745, %v1802
    %v1804 = vlaneseq
    %v1805 = vshrl.u32 %v1804, 7
    %v1806 = vsub.s32 6, %v1805
    %v1807 = vrot.slane %v1745, %v1806
    %v1808 = vlaneseq
    %v1809 = vshrl.u32 %v1808, 7
    %v1810 = vsub.s32 7, %v1809
    %v1811 = vrot.slane %v1745, %v1810
    %v1860 = vunpack.c.l.b16 %v1712
    %v1861 = vunpack.c.h.b16 %v1712
    %v1862 = vunpack.c.l.b16 %v1713
    %v1863 = vunpack.c.h.b16 %v1713
    %v1864 = vunpack.c.l.b16 %v1714
    %v1865 = vunpack.c.h.b16 %v1714
    %v1866 = vunpack.c.l.b16 %v1715
    %v1867 = vunpack.c.h.b16 %v1715
    %v1868 = vunpack.c.l.b16 %v1716
    %v1869 = vunpack.c.h.b16 %v1716
    %v1870 = vunpack.c.l.b16 %v1717
    %v1871 = vunpack.c.h.b16 %v1717
    %v1872 = vunpack.c.l.b16 %v1718
    %v1873 = vunpack.c.h.b16 %v1718
    %v1874 = vunpack.c.l.b16 %v1719
    %v1875 = vunpack.c.h.b16 %v1719
    %v1876 = vunpack.c.l.b16 %v1720
    %v1877 = vunpack.c.h.b16 %v1720
    %v1878 = vunpack.c.l.b16 %v1721
    %v1879 = vunpack.c.h.b16 %v1721
    %v1880 = vunpack.c.l.b16 %v1722
    %v1881 = vunpack.c.h.b16 %v1722
    %v1882 = vunpack.c.l.b16 %v1723
    %v1883 = vunpack.c.h.b16 %v1723
    %v1884 = vunpack.c.l.b16 %v1724
    %v1885 = vunpack.c.h.b16 %v1724
    %v1886 = vunpack.c.l.b16 %v1725
    %v1887 = vunpack.c.h.b16 %v1725
    %v1888 = vunpack.c.l.b16 %v1726
    %v1889 = vunpack.c.h.b16 %v1726
    %v1890 = vunpack.c.l.b16 %v1727
    %v1891 = vunpack.c.h.b16 %v1727
    %v1892 = vunpack.c.l.b16 %v1728
    %v1893 = vunpack.c.h.b16 %v1728
    %v1894 = vunpack.c.l.b16 %v1729
    %v1895 = vunpack.c.h.b16 %v1729
    %v1896 = vunpack.c.l.b16 %v1730
    %v1897 = vunpack.c.h.b16 %v1730
    %v1898 = vunpack.c.l.b16 %v1731
    %v1899 = vunpack.c.h.b16 %v1731
    %v1900 = vunpack.c.l.b16 %v1732
    %v1901 = vunpack.c.h.b16 %v1732
    %v1902 = vunpack.c.l.b16 %v1733
    %v1903 = vunpack.c.h.b16 %v1733
    %v1904 = vunpack.c.l.b16 %v1734
    %v1905 = vunpack.c.h.b16 %v1734
    %v1906 = vunpack.c.l.b16 %v1735
    %v1907 = vunpack.c.h.b16 %v1735
    %v1908 = vunpack.c.l.b16 %v1736
    %v1909 = vunpack.c.h.b16 %v1736
    %v1910 = vunpack.c.l.b16 %v1737
    %v1911 = vunpack.c.h.b16 %v1737
    %v1912 = vunpack.c.l.b16 %v1738
    %v1913 = vunpack.c.h.b16 %v1738
    %v1914 = vunpack.c.l.b16 %v1739
    %v1915 = vunpack.c.h.b16 %v1739
    %v1916 = vunpack.c.l.b16 %v1740
    %v1917 = vunpack.c.h.b16 %v1740
    %v1918 = vunpack.c.l.b16 %v1741
    %v1919 = vunpack.c.h.b16 %v1741
    %v1920 = vunpack.c.l.b16 %v1742
    %v1921 = vunpack.c.h.b16 %v1742
    %v1922 = vunpack.c.l.b16 %v1743
    %v1923 = vunpack.c.h.b16 %v1743
    %v1924 = vpack.c.b16 %v1876, %v1860
    %v1925 = vpack.c.b16 %v1877, %v1861
    %v1926 = vpack.c.b16 %v1878, %v1862
    %v1927 = vpack.c.b16 %v1879, %v1863
    %v1928 = vpack.c.b16 %v1880, %v1864
    %v1929 = vpack.c.b16 %v1881, %v1865
    %v1930 = vpack.c.b16 %v1882, %v1866
    %v1931 = vpack.c.b16 %v1883, %v1867
    %v1932 = vpack.c.b16 %v1884, %v1868
    %v1933 = vpack.c.b16 %v1885, %v1869
    %v1934 = vpack.c.b16 %v1886, %v1870
    %v1935 = vpack.c.b16 %v1887, %v1871
    %v1936 = vpack.c.b16 %v1888, %v1872
    %v1937 = vpack.c.b16 %v1889, %v1873
    %v1938 = vpack.c.b16 %v1890, %v1874
    %v1939 = vpack.c.b16 %v1891, %v1875
    %v1940 = vpack.c.b16 %v1908, %v1892
    %v1941 = vpack.c.b16 %v1909, %v1893
    %v1942 = vpack.c.b16 %v1910, %v1894
    %v1943 = vpack.c.b16 %v1911, %v1895
    %v1944 = vpack.c.b16 %v1912, %v1896
    %v1945 = vpack.c.b16 %v1913, %v1897
    %v1946 = vpack.c.b16 %v1914, %v1898
    %v1947 = vpack.c.b16 %v1915, %v1899
    %v1948 = vpack.c.b16 %v1916, %v1900
    %v1949 = vpack.c.b16 %v1917, %v1901
    %v1950 = vpack.c.b16 %v1918, %v1902
    %v1951 = vpack.c.b16 %v1919, %v1903
    %v1952 = vpack.c.b16 %v1920, %v1904
    %v1953 = vpack.c.b16 %v1921, %v1905
    %v1954 = vpack.c.b16 %v1922, %v1906
    %v1955 = vpack.c.b16 %v1923, %v1907
    %v1989 = vsel %vm145, %v1711, 0
    %1991 = vmatprep.subr.bf16.mxu0 0
    %1992 = vmatpush1.bf16.msra.mxu0 0
    %1993 = vmatprep.subr.bf16.mxu0 0
    %1994 = vmatpush1.bf16.msra.mxu0 0
    %1995 = vmatprep.subr.bf16.mxu0 0
    %1996 = vmatpush1.bf16.msra.mxu0 0
    %1997 = vmatprep.subr.bf16.mxu0 0
    %1998 = vmatpush1.bf16.msra.mxu0 0
    %1999 = vmatprep.subr.bf16.mxu0 0
    %2000 = vmatpush1.bf16.msra.mxu0 0
    %2001 = vmatprep.subr.bf16.mxu0 0
    %2002 = vmatpush1.bf16.msra.mxu0 0
    %2003 = vmatprep.subr.bf16.mxu0 %v1941
    %2004 = vmatpush1.bf16.msra.mxu0 %v1940
    %2005 = vmatprep.subr.bf16.mxu0 %v1925
    %2006 = vmatpush1.bf16.msra.mxu0 %v1924
    %2007 = vmatprep.subr.bf16.mxu0 0
    %2008 = vmatpush2.bf16.msra.mxu0 0
    %2009 = vmatprep.subr.bf16.mxu0 0
    %2010 = vmatpush2.bf16.msra.mxu0 0
    %2011 = vmatprep.subr.bf16.mxu0 0
    %2012 = vmatpush2.bf16.msra.mxu0 0
    %2013 = vmatprep.subr.bf16.mxu0 0
    %2014 = vmatpush2.bf16.msra.mxu0 0
    %2015 = vmatprep.subr.bf16.mxu0 0
    %2016 = vmatpush2.bf16.msra.mxu0 0
    %2017 = vmatprep.subr.bf16.mxu0 0
    %2018 = vmatpush2.bf16.msra.mxu0 0
    %2019 = vmatprep.subr.bf16.mxu0 0
    %2020 = vmatpush2.bf16.msra.mxu0 0
    %2021 = vmatprep.subr.bf16.mxu0 0
    %2022 = vmatpush2.bf16.msra.mxu0 0
    %2023 = vmatprep.mubr.bf16.mxu0 0
    %2024 = vmatmul.mubr.bf16.gmra.mxu0 %v1989
    %v2025 = vpop.f32.mrf.mxu0
    %v2026 = vadd.f32 %v1751, %v2025
    %v2027 = vpop.f32.mrf.mxu0
    %v2028 = vadd.f32 %v1755, %v2027
    %v2029 = vpop.f32.mrf.mxu0
    %v2030 = vadd.f32 %v1751, %v2029
    %v2031 = vpop.f32.mrf.mxu0
    %v2032 = vadd.f32 %v1755, %v2031
    %2033 = vdwg.mxu0
    %2034 = vmatprep.subr.bf16.mxu0 0
    %2035 = vmatpush1.bf16.msra.mxu0 0
    %2036 = vmatprep.subr.bf16.mxu0 0
    %2037 = vmatpush1.bf16.msra.mxu0 0
    %2038 = vmatprep.subr.bf16.mxu0 0
    %2039 = vmatpush1.bf16.msra.mxu0 0
    %2040 = vmatprep.subr.bf16.mxu0 0
    %2041 = vmatpush1.bf16.msra.mxu0 0
    %2042 = vmatprep.subr.bf16.mxu0 0
    %2043 = vmatpush1.bf16.msra.mxu0 0
    %2044 = vmatprep.subr.bf16.mxu0 0
    %2045 = vmatpush1.bf16.msra.mxu0 0
    %2046 = vmatprep.subr.bf16.mxu0 %v1943
    %2047 = vmatpush1.bf16.msra.mxu0 %v1942
    %2048 = vmatprep.subr.bf16.mxu0 %v1927
    %2049 = vmatpush1.bf16.msra.mxu0 %v1926
    %2050 = vmatprep.subr.bf16.mxu0 0
    %2051 = vmatpush2.bf16.msra.mxu0 0
    %2052 = vmatprep.subr.bf16.mxu0 0
    %2053 = vmatpush2.bf16.msra.mxu0 0
    %2054 = vmatprep.subr.bf16.mxu0 0
    %2055 = vmatpush2.bf16.msra.mxu0 0
    %2056 = vmatprep.subr.bf16.mxu0 0
    %2057 = vmatpush2.bf16.msra.mxu0 0
    %2058 = vmatprep.subr.bf16.mxu0 0
    %2059 = vmatpush2.bf16.msra.mxu0 0
    %2060 = vmatprep.subr.bf16.mxu0 0
    %2061 = vmatpush2.bf16.msra.mxu0 0
    %2062 = vmatprep.subr.bf16.mxu0 0
    %2063 = vmatpush2.bf16.msra.mxu0 0
    %2064 = vmatprep.subr.bf16.mxu0 0
    %2065 = vmatpush2.bf16.msra.mxu0 0
    %2066 = vmatprep.mubr.bf16.mxu0 0
    %2067 = vmatmul.mubr.bf16.gmra.mxu0 %v1989
    %v2068 = vpop.f32.mrf.mxu0
    %v2069 = vadd.f32 %v1759, %v2068
    %v2070 = vpop.f32.mrf.mxu0
    %v2071 = vadd.f32 %v1763, %v2070
    %v2072 = vpop.f32.mrf.mxu0
    %v2073 = vadd.f32 %v1759, %v2072
    %v2074 = vpop.f32.mrf.mxu0
    %v2075 = vadd.f32 %v1763, %v2074
    %2076 = vdwg.mxu0
    %2077 = vmatprep.subr.bf16.mxu0 0
    %2078 = vmatpush1.bf16.msra.mxu0 0
    %2079 = vmatprep.subr.bf16.mxu0 0
    %2080 = vmatpush1.bf16.msra.mxu0 0
    %2081 = vmatprep.subr.bf16.mxu0 0
    %2082 = vmatpush1.bf16.msra.mxu0 0
    %2083 = vmatprep.subr.bf16.mxu0 0
    %2084 = vmatpush1.bf16.msra.mxu0 0
    %2085 = vmatprep.subr.bf16.mxu0 0
    %2086 = vmatpush1.bf16.msra.mxu0 0
    %2087 = vmatprep.subr.bf16.mxu0 0
    %2088 = vmatpush1.bf16.msra.mxu0 0
    %2089 = vmatprep.subr.bf16.mxu0 %v1945
    %2090 = vmatpush1.bf16.msra.mxu0 %v1944
    %2091 = vmatprep.subr.bf16.mxu0 %v1929
    %2092 = vmatpush1.bf16.msra.mxu0 %v1928
    %2093 = vmatprep.subr.bf16.mxu0 0
    %2094 = vmatpush2.bf16.msra.mxu0 0
    %2095 = vmatprep.subr.bf16.mxu0 0
    %2096 = vmatpush2.bf16.msra.mxu0 0
    %2097 = vmatprep.subr.bf16.mxu0 0
    %2098 = vmatpush2.bf16.msra.mxu0 0
    %2099 = vmatprep.subr.bf16.mxu0 0
    %2100 = vmatpush2.bf16.msra.mxu0 0
    %2101 = vmatprep.subr.bf16.mxu0 0
    %2102 = vmatpush2.bf16.msra.mxu0 0
    %2103 = vmatprep.subr.bf16.mxu0 0
    %2104 = vmatpush2.bf16.msra.mxu0 0
    %2105 = vmatprep.subr.bf16.mxu0 0
    %2106 = vmatpush2.bf16.msra.mxu0 0
    %2107 = vmatprep.subr.bf16.mxu0 0
    %2108 = vmatpush2.bf16.msra.mxu0 0
    %2109 = vmatprep.mubr.bf16.mxu0 0
    %2110 = vmatmul.mubr.bf16.gmra.mxu0 %v1989
    %v2111 = vpop.f32.mrf.mxu0
    %v2112 = vadd.f32 %v1767, %v2111
    %v2113 = vpop.f32.mrf.mxu0
    %v2114 = vadd.f32 %v1771, %v2113
    %v2115 = vpop.f32.mrf.mxu0
    %v2116 = vadd.f32 %v1767, %v2115
    %v2117 = vpop.f32.mrf.mxu0
    %v2118 = vadd.f32 %v1771, %v2117
    %2119 = vdwg.mxu0
    %2120 = vmatprep.subr.bf16.mxu0 0
    %2121 = vmatpush1.bf16.msra.mxu0 0
    %2122 = vmatprep.subr.bf16.mxu0 0
    %2123 = vmatpush1.bf16.msra.mxu0 0
    %2124 = vmatprep.subr.bf16.mxu0 0
    %2125 = vmatpush1.bf16.msra.mxu0 0
    %2126 = vmatprep.subr.bf16.mxu0 0
    %2127 = vmatpush1.bf16.msra.mxu0 0
    %2128 = vmatprep.subr.bf16.mxu0 0
    %2129 = vmatpush1.bf16.msra.mxu0 0
    %2130 = vmatprep.subr.bf16.mxu0 0
    %2131 = vmatpush1.bf16.msra.mxu0 0
    %2132 = vmatprep.subr.bf16.mxu0 %v1947
    %2133 = vmatpush1.bf16.msra.mxu0 %v1946
    %2134 = vmatprep.subr.bf16.mxu0 %v1931
    %2135 = vmatpush1.bf16.msra.mxu0 %v1930
    %2136 = vmatprep.subr.bf16.mxu0 0
    %2137 = vmatpush2.bf16.msra.mxu0 0
    %2138 = vmatprep.subr.bf16.mxu0 0
    %2139 = vmatpush2.bf16.msra.mxu0 0
    %2140 = vmatprep.subr.bf16.mxu0 0
    %2141 = vmatpush2.bf16.msra.mxu0 0
    %2142 = vmatprep.subr.bf16.mxu0 0
    %2143 = vmatpush2.bf16.msra.mxu0 0
    %2144 = vmatprep.subr.bf16.mxu0 0
    %2145 = vmatpush2.bf16.msra.mxu0 0
    %2146 = vmatprep.subr.bf16.mxu0 0
    %2147 = vmatpush2.bf16.msra.mxu0 0
    %2148 = vmatprep.subr.bf16.mxu0 0
    %2149 = vmatpush2.bf16.msra.mxu0 0
    %2150 = vmatprep.subr.bf16.mxu0 0
    %2151 = vmatpush2.bf16.msra.mxu0 0
    %2152 = vmatprep.mubr.bf16.mxu0 0
    %2153 = vmatmul.mubr.bf16.gmra.mxu0 %v1989
    %v2154 = vpop.f32.mrf.mxu0
    %v2155 = vadd.f32 %v1775, %v2154
    %v2156 = vpop.f32.mrf.mxu0
    %v2157 = vadd.f32 %v1779, %v2156
    %v2158 = vpop.f32.mrf.mxu0
    %v2159 = vadd.f32 %v1775, %v2158
    %v2160 = vpop.f32.mrf.mxu0
    %v2161 = vadd.f32 %v1779, %v2160
    %2162 = vdwg.mxu0
    %2163 = vmatprep.subr.bf16.mxu0 0
    %2164 = vmatpush1.bf16.msra.mxu0 0
    %2165 = vmatprep.subr.bf16.mxu0 0
    %2166 = vmatpush1.bf16.msra.mxu0 0
    %2167 = vmatprep.subr.bf16.mxu0 0
    %2168 = vmatpush1.bf16.msra.mxu0 0
    %2169 = vmatprep.subr.bf16.mxu0 0
    %2170 = vmatpush1.bf16.msra.mxu0 0
    %2171 = vmatprep.subr.bf16.mxu0 0
    %2172 = vmatpush1.bf16.msra.mxu0 0
    %2173 = vmatprep.subr.bf16.mxu0 0
    %2174 = vmatpush1.bf16.msra.mxu0 0
    %2175 = vmatprep.subr.bf16.mxu0 %v1949
    %2176 = vmatpush1.bf16.msra.mxu0 %v1948
    %2177 = vmatprep.subr.bf16.mxu0 %v1933
    %2178 = vmatpush1.bf16.msra.mxu0 %v1932
    %2179 = vmatprep.subr.bf16.mxu0 0
    %2180 = vmatpush2.bf16.msra.mxu0 0
    %2181 = vmatprep.subr.bf16.mxu0 0
    %2182 = vmatpush2.bf16.msra.mxu0 0
    %2183 = vmatprep.subr.bf16.mxu0 0
    %2184 = vmatpush2.bf16.msra.mxu0 0
    %2185 = vmatprep.subr.bf16.mxu0 0
    %2186 = vmatpush2.bf16.msra.mxu0 0
    %2187 = vmatprep.subr.bf16.mxu0 0
    %2188 = vmatpush2.bf16.msra.mxu0 0
    %2189 = vmatprep.subr.bf16.mxu0 0
    %2190 = vmatpush2.bf16.msra.mxu0 0
    %2191 = vmatprep.subr.bf16.mxu0 0
    %2192 = vmatpush2.bf16.msra.mxu0 0
    %2193 = vmatprep.subr.bf16.mxu0 0
    %2194 = vmatpush2.bf16.msra.mxu0 0
    %2195 = vmatprep.mubr.bf16.mxu0 0
    %2196 = vmatmul.mubr.bf16.gmra.mxu0 %v1989
    %v2197 = vpop.f32.mrf.mxu0
    %v2198 = vadd.f32 %v1783, %v2197
    %v2199 = vpop.f32.mrf.mxu0
    %v2200 = vadd.f32 %v1787, %v2199
    %v2201 = vpop.f32.mrf.mxu0
    %v2202 = vadd.f32 %v1783, %v2201
    %v2203 = vpop.f32.mrf.mxu0
    %v2204 = vadd.f32 %v1787, %v2203
    %2205 = vdwg.mxu0
    %2206 = vmatprep.subr.bf16.mxu0 0
    %2207 = vmatpush1.bf16.msra.mxu0 0
    %2208 = vmatprep.subr.bf16.mxu0 0
    %2209 = vmatpush1.bf16.msra.mxu0 0
    %2210 = vmatprep.subr.bf16.mxu0 0
    %2211 = vmatpush1.bf16.msra.mxu0 0
    %2212 = vmatprep.subr.bf16.mxu0 0
    %2213 = vmatpush1.bf16.msra.mxu0 0
    %2214 = vmatprep.subr.bf16.mxu0 0
    %2215 = vmatpush1.bf16.msra.mxu0 0
    %2216 = vmatprep.subr.bf16.mxu0 0
    %2217 = vmatpush1.bf16.msra.mxu0 0
    %2218 = vmatprep.subr.bf16.mxu0 %v1951
    %2219 = vmatpush1.bf16.msra.mxu0 %v1950
    %2220 = vmatprep.subr.bf16.mxu0 %v1935
    %2221 = vmatpush1.bf16.msra.mxu0 %v1934
    %2222 = vmatprep.subr.bf16.mxu0 0
    %2223 = vmatpush2.bf16.msra.mxu0 0
    %2224 = vmatprep.subr.bf16.mxu0 0
    %2225 = vmatpush2.bf16.msra.mxu0 0
    %2226 = vmatprep.subr.bf16.mxu0 0
    %2227 = vmatpush2.bf16.msra.mxu0 0
    %2228 = vmatprep.subr.bf16.mxu0 0
    %2229 = vmatpush2.bf16.msra.mxu0 0
    %2230 = vmatprep.subr.bf16.mxu0 0
    %2231 = vmatpush2.bf16.msra.mxu0 0
    %2232 = vmatprep.subr.bf16.mxu0 0
    %2233 = vmatpush2.bf16.msra.mxu0 0
    %2234 = vmatprep.subr.bf16.mxu0 0
    %2235 = vmatpush2.bf16.msra.mxu0 0
    %2236 = vmatprep.subr.bf16.mxu0 0
    %2237 = vmatpush2.bf16.msra.mxu0 0
    %2238 = vmatprep.mubr.bf16.mxu0 0
    %2239 = vmatmul.mubr.bf16.gmra.mxu0 %v1989
    %v2240 = vpop.f32.mrf.mxu0
    %v2241 = vadd.f32 %v1791, %v2240
    %v2242 = vpop.f32.mrf.mxu0
    %v2243 = vadd.f32 %v1795, %v2242
    %v2244 = vpop.f32.mrf.mxu0
    %v2245 = vadd.f32 %v1791, %v2244
    %v2246 = vpop.f32.mrf.mxu0
    %v2247 = vadd.f32 %v1795, %v2246
    %2248 = vdwg.mxu0
    %2249 = vmatprep.subr.bf16.mxu0 0
    %2250 = vmatpush1.bf16.msra.mxu0 0
    %2251 = vmatprep.subr.bf16.mxu0 0
    %2252 = vmatpush1.bf16.msra.mxu0 0
    %2253 = vmatprep.subr.bf16.mxu0 0
    %2254 = vmatpush1.bf16.msra.mxu0 0
    %2255 = vmatprep.subr.bf16.mxu0 0
    %2256 = vmatpush1.bf16.msra.mxu0 0
    %2257 = vmatprep.subr.bf16.mxu0 0
    %2258 = vmatpush1.bf16.msra.mxu0 0
    %2259 = vmatprep.subr.bf16.mxu0 0
    %2260 = vmatpush1.bf16.msra.mxu0 0
    %2261 = vmatprep.subr.bf16.mxu0 %v1953
    %2262 = vmatpush1.bf16.msra.mxu0 %v1952
    %2263 = vmatprep.subr.bf16.mxu0 %v1937
    %2264 = vmatpush1.bf16.msra.mxu0 %v1936
    %2265 = vmatprep.subr.bf16.mxu0 0
    %2266 = vmatpush2.bf16.msra.mxu0 0
    %2267 = vmatprep.subr.bf16.mxu0 0
    %2268 = vmatpush2.bf16.msra.mxu0 0
    %2269 = vmatprep.subr.bf16.mxu0 0
    %2270 = vmatpush2.bf16.msra.mxu0 0
    %2271 = vmatprep.subr.bf16.mxu0 0
    %2272 = vmatpush2.bf16.msra.mxu0 0
    %2273 = vmatprep.subr.bf16.mxu0 0
    %2274 = vmatpush2.bf16.msra.mxu0 0
    %2275 = vmatprep.subr.bf16.mxu0 0
    %2276 = vmatpush2.bf16.msra.mxu0 0
    %2277 = vmatprep.subr.bf16.mxu0 0
    %2278 = vmatpush2.bf16.msra.mxu0 0
    %2279 = vmatprep.subr.bf16.mxu0 0
    %2280 = vmatpush2.bf16.msra.mxu0 0
    %2281 = vmatprep.mubr.bf16.mxu0 0
    %2282 = vmatmul.mubr.bf16.gmra.mxu0 %v1989
    %v2283 = vpop.f32.mrf.mxu0
    %v2284 = vadd.f32 %v1799, %v2283
    %v2285 = vpop.f32.mrf.mxu0
    %v2286 = vadd.f32 %v1803, %v2285
    %v2287 = vpop.f32.mrf.mxu0
    %v2288 = vadd.f32 %v1799, %v2287
    %v2289 = vpop.f32.mrf.mxu0
    %v2290 = vadd.f32 %v1803, %v2289
    %2291 = vdwg.mxu0
    %2292 = vmatprep.subr.bf16.mxu0 0
    %2293 = vmatpush1.bf16.msra.mxu0 0
    %2294 = vmatprep.subr.bf16.mxu0 0
    %2295 = vmatpush1.bf16.msra.mxu0 0
    %2296 = vmatprep.subr.bf16.mxu0 0
    %2297 = vmatpush1.bf16.msra.mxu0 0
    %2298 = vmatprep.subr.bf16.mxu0 0
    %2299 = vmatpush1.bf16.msra.mxu0 0
    %2300 = vmatprep.subr.bf16.mxu0 0
    %2301 = vmatpush1.bf16.msra.mxu0 0
    %2302 = vmatprep.subr.bf16.mxu0 0
    %2303 = vmatpush1.bf16.msra.mxu0 0
    %2304 = vmatprep.subr.bf16.mxu0 %v1955
    %2305 = vmatpush1.bf16.msra.mxu0 %v1954
    %2306 = vmatprep.subr.bf16.mxu0 %v1939
    %2307 = vmatpush1.bf16.msra.mxu0 %v1938
    %2308 = vmatprep.subr.bf16.mxu0 0
    %2309 = vmatpush2.bf16.msra.mxu0 0
    %2310 = vmatprep.subr.bf16.mxu0 0
    %2311 = vmatpush2.bf16.msra.mxu0 0
    %2312 = vmatprep.subr.bf16.mxu0 0
    %2313 = vmatpush2.bf16.msra.mxu0 0
    %2314 = vmatprep.subr.bf16.mxu0 0
    %2315 = vmatpush2.bf16.msra.mxu0 0
    %2316 = vmatprep.subr.bf16.mxu0 0
    %2317 = vmatpush2.bf16.msra.mxu0 0
    %2318 = vmatprep.subr.bf16.mxu0 0
    %2319 = vmatpush2.bf16.msra.mxu0 0
    %2320 = vmatprep.subr.bf16.mxu0 0
    %2321 = vmatpush2.bf16.msra.mxu0 0
    %2322 = vmatprep.subr.bf16.mxu0 0
    %2323 = vmatpush2.bf16.msra.mxu0 0
    %2324 = vmatprep.mubr.bf16.mxu0 0
    %2325 = vmatmul.mubr.bf16.gmra.mxu0 %v1989
    %v2326 = vpop.f32.mrf.mxu0
    %v2327 = vadd.f32 %v1807, %v2326
    %v2328 = vpop.f32.mrf.mxu0
    %v2329 = vadd.f32 %v1811, %v2328
    %v2330 = vpop.f32.mrf.mxu0
    %v2331 = vadd.f32 %v1807, %v2330
    %v2332 = vpop.f32.mrf.mxu0
    %v2333 = vadd.f32 %v1811, %v2332
    %2334 = vdwg.mxu0
    %v2335 = vmax.f32 %v2026, 0.0
    %v2336 = vmax.f32 %v2028, 0.0
    %v2337 = vmax.f32 %v2069, 0.0
    %v2338 = vmax.f32 %v2071, 0.0
    %v2339 = vmax.f32 %v2112, 0.0
    %v2340 = vmax.f32 %v2114, 0.0
    %v2341 = vmax.f32 %v2155, 0.0
    %v2342 = vmax.f32 %v2157, 0.0
    %v2343 = vmax.f32 %v2198, 0.0
    %v2344 = vmax.f32 %v2200, 0.0
    %v2345 = vmax.f32 %v2241, 0.0
    %v2346 = vmax.f32 %v2243, 0.0
    %v2347 = vmax.f32 %v2284, 0.0
    %v2348 = vmax.f32 %v2286, 0.0
    %v2349 = vmax.f32 %v2327, 0.0
    %v2350 = vmax.f32 %v2329, 0.0
    %v2351 = vmax.f32 %v2030, 0.0
    %v2352 = vmax.f32 %v2032, 0.0
    %v2353 = vmax.f32 %v2073, 0.0
    %v2354 = vmax.f32 %v2075, 0.0
    %v2355 = vmax.f32 %v2116, 0.0
    %v2356 = vmax.f32 %v2118, 0.0
    %v2357 = vmax.f32 %v2159, 0.0
    %v2358 = vmax.f32 %v2161, 0.0
    %v2359 = vmax.f32 %v2202, 0.0
    %v2360 = vmax.f32 %v2204, 0.0
    %v2361 = vmax.f32 %v2245, 0.0
    %v2362 = vmax.f32 %v2247, 0.0
    %v2363 = vmax.f32 %v2288, 0.0
    %v2364 = vmax.f32 %v2290, 0.0
    %v2365 = vmax.f32 %v2331, 0.0
    %v2366 = vmax.f32 %v2333, 0.0
    %v2367 = vpack.c.bf16 %v2351, %v2335
    %v2368 = vpack.c.bf16 %v2352, %v2336
    %v2369 = vpack.c.bf16 %v2353, %v2337
    %v2370 = vpack.c.bf16 %v2354, %v2338
    %v2371 = vpack.c.bf16 %v2355, %v2339
    %v2372 = vpack.c.bf16 %v2356, %v2340
    %v2373 = vpack.c.bf16 %v2357, %v2341
    %v2374 = vpack.c.bf16 %v2358, %v2342
    %v2375 = vpack.c.bf16 %v2359, %v2343
    %v2376 = vpack.c.bf16 %v2360, %v2344
    %v2377 = vpack.c.bf16 %v2361, %v2345
    %v2378 = vpack.c.bf16 %v2362, %v2346
    %v2379 = vpack.c.bf16 %v2363, %v2347
    %v2380 = vpack.c.bf16 %v2364, %v2348
    %v2381 = vpack.c.bf16 %v2365, %v2349
    %v2382 = vpack.c.bf16 %v2366, %v2350
    %v2383 = vld [vmem:[%s7] sm:$0xf]
    %v2384 = vld [vmem:[%s7 + $0x4] sm:$0xf]
    %v2385 = vld [vmem:[%s7 + $0x8] sm:$0xf]
    %v2386 = vld [vmem:[%s7 + $0xc] sm:$0xf]
    %v2387 = vld [vmem:[%s7 + $0x10] sm:$0xf]
    %v2388 = vld [vmem:[%s7 + $0x14] sm:$0xf]
    %v2389 = vld [vmem:[%s7 + $0x18] sm:$0xf]
    %v2390 = vld [vmem:[%s7 + $0x1c] sm:$0xf]
    %v2391 = vld [vmem:[%s7 + $0x20] sm:$0xf]
    %v2392 = vld [vmem:[%s7 + $0x24] sm:$0xf]
    %v2393 = vld [vmem:[%s7 + $0x28] sm:$0xf]
    %v2394 = vld [vmem:[%s7 + $0x2c] sm:$0xf]
    %v2395 = vld [vmem:[%s7 + $0x30] sm:$0xf]
    %v2396 = vld [vmem:[%s7 + $0x34] sm:$0xf]
    %v2397 = vld [vmem:[%s7 + $0x38] sm:$0xf]
    %v2398 = vld [vmem:[%s7 + $0x3c] sm:$0xf]
    %v2399 = vld [vmem:[%s7 + $0x40] sm:$0xf]
    %v2400 = vld [vmem:[%s7 + $0x44] sm:$0xf]
    %v2401 = vld [vmem:[%s7 + $0x48] sm:$0xf]
    %v2402 = vld [vmem:[%s7 + $0x4c] sm:$0xf]
    %v2403 = vld [vmem:[%s7 + $0x50] sm:$0xf]
    %v2404 = vld [vmem:[%s7 + $0x54] sm:$0xf]
    %v2405 = vld [vmem:[%s7 + $0x58] sm:$0xf]
    %v2406 = vld [vmem:[%s7 + $0x5c] sm:$0xf]
    %v2407 = vld [vmem:[%s7 + $0x60] sm:$0xf]
    %v2408 = vld [vmem:[%s7 + $0x64] sm:$0xf]
    %v2409 = vld [vmem:[%s7 + $0x68] sm:$0xf]
    %v2410 = vld [vmem:[%s7 + $0x6c] sm:$0xf]
    %v2411 = vld [vmem:[%s7 + $0x70] sm:$0xf]
    %v2412 = vld [vmem:[%s7 + $0x74] sm:$0xf]
    %v2413 = vld [vmem:[%s7 + $0x78] sm:$0xf]
    %v2414 = vld [vmem:[%s7 + $0x7c] sm:$0xf]
    %v2415 = vld [vmem:[%s7 + $0x80] sm:$0xf]
    %v2416 = vld [vmem:[%s7 + $0x84] sm:$0xf]
    %v2417 = vld [vmem:[%s7 + $0x88] sm:$0xf]
    %v2418 = vld [vmem:[%s7 + $0x8c] sm:$0xf]
    %v2419 = vld [vmem:[%s7 + $0x90] sm:$0xf]
    %v2420 = vld [vmem:[%s7 + $0x94] sm:$0xf]
    %v2421 = vld [vmem:[%s7 + $0x98] sm:$0xf]
    %v2422 = vld [vmem:[%s7 + $0x9c] sm:$0xf]
    %v2423 = vld [vmem:[%s7 + $0xa0] sm:$0xf]
    %v2424 = vld [vmem:[%s7 + $0xa4] sm:$0xf]
    %v2425 = vld [vmem:[%s7 + $0xa8] sm:$0xf]
    %v2426 = vld [vmem:[%s7 + $0xac] sm:$0xf]
    %v2427 = vld [vmem:[%s7 + $0xb0] sm:$0xf]
    %v2428 = vld [vmem:[%s7 + $0xb4] sm:$0xf]
    %v2429 = vld [vmem:[%s7 + $0xb8] sm:$0xf]
    %v2430 = vld [vmem:[%s7 + $0xbc] sm:$0xf]
    %v2431 = vld [vmem:[%s7 + $0xc0] sm:$0xf]
    %v2432 = vld [vmem:[%s7 + $0xc4] sm:$0xf]
    %v2433 = vld [vmem:[%s7 + $0xc8] sm:$0xf]
    %v2434 = vld [vmem:[%s7 + $0xcc] sm:$0xf]
    %v2435 = vld [vmem:[%s7 + $0xd0] sm:$0xf]
    %v2436 = vld [vmem:[%s7 + $0xd4] sm:$0xf]
    %v2437 = vld [vmem:[%s7 + $0xd8] sm:$0xf]
    %v2438 = vld [vmem:[%s7 + $0xdc] sm:$0xf]
    %v2439 = vld [vmem:[%s7 + $0xe0] sm:$0xf]
    %v2440 = vld [vmem:[%s7 + $0xe4] sm:$0xf]
    %v2441 = vld [vmem:[%s7 + $0xe8] sm:$0xf]
    %v2442 = vld [vmem:[%s7 + $0xec] sm:$0xf]
    %v2443 = vld [vmem:[%s7 + $0xf0] sm:$0xf]
    %v2444 = vld [vmem:[%s7 + $0xf4] sm:$0xf]
    %v2445 = vld [vmem:[%s7 + $0xf8] sm:$0xf]
    %v2446 = vld [vmem:[%s7 + $0xfc] sm:$0xf]
    %v2447 = vld [vmem:[%s7 + $0x100] sm:$0xf]
    %v2448 = vld [vmem:[%s7 + $0x104] sm:$0xf]
    %v2449 = vld [vmem:[%s7 + $0x108] sm:$0xf]
    %v2450 = vld [vmem:[%s7 + $0x10c] sm:$0xf]
    %v2451 = vld [vmem:[%s7 + $0x110] sm:$0xf]
    %v2452 = vld [vmem:[%s7 + $0x114] sm:$0xf]
    %v2453 = vld [vmem:[%s7 + $0x118] sm:$0xf]
    %v2454 = vld [vmem:[%s7 + $0x11c] sm:$0xf]
    %v2455 = vld [vmem:[%s7 + $0x120] sm:$0xf]
    %v2456 = vld [vmem:[%s7 + $0x124] sm:$0xf]
    %v2457 = vld [vmem:[%s7 + $0x128] sm:$0xf]
    %v2458 = vld [vmem:[%s7 + $0x12c] sm:$0xf]
    %v2459 = vld [vmem:[%s7 + $0x130] sm:$0xf]
    %v2460 = vld [vmem:[%s7 + $0x134] sm:$0xf]
    %v2461 = vld [vmem:[%s7 + $0x138] sm:$0xf]
    %v2462 = vld [vmem:[%s7 + $0x13c] sm:$0xf]
    %v2463 = vld [vmem:[%s7 + $0x140] sm:$0xf]
    %v2464 = vld [vmem:[%s7 + $0x144] sm:$0xf]
    %v2465 = vld [vmem:[%s7 + $0x148] sm:$0xf]
    %v2466 = vld [vmem:[%s7 + $0x14c] sm:$0xf]
    %v2467 = vld [vmem:[%s7 + $0x150] sm:$0xf]
    %v2468 = vld [vmem:[%s7 + $0x154] sm:$0xf]
    %v2469 = vld [vmem:[%s7 + $0x158] sm:$0xf]
    %v2470 = vld [vmem:[%s7 + $0x15c] sm:$0xf]
    %v2471 = vld [vmem:[%s7 + $0x160] sm:$0xf]
    %v2472 = vld [vmem:[%s7 + $0x164] sm:$0xf]
    %v2473 = vld [vmem:[%s7 + $0x168] sm:$0xf]
    %v2474 = vld [vmem:[%s7 + $0x16c] sm:$0xf]
    %v2475 = vld [vmem:[%s7 + $0x170] sm:$0xf]
    %v2476 = vld [vmem:[%s7 + $0x174] sm:$0xf]
    %v2477 = vld [vmem:[%s7 + $0x178] sm:$0xf]
    %v2478 = vld [vmem:[%s7 + $0x17c] sm:$0xf]
    %v2479 = vld [vmem:[%s7 + $0x180] sm:$0xf]
    %v2480 = vld [vmem:[%s7 + $0x184] sm:$0xf]
    %v2481 = vld [vmem:[%s7 + $0x188] sm:$0xf]
    %v2482 = vld [vmem:[%s7 + $0x18c] sm:$0xf]
    %v2483 = vld [vmem:[%s7 + $0x190] sm:$0xf]
    %v2484 = vld [vmem:[%s7 + $0x194] sm:$0xf]
    %v2485 = vld [vmem:[%s7 + $0x198] sm:$0xf]
    %v2486 = vld [vmem:[%s7 + $0x19c] sm:$0xf]
    %v2487 = vld [vmem:[%s7 + $0x1a0] sm:$0xf]
    %v2488 = vld [vmem:[%s7 + $0x1a4] sm:$0xf]
    %v2489 = vld [vmem:[%s7 + $0x1a8] sm:$0xf]
    %v2490 = vld [vmem:[%s7 + $0x1ac] sm:$0xf]
    %v2491 = vld [vmem:[%s7 + $0x1b0] sm:$0xf]
    %v2492 = vld [vmem:[%s7 + $0x1b4] sm:$0xf]
    %v2493 = vld [vmem:[%s7 + $0x1b8] sm:$0xf]
    %v2494 = vld [vmem:[%s7 + $0x1bc] sm:$0xf]
    %v2495 = vld [vmem:[%s7 + $0x1c0] sm:$0xf]
    %v2496 = vld [vmem:[%s7 + $0x1c4] sm:$0xf]
    %v2497 = vld [vmem:[%s7 + $0x1c8] sm:$0xf]
    %v2498 = vld [vmem:[%s7 + $0x1cc] sm:$0xf]
    %v2499 = vld [vmem:[%s7 + $0x1d0] sm:$0xf]
    %v2500 = vld [vmem:[%s7 + $0x1d4] sm:$0xf]
    %v2501 = vld [vmem:[%s7 + $0x1d8] sm:$0xf]
    %v2502 = vld [vmem:[%s7 + $0x1dc] sm:$0xf]
    %v2503 = vld [vmem:[%s7 + $0x1e0] sm:$0xf]
    %v2504 = vld [vmem:[%s7 + $0x1e4] sm:$0xf]
    %v2505 = vld [vmem:[%s7 + $0x1e8] sm:$0xf]
    %v2506 = vld [vmem:[%s7 + $0x1ec] sm:$0xf]
    %v2507 = vld [vmem:[%s7 + $0x1f0] sm:$0xf]
    %v2508 = vld [vmem:[%s7 + $0x1f4] sm:$0xf]
    %v2509 = vld [vmem:[%s7 + $0x1f8] sm:$0xf]
    %v2510 = vld [vmem:[%s7 + $0x1fc] sm:$0xf]
    %v2511 = vld [vmem:[%s7 + $0x200] sm:$0xf]
    %v2512 = vld [vmem:[%s7 + $0x204] sm:$0xf]
    %v2513 = vld [vmem:[%s7 + $0x208] sm:$0xf]
    %v2514 = vld [vmem:[%s7 + $0x20c] sm:$0xf]
    %v2515 = vld [vmem:[%s7 + $0x210] sm:$0xf]
    %v2516 = vld [vmem:[%s7 + $0x214] sm:$0xf]
    %v2517 = vld [vmem:[%s7 + $0x218] sm:$0xf]
    %v2518 = vld [vmem:[%s7 + $0x21c] sm:$0xf]
    %v2519 = vld [vmem:[%s7 + $0x220] sm:$0xf]
    %v2520 = vld [vmem:[%s7 + $0x224] sm:$0xf]
    %v2521 = vld [vmem:[%s7 + $0x228] sm:$0xf]
    %v2522 = vld [vmem:[%s7 + $0x22c] sm:$0xf]
    %v2523 = vld [vmem:[%s7 + $0x230] sm:$0xf]
    %v2524 = vld [vmem:[%s7 + $0x234] sm:$0xf]
    %v2525 = vld [vmem:[%s7 + $0x238] sm:$0xf]
    %v2526 = vld [vmem:[%s7 + $0x23c] sm:$0xf]
    %v2527 = vld [vmem:[%s7 + $0x240] sm:$0xf]
    %v2528 = vld [vmem:[%s7 + $0x244] sm:$0xf]
    %v2529 = vld [vmem:[%s7 + $0x248] sm:$0xf]
    %v2530 = vld [vmem:[%s7 + $0x24c] sm:$0xf]
    %v2531 = vld [vmem:[%s7 + $0x250] sm:$0xf]
    %v2532 = vld [vmem:[%s7 + $0x254] sm:$0xf]
    %v2533 = vld [vmem:[%s7 + $0x258] sm:$0xf]
    %v2534 = vld [vmem:[%s7 + $0x25c] sm:$0xf]
    %v2535 = vld [vmem:[%s7 + $0x260] sm:$0xf]
    %v2536 = vld [vmem:[%s7 + $0x264] sm:$0xf]
    %v2537 = vld [vmem:[%s7 + $0x268] sm:$0xf]
    %v2538 = vld [vmem:[%s7 + $0x26c] sm:$0xf]
    %v2539 = vld [vmem:[%s7 + $0x270] sm:$0xf]
    %v2540 = vld [vmem:[%s7 + $0x274] sm:$0xf]
    %v2541 = vld [vmem:[%s7 + $0x278] sm:$0xf]
    %v2542 = vld [vmem:[%s7 + $0x27c] sm:$0xf]
    %v2543 = vld [vmem:[%s7 + $0x280] sm:$0xf]
    %v2544 = vld [vmem:[%s7 + $0x284] sm:$0xf]
    %v2545 = vld [vmem:[%s7 + $0x288] sm:$0xf]
    %v2546 = vld [vmem:[%s7 + $0x28c] sm:$0xf]
    %v2547 = vld [vmem:[%s7 + $0x290] sm:$0xf]
    %v2548 = vld [vmem:[%s7 + $0x294] sm:$0xf]
    %v2549 = vld [vmem:[%s7 + $0x298] sm:$0xf]
    %v2550 = vld [vmem:[%s7 + $0x29c] sm:$0xf]
    %v2551 = vld [vmem:[%s7 + $0x2a0] sm:$0xf]
    %v2552 = vld [vmem:[%s7 + $0x2a4] sm:$0xf]
    %v2553 = vld [vmem:[%s7 + $0x2a8] sm:$0xf]
    %v2554 = vld [vmem:[%s7 + $0x2ac] sm:$0xf]
    %v2555 = vld [vmem:[%s7 + $0x2b0] sm:$0xf]
    %v2556 = vld [vmem:[%s7 + $0x2b4] sm:$0xf]
    %v2557 = vld [vmem:[%s7 + $0x2b8] sm:$0xf]
    %v2558 = vld [vmem:[%s7 + $0x2bc] sm:$0xf]
    %v2559 = vld [vmem:[%s7 + $0x2c0] sm:$0xf]
    %v2560 = vld [vmem:[%s7 + $0x2c4] sm:$0xf]
    %v2561 = vld [vmem:[%s7 + $0x2c8] sm:$0xf]
    %v2562 = vld [vmem:[%s7 + $0x2cc] sm:$0xf]
    %v2563 = vld [vmem:[%s7 + $0x2d0] sm:$0xf]
    %v2564 = vld [vmem:[%s7 + $0x2d4] sm:$0xf]
    %v2565 = vld [vmem:[%s7 + $0x2d8] sm:$0xf]
    %v2566 = vld [vmem:[%s7 + $0x2dc] sm:$0xf]
    %v2567 = vld [vmem:[%s7 + $0x2e0] sm:$0xf]
    %v2568 = vld [vmem:[%s7 + $0x2e4] sm:$0xf]
    %v2569 = vld [vmem:[%s7 + $0x2e8] sm:$0xf]
    %v2570 = vld [vmem:[%s7 + $0x2ec] sm:$0xf]
    %v2571 = vld [vmem:[%s7 + $0x2f0] sm:$0xf]
    %v2572 = vld [vmem:[%s7 + $0x2f4] sm:$0xf]
    %v2573 = vld [vmem:[%s7 + $0x2f8] sm:$0xf]
    %v2574 = vld [vmem:[%s7 + $0x2fc] sm:$0xf]
    %v2575 = vld [vmem:[%s7 + $0x300] sm:$0xf]
    %v2576 = vld [vmem:[%s7 + $0x304] sm:$0xf]
    %v2577 = vld [vmem:[%s7 + $0x308] sm:$0xf]
    %v2578 = vld [vmem:[%s7 + $0x30c] sm:$0xf]
    %v2579 = vld [vmem:[%s7 + $0x310] sm:$0xf]
    %v2580 = vld [vmem:[%s7 + $0x314] sm:$0xf]
    %v2581 = vld [vmem:[%s7 + $0x318] sm:$0xf]
    %v2582 = vld [vmem:[%s7 + $0x31c] sm:$0xf]
    %v2583 = vld [vmem:[%s7 + $0x320] sm:$0xf]
    %v2584 = vld [vmem:[%s7 + $0x324] sm:$0xf]
    %v2585 = vld [vmem:[%s7 + $0x328] sm:$0xf]
    %v2586 = vld [vmem:[%s7 + $0x32c] sm:$0xf]
    %v2587 = vld [vmem:[%s7 + $0x330] sm:$0xf]
    %v2588 = vld [vmem:[%s7 + $0x334] sm:$0xf]
    %v2589 = vld [vmem:[%s7 + $0x338] sm:$0xf]
    %v2590 = vld [vmem:[%s7 + $0x33c] sm:$0xf]
    %v2591 = vld [vmem:[%s7 + $0x340] sm:$0xf]
    %v2592 = vld [vmem:[%s7 + $0x344] sm:$0xf]
    %v2593 = vld [vmem:[%s7 + $0x348] sm:$0xf]
    %v2594 = vld [vmem:[%s7 + $0x34c] sm:$0xf]
    %v2595 = vld [vmem:[%s7 + $0x350] sm:$0xf]
    %v2596 = vld [vmem:[%s7 + $0x354] sm:$0xf]
    %v2597 = vld [vmem:[%s7 + $0x358] sm:$0xf]
    %v2598 = vld [vmem:[%s7 + $0x35c] sm:$0xf]
    %v2599 = vld [vmem:[%s7 + $0x360] sm:$0xf]
    %v2600 = vld [vmem:[%s7 + $0x364] sm:$0xf]
    %v2601 = vld [vmem:[%s7 + $0x368] sm:$0xf]
    %v2602 = vld [vmem:[%s7 + $0x36c] sm:$0xf]
    %v2603 = vld [vmem:[%s7 + $0x370] sm:$0xf]
    %v2604 = vld [vmem:[%s7 + $0x374] sm:$0xf]
    %v2605 = vld [vmem:[%s7 + $0x378] sm:$0xf]
    %v2606 = vld [vmem:[%s7 + $0x37c] sm:$0xf]
    %v2607 = vld [vmem:[%s7 + $0x380] sm:$0xf]
    %v2608 = vld [vmem:[%s7 + $0x384] sm:$0xf]
    %v2609 = vld [vmem:[%s7 + $0x388] sm:$0xf]
    %v2610 = vld [vmem:[%s7 + $0x38c] sm:$0xf]
    %v2611 = vld [vmem:[%s7 + $0x390] sm:$0xf]
    %v2612 = vld [vmem:[%s7 + $0x394] sm:$0xf]
    %v2613 = vld [vmem:[%s7 + $0x398] sm:$0xf]
    %v2614 = vld [vmem:[%s7 + $0x39c] sm:$0xf]
    %v2615 = vld [vmem:[%s7 + $0x3a0] sm:$0xf]
    %v2616 = vld [vmem:[%s7 + $0x3a4] sm:$0xf]
    %v2617 = vld [vmem:[%s7 + $0x3a8] sm:$0xf]
    %v2618 = vld [vmem:[%s7 + $0x3ac] sm:$0xf]
    %v2619 = vld [vmem:[%s7 + $0x3b0] sm:$0xf]
    %v2620 = vld [vmem:[%s7 + $0x3b4] sm:$0xf]
    %v2621 = vld [vmem:[%s7 + $0x3b8] sm:$0xf]
    %v2622 = vld [vmem:[%s7 + $0x3bc] sm:$0xf]
    %v2623 = vld [vmem:[%s7 + $0x3c0] sm:$0xf]
    %v2624 = vld [vmem:[%s7 + $0x3c4] sm:$0xf]
    %v2625 = vld [vmem:[%s7 + $0x3c8] sm:$0xf]
    %v2626 = vld [vmem:[%s7 + $0x3cc] sm:$0xf]
    %v2627 = vld [vmem:[%s7 + $0x3d0] sm:$0xf]
    %v2628 = vld [vmem:[%s7 + $0x3d4] sm:$0xf]
    %v2629 = vld [vmem:[%s7 + $0x3d8] sm:$0xf]
    %v2630 = vld [vmem:[%s7 + $0x3dc] sm:$0xf]
    %v2631 = vld [vmem:[%s7 + $0x3e0] sm:$0xf]
    %v2632 = vld [vmem:[%s7 + $0x3e4] sm:$0xf]
    %v2633 = vld [vmem:[%s7 + $0x3e8] sm:$0xf]
    %v2634 = vld [vmem:[%s7 + $0x3ec] sm:$0xf]
    %v2635 = vld [vmem:[%s7 + $0x3f0] sm:$0xf]
    %v2636 = vld [vmem:[%s7 + $0x3f4] sm:$0xf]
    %v2637 = vld [vmem:[%s7 + $0x3f8] sm:$0xf]
    %v2638 = vld [vmem:[%s7 + $0x3fc] sm:$0xf]
    %v2639 = vlaneseq
    %v2640 = vshrl.u32 %v2639, 7
    %v2641 = vsub.s32 3, %v2640
    %v2642 = vrot.slane %v35, %v2641
    %v2899 = vunpack.c.l.b16 %v2383
    %v2900 = vunpack.c.l.b16 %v2384
    %v2901 = vunpack.c.l.b16 %v2385
    %v2902 = vunpack.c.l.b16 %v2386
    %v2903 = vunpack.c.l.b16 %v2387
    %v2904 = vunpack.c.l.b16 %v2388
    %v2905 = vunpack.c.l.b16 %v2389
    %v2906 = vunpack.c.l.b16 %v2390
    %v2907 = vunpack.c.l.b16 %v2391
    %v2908 = vunpack.c.l.b16 %v2392
    %v2909 = vunpack.c.l.b16 %v2393
    %v2910 = vunpack.c.l.b16 %v2394
    %v2911 = vunpack.c.l.b16 %v2395
    %v2912 = vunpack.c.l.b16 %v2396
    %v2913 = vunpack.c.l.b16 %v2397
    %v2914 = vunpack.c.l.b16 %v2398
    %v2915 = vunpack.c.l.b16 %v2399
    %v2916 = vunpack.c.l.b16 %v2400
    %v2917 = vunpack.c.l.b16 %v2401
    %v2918 = vunpack.c.l.b16 %v2402
    %v2919 = vunpack.c.l.b16 %v2403
    %v2920 = vunpack.c.l.b16 %v2404
    %v2921 = vunpack.c.l.b16 %v2405
    %v2922 = vunpack.c.l.b16 %v2406
    %v2923 = vunpack.c.l.b16 %v2407
    %v2924 = vunpack.c.l.b16 %v2408
    %v2925 = vunpack.c.l.b16 %v2409
    %v2926 = vunpack.c.l.b16 %v2410
    %v2927 = vunpack.c.l.b16 %v2411
    %v2928 = vunpack.c.l.b16 %v2412
    %v2929 = vunpack.c.l.b16 %v2413
    %v2930 = vunpack.c.l.b16 %v2414
    %v2931 = vunpack.c.l.b16 %v2415
    %v2932 = vunpack.c.l.b16 %v2416
    %v2933 = vunpack.c.l.b16 %v2417
    %v2934 = vunpack.c.l.b16 %v2418
    %v2935 = vunpack.c.l.b16 %v2419
    %v2936 = vunpack.c.l.b16 %v2420
    %v2937 = vunpack.c.l.b16 %v2421
    %v2938 = vunpack.c.l.b16 %v2422
    %v2939 = vunpack.c.l.b16 %v2423
    %v2940 = vunpack.c.l.b16 %v2424
    %v2941 = vunpack.c.l.b16 %v2425
    %v2942 = vunpack.c.l.b16 %v2426
    %v2943 = vunpack.c.l.b16 %v2427
    %v2944 = vunpack.c.l.b16 %v2428
    %v2945 = vunpack.c.l.b16 %v2429
    %v2946 = vunpack.c.l.b16 %v2430
    %v2947 = vunpack.c.l.b16 %v2431
    %v2948 = vunpack.c.l.b16 %v2432
    %v2949 = vunpack.c.l.b16 %v2433
    %v2950 = vunpack.c.l.b16 %v2434
    %v2951 = vunpack.c.l.b16 %v2435
    %v2952 = vunpack.c.l.b16 %v2436
    %v2953 = vunpack.c.l.b16 %v2437
    %v2954 = vunpack.c.l.b16 %v2438
    %v2955 = vunpack.c.l.b16 %v2439
    %v2956 = vunpack.c.l.b16 %v2440
    %v2957 = vunpack.c.l.b16 %v2441
    %v2958 = vunpack.c.l.b16 %v2442
    %v2959 = vunpack.c.l.b16 %v2443
    %v2960 = vunpack.c.l.b16 %v2444
    %v2961 = vunpack.c.l.b16 %v2445
    %v2962 = vunpack.c.l.b16 %v2446
    %v2963 = vunpack.c.l.b16 %v2447
    %v2964 = vunpack.c.l.b16 %v2448
    %v2965 = vunpack.c.l.b16 %v2449
    %v2966 = vunpack.c.l.b16 %v2450
    %v2967 = vunpack.c.l.b16 %v2451
    %v2968 = vunpack.c.l.b16 %v2452
    %v2969 = vunpack.c.l.b16 %v2453
    %v2970 = vunpack.c.l.b16 %v2454
    %v2971 = vunpack.c.l.b16 %v2455
    %v2972 = vunpack.c.l.b16 %v2456
    %v2973 = vunpack.c.l.b16 %v2457
    %v2974 = vunpack.c.l.b16 %v2458
    %v2975 = vunpack.c.l.b16 %v2459
    %v2976 = vunpack.c.l.b16 %v2460
    %v2977 = vunpack.c.l.b16 %v2461
    %v2978 = vunpack.c.l.b16 %v2462
    %v2979 = vunpack.c.l.b16 %v2463
    %v2980 = vunpack.c.l.b16 %v2464
    %v2981 = vunpack.c.l.b16 %v2465
    %v2982 = vunpack.c.l.b16 %v2466
    %v2983 = vunpack.c.l.b16 %v2467
    %v2984 = vunpack.c.l.b16 %v2468
    %v2985 = vunpack.c.l.b16 %v2469
    %v2986 = vunpack.c.l.b16 %v2470
    %v2987 = vunpack.c.l.b16 %v2471
    %v2988 = vunpack.c.l.b16 %v2472
    %v2989 = vunpack.c.l.b16 %v2473
    %v2990 = vunpack.c.l.b16 %v2474
    %v2991 = vunpack.c.l.b16 %v2475
    %v2992 = vunpack.c.l.b16 %v2476
    %v2993 = vunpack.c.l.b16 %v2477
    %v2994 = vunpack.c.l.b16 %v2478
    %v2995 = vunpack.c.l.b16 %v2479
    %v2996 = vunpack.c.l.b16 %v2480
    %v2997 = vunpack.c.l.b16 %v2481
    %v2998 = vunpack.c.l.b16 %v2482
    %v2999 = vunpack.c.l.b16 %v2483
    %v3000 = vunpack.c.l.b16 %v2484
    %v3001 = vunpack.c.l.b16 %v2485
    %v3002 = vunpack.c.l.b16 %v2486
    %v3003 = vunpack.c.l.b16 %v2487
    %v3004 = vunpack.c.l.b16 %v2488
    %v3005 = vunpack.c.l.b16 %v2489
    %v3006 = vunpack.c.l.b16 %v2490
    %v3007 = vunpack.c.l.b16 %v2491
    %v3008 = vunpack.c.l.b16 %v2492
    %v3009 = vunpack.c.l.b16 %v2493
    %v3010 = vunpack.c.l.b16 %v2494
    %v3011 = vunpack.c.l.b16 %v2495
    %v3012 = vunpack.c.l.b16 %v2496
    %v3013 = vunpack.c.l.b16 %v2497
    %v3014 = vunpack.c.l.b16 %v2498
    %v3015 = vunpack.c.l.b16 %v2499
    %v3016 = vunpack.c.l.b16 %v2500
    %v3017 = vunpack.c.l.b16 %v2501
    %v3018 = vunpack.c.l.b16 %v2502
    %v3019 = vunpack.c.l.b16 %v2503
    %v3020 = vunpack.c.l.b16 %v2504
    %v3021 = vunpack.c.l.b16 %v2505
    %v3022 = vunpack.c.l.b16 %v2506
    %v3023 = vunpack.c.l.b16 %v2507
    %v3024 = vunpack.c.l.b16 %v2508
    %v3025 = vunpack.c.l.b16 %v2509
    %v3026 = vunpack.c.l.b16 %v2510
    %v3027 = vunpack.c.l.b16 %v2511
    %v3028 = vunpack.c.l.b16 %v2512
    %v3029 = vunpack.c.l.b16 %v2513
    %v3030 = vunpack.c.l.b16 %v2514
    %v3031 = vunpack.c.l.b16 %v2515
    %v3032 = vunpack.c.l.b16 %v2516
    %v3033 = vunpack.c.l.b16 %v2517
    %v3034 = vunpack.c.l.b16 %v2518
    %v3035 = vunpack.c.l.b16 %v2519
    %v3036 = vunpack.c.l.b16 %v2520
    %v3037 = vunpack.c.l.b16 %v2521
    %v3038 = vunpack.c.l.b16 %v2522
    %v3039 = vunpack.c.l.b16 %v2523
    %v3040 = vunpack.c.l.b16 %v2524
    %v3041 = vunpack.c.l.b16 %v2525
    %v3042 = vunpack.c.l.b16 %v2526
    %v3043 = vunpack.c.l.b16 %v2527
    %v3044 = vunpack.c.l.b16 %v2528
    %v3045 = vunpack.c.l.b16 %v2529
    %v3046 = vunpack.c.l.b16 %v2530
    %v3047 = vunpack.c.l.b16 %v2531
    %v3048 = vunpack.c.l.b16 %v2532
    %v3049 = vunpack.c.l.b16 %v2533
    %v3050 = vunpack.c.l.b16 %v2534
    %v3051 = vunpack.c.l.b16 %v2535
    %v3052 = vunpack.c.l.b16 %v2536
    %v3053 = vunpack.c.l.b16 %v2537
    %v3054 = vunpack.c.l.b16 %v2538
    %v3055 = vunpack.c.l.b16 %v2539
    %v3056 = vunpack.c.l.b16 %v2540
    %v3057 = vunpack.c.l.b16 %v2541
    %v3058 = vunpack.c.l.b16 %v2542
    %v3059 = vunpack.c.l.b16 %v2543
    %v3060 = vunpack.c.l.b16 %v2544
    %v3061 = vunpack.c.l.b16 %v2545
    %v3062 = vunpack.c.l.b16 %v2546
    %v3063 = vunpack.c.l.b16 %v2547
    %v3064 = vunpack.c.l.b16 %v2548
    %v3065 = vunpack.c.l.b16 %v2549
    %v3066 = vunpack.c.l.b16 %v2550
    %v3067 = vunpack.c.l.b16 %v2551
    %v3068 = vunpack.c.l.b16 %v2552
    %v3069 = vunpack.c.l.b16 %v2553
    %v3070 = vunpack.c.l.b16 %v2554
    %v3071 = vunpack.c.l.b16 %v2555
    %v3072 = vunpack.c.l.b16 %v2556
    %v3073 = vunpack.c.l.b16 %v2557
    %v3074 = vunpack.c.l.b16 %v2558
    %v3075 = vunpack.c.l.b16 %v2559
    %v3076 = vunpack.c.l.b16 %v2560
    %v3077 = vunpack.c.l.b16 %v2561
    %v3078 = vunpack.c.l.b16 %v2562
    %v3079 = vunpack.c.l.b16 %v2563
    %v3080 = vunpack.c.l.b16 %v2564
    %v3081 = vunpack.c.l.b16 %v2565
    %v3082 = vunpack.c.l.b16 %v2566
    %v3083 = vunpack.c.l.b16 %v2567
    %v3084 = vunpack.c.l.b16 %v2568
    %v3085 = vunpack.c.l.b16 %v2569
    %v3086 = vunpack.c.l.b16 %v2570
    %v3087 = vunpack.c.l.b16 %v2571
    %v3088 = vunpack.c.l.b16 %v2572
    %v3089 = vunpack.c.l.b16 %v2573
    %v3090 = vunpack.c.l.b16 %v2574
    %v3091 = vunpack.c.l.b16 %v2575
    %v3092 = vunpack.c.l.b16 %v2576
    %v3093 = vunpack.c.l.b16 %v2577
    %v3094 = vunpack.c.l.b16 %v2578
    %v3095 = vunpack.c.l.b16 %v2579
    %v3096 = vunpack.c.l.b16 %v2580
    %v3097 = vunpack.c.l.b16 %v2581
    %v3098 = vunpack.c.l.b16 %v2582
    %v3099 = vunpack.c.l.b16 %v2583
    %v3100 = vunpack.c.l.b16 %v2584
    %v3101 = vunpack.c.l.b16 %v2585
    %v3102 = vunpack.c.l.b16 %v2586
    %v3103 = vunpack.c.l.b16 %v2587
    %v3104 = vunpack.c.l.b16 %v2588
    %v3105 = vunpack.c.l.b16 %v2589
    %v3106 = vunpack.c.l.b16 %v2590
    %v3107 = vunpack.c.l.b16 %v2591
    %v3108 = vunpack.c.l.b16 %v2592
    %v3109 = vunpack.c.l.b16 %v2593
    %v3110 = vunpack.c.l.b16 %v2594
    %v3111 = vunpack.c.l.b16 %v2595
    %v3112 = vunpack.c.l.b16 %v2596
    %v3113 = vunpack.c.l.b16 %v2597
    %v3114 = vunpack.c.l.b16 %v2598
    %v3115 = vunpack.c.l.b16 %v2599
    %v3116 = vunpack.c.l.b16 %v2600
    %v3117 = vunpack.c.l.b16 %v2601
    %v3118 = vunpack.c.l.b16 %v2602
    %v3119 = vunpack.c.l.b16 %v2603
    %v3120 = vunpack.c.l.b16 %v2604
    %v3121 = vunpack.c.l.b16 %v2605
    %v3122 = vunpack.c.l.b16 %v2606
    %v3123 = vunpack.c.l.b16 %v2607
    %v3124 = vunpack.c.l.b16 %v2608
    %v3125 = vunpack.c.l.b16 %v2609
    %v3126 = vunpack.c.l.b16 %v2610
    %v3127 = vunpack.c.l.b16 %v2611
    %v3128 = vunpack.c.l.b16 %v2612
    %v3129 = vunpack.c.l.b16 %v2613
    %v3130 = vunpack.c.l.b16 %v2614
    %v3131 = vunpack.c.l.b16 %v2615
    %v3132 = vunpack.c.l.b16 %v2616
    %v3133 = vunpack.c.l.b16 %v2617
    %v3134 = vunpack.c.l.b16 %v2618
    %v3135 = vunpack.c.l.b16 %v2619
    %v3136 = vunpack.c.l.b16 %v2620
    %v3137 = vunpack.c.l.b16 %v2621
    %v3138 = vunpack.c.l.b16 %v2622
    %v3139 = vunpack.c.l.b16 %v2623
    %v3140 = vunpack.c.l.b16 %v2624
    %v3141 = vunpack.c.l.b16 %v2625
    %v3142 = vunpack.c.l.b16 %v2626
    %v3143 = vunpack.c.l.b16 %v2627
    %v3144 = vunpack.c.l.b16 %v2628
    %v3145 = vunpack.c.l.b16 %v2629
    %v3146 = vunpack.c.l.b16 %v2630
    %v3147 = vunpack.c.l.b16 %v2631
    %v3148 = vunpack.c.l.b16 %v2632
    %v3149 = vunpack.c.l.b16 %v2633
    %v3150 = vunpack.c.l.b16 %v2634
    %v3151 = vunpack.c.l.b16 %v2635
    %v3152 = vunpack.c.l.b16 %v2636
    %v3153 = vunpack.c.l.b16 %v2637
    %v3154 = vunpack.c.l.b16 %v2638
    %v3155 = vpack.c.b16 %v2900, %v2899
    %v3156 = vpack.c.b16 %v2902, %v2901
    %v3157 = vpack.c.b16 %v2904, %v2903
    %v3158 = vpack.c.b16 %v2906, %v2905
    %v3159 = vpack.c.b16 %v2908, %v2907
    %v3160 = vpack.c.b16 %v2910, %v2909
    %v3161 = vpack.c.b16 %v2912, %v2911
    %v3162 = vpack.c.b16 %v2914, %v2913
    %v3163 = vpack.c.b16 %v2916, %v2915
    %v3164 = vpack.c.b16 %v2918, %v2917
    %v3165 = vpack.c.b16 %v2920, %v2919
    %v3166 = vpack.c.b16 %v2922, %v2921
    %v3167 = vpack.c.b16 %v2924, %v2923
    %v3168 = vpack.c.b16 %v2926, %v2925
    %v3169 = vpack.c.b16 %v2928, %v2927
    %v3170 = vpack.c.b16 %v2930, %v2929
    %v3171 = vpack.c.b16 %v2932, %v2931
    %v3172 = vpack.c.b16 %v2934, %v2933
    %v3173 = vpack.c.b16 %v2936, %v2935
    %v3174 = vpack.c.b16 %v2938, %v2937
    %v3175 = vpack.c.b16 %v2940, %v2939
    %v3176 = vpack.c.b16 %v2942, %v2941
    %v3177 = vpack.c.b16 %v2944, %v2943
    %v3178 = vpack.c.b16 %v2946, %v2945
    %v3179 = vpack.c.b16 %v2948, %v2947
    %v3180 = vpack.c.b16 %v2950, %v2949
    %v3181 = vpack.c.b16 %v2952, %v2951
    %v3182 = vpack.c.b16 %v2954, %v2953
    %v3183 = vpack.c.b16 %v2956, %v2955
    %v3184 = vpack.c.b16 %v2958, %v2957
    %v3185 = vpack.c.b16 %v2960, %v2959
    %v3186 = vpack.c.b16 %v2962, %v2961
    %v3187 = vpack.c.b16 %v2964, %v2963
    %v3188 = vpack.c.b16 %v2966, %v2965
    %v3189 = vpack.c.b16 %v2968, %v2967
    %v3190 = vpack.c.b16 %v2970, %v2969
    %v3191 = vpack.c.b16 %v2972, %v2971
    %v3192 = vpack.c.b16 %v2974, %v2973
    %v3193 = vpack.c.b16 %v2976, %v2975
    %v3194 = vpack.c.b16 %v2978, %v2977
    %v3195 = vpack.c.b16 %v2980, %v2979
    %v3196 = vpack.c.b16 %v2982, %v2981
    %v3197 = vpack.c.b16 %v2984, %v2983
    %v3198 = vpack.c.b16 %v2986, %v2985
    %v3199 = vpack.c.b16 %v2988, %v2987
    %v3200 = vpack.c.b16 %v2990, %v2989
    %v3201 = vpack.c.b16 %v2992, %v2991
    %v3202 = vpack.c.b16 %v2994, %v2993
    %v3203 = vpack.c.b16 %v2996, %v2995
    %v3204 = vpack.c.b16 %v2998, %v2997
    %v3205 = vpack.c.b16 %v3000, %v2999
    %v3206 = vpack.c.b16 %v3002, %v3001
    %v3207 = vpack.c.b16 %v3004, %v3003
    %v3208 = vpack.c.b16 %v3006, %v3005
    %v3209 = vpack.c.b16 %v3008, %v3007
    %v3210 = vpack.c.b16 %v3010, %v3009
    %v3211 = vpack.c.b16 %v3012, %v3011
    %v3212 = vpack.c.b16 %v3014, %v3013
    %v3213 = vpack.c.b16 %v3016, %v3015
    %v3214 = vpack.c.b16 %v3018, %v3017
    %v3215 = vpack.c.b16 %v3020, %v3019
    %v3216 = vpack.c.b16 %v3022, %v3021
    %v3217 = vpack.c.b16 %v3024, %v3023
    %v3218 = vpack.c.b16 %v3026, %v3025
    %v3219 = vpack.c.b16 %v3028, %v3027
    %v3220 = vpack.c.b16 %v3030, %v3029
    %v3221 = vpack.c.b16 %v3032, %v3031
    %v3222 = vpack.c.b16 %v3034, %v3033
    %v3223 = vpack.c.b16 %v3036, %v3035
    %v3224 = vpack.c.b16 %v3038, %v3037
    %v3225 = vpack.c.b16 %v3040, %v3039
    %v3226 = vpack.c.b16 %v3042, %v3041
    %v3227 = vpack.c.b16 %v3044, %v3043
    %v3228 = vpack.c.b16 %v3046, %v3045
    %v3229 = vpack.c.b16 %v3048, %v3047
    %v3230 = vpack.c.b16 %v3050, %v3049
    %v3231 = vpack.c.b16 %v3052, %v3051
    %v3232 = vpack.c.b16 %v3054, %v3053
    %v3233 = vpack.c.b16 %v3056, %v3055
    %v3234 = vpack.c.b16 %v3058, %v3057
    %v3235 = vpack.c.b16 %v3060, %v3059
    %v3236 = vpack.c.b16 %v3062, %v3061
    %v3237 = vpack.c.b16 %v3064, %v3063
    %v3238 = vpack.c.b16 %v3066, %v3065
    %v3239 = vpack.c.b16 %v3068, %v3067
    %v3240 = vpack.c.b16 %v3070, %v3069
    %v3241 = vpack.c.b16 %v3072, %v3071
    %v3242 = vpack.c.b16 %v3074, %v3073
    %v3243 = vpack.c.b16 %v3076, %v3075
    %v3244 = vpack.c.b16 %v3078, %v3077
    %v3245 = vpack.c.b16 %v3080, %v3079
    %v3246 = vpack.c.b16 %v3082, %v3081
    %v3247 = vpack.c.b16 %v3084, %v3083
    %v3248 = vpack.c.b16 %v3086, %v3085
    %v3249 = vpack.c.b16 %v3088, %v3087
    %v3250 = vpack.c.b16 %v3090, %v3089
    %v3251 = vpack.c.b16 %v3092, %v3091
    %v3252 = vpack.c.b16 %v3094, %v3093
    %v3253 = vpack.c.b16 %v3096, %v3095
    %v3254 = vpack.c.b16 %v3098, %v3097
    %v3255 = vpack.c.b16 %v3100, %v3099
    %v3256 = vpack.c.b16 %v3102, %v3101
    %v3257 = vpack.c.b16 %v3104, %v3103
    %v3258 = vpack.c.b16 %v3106, %v3105
    %v3259 = vpack.c.b16 %v3108, %v3107
    %v3260 = vpack.c.b16 %v3110, %v3109
    %v3261 = vpack.c.b16 %v3112, %v3111
    %v3262 = vpack.c.b16 %v3114, %v3113
    %v3263 = vpack.c.b16 %v3116, %v3115
    %v3264 = vpack.c.b16 %v3118, %v3117
    %v3265 = vpack.c.b16 %v3120, %v3119
    %v3266 = vpack.c.b16 %v3122, %v3121
    %v3267 = vpack.c.b16 %v3124, %v3123
    %v3268 = vpack.c.b16 %v3126, %v3125
    %v3269 = vpack.c.b16 %v3128, %v3127
    %v3270 = vpack.c.b16 %v3130, %v3129
    %v3271 = vpack.c.b16 %v3132, %v3131
    %v3272 = vpack.c.b16 %v3134, %v3133
    %v3273 = vpack.c.b16 %v3136, %v3135
    %v3274 = vpack.c.b16 %v3138, %v3137
    %v3275 = vpack.c.b16 %v3140, %v3139
    %v3276 = vpack.c.b16 %v3142, %v3141
    %v3277 = vpack.c.b16 %v3144, %v3143
    %v3278 = vpack.c.b16 %v3146, %v3145
    %v3279 = vpack.c.b16 %v3148, %v3147
    %v3280 = vpack.c.b16 %v3150, %v3149
    %v3281 = vpack.c.b16 %v3152, %v3151
    %v3282 = vpack.c.b16 %v3154, %v3153
    %3411 = vmatprep.subr.bf16.mxu0 0
    %3412 = vmatpush1.bf16.msra.mxu0 %v3162
    %3413 = vmatprep.subr.bf16.mxu0 0
    %3414 = vmatpush1.bf16.msra.mxu0 %v3161
    %3415 = vmatprep.subr.bf16.mxu0 0
    %3416 = vmatpush1.bf16.msra.mxu0 %v3160
    %3417 = vmatprep.subr.bf16.mxu0 0
    %3418 = vmatpush1.bf16.msra.mxu0 %v3159
    %3419 = vmatprep.subr.bf16.mxu0 0
    %3420 = vmatpush1.bf16.msra.mxu0 %v3158
    %3421 = vmatprep.subr.bf16.mxu0 0
    %3422 = vmatpush1.bf16.msra.mxu0 %v3157
    %3423 = vmatprep.subr.bf16.mxu0 0
    %3424 = vmatpush1.bf16.msra.mxu0 %v3156
    %3425 = vmatprep.subr.bf16.mxu0 0
    %3426 = vmatpush1.bf16.msra.mxu0 %v3155
    %3427 = vmatprep.subr.bf16.mxu0 0
    %3428 = vmatpush2.bf16.msra.mxu0 %v3170
    %3429 = vmatprep.subr.bf16.mxu0 0
    %3430 = vmatpush2.bf16.msra.mxu0 %v3169
    %3431 = vmatprep.subr.bf16.mxu0 0
    %3432 = vmatpush2.bf16.msra.mxu0 %v3168
    %3433 = vmatprep.subr.bf16.mxu0 0
    %3434 = vmatpush2.bf16.msra.mxu0 %v3167
    %3435 = vmatprep.subr.bf16.mxu0 0
    %3436 = vmatpush2.bf16.msra.mxu0 %v3166
    %3437 = vmatprep.subr.bf16.mxu0 0
    %3438 = vmatpush2.bf16.msra.mxu0 %v3165
    %3439 = vmatprep.subr.bf16.mxu0 0
    %3440 = vmatpush2.bf16.msra.mxu0 %v3164
    %3441 = vmatprep.subr.bf16.mxu0 0
    %3442 = vmatpush2.bf16.msra.mxu0 %v3163
    %3443 = vmatprep.mubr.bf16.mxu0 %v2368
    %3444 = vmatmul.mubr.bf16.gmra.mxu0 %v2367
    %v3445 = vpop.f32.mrf.mxu0
    %v3446 = vadd.f32 %v2642, %v3445
    %v3447 = vpop.f32.mrf.mxu0
    %v3448 = vpop.f32.mrf.mxu0
    %v3449 = vadd.f32 %v2642, %v3448
    %v3450 = vpop.f32.mrf.mxu0
    %3451 = vdwg.mxu0
    %3452 = vmatprep.subr.bf16.mxu0 0
    %3453 = vmatpush1.bf16.msra.mxu0 %v3178
    %3454 = vmatprep.subr.bf16.mxu0 0
    %3455 = vmatpush1.bf16.msra.mxu0 %v3177
    %3456 = vmatprep.subr.bf16.mxu0 0
    %3457 = vmatpush1.bf16.msra.mxu0 %v3176
    %3458 = vmatprep.subr.bf16.mxu0 0
    %3459 = vmatpush1.bf16.msra.mxu0 %v3175
    %3460 = vmatprep.subr.bf16.mxu0 0
    %3461 = vmatpush1.bf16.msra.mxu0 %v3174
    %3462 = vmatprep.subr.bf16.mxu0 0
    %3463 = vmatpush1.bf16.msra.mxu0 %v3173
    %3464 = vmatprep.subr.bf16.mxu0 0
    %3465 = vmatpush1.bf16.msra.mxu0 %v3172
    %3466 = vmatprep.subr.bf16.mxu0 0
    %3467 = vmatpush1.bf16.msra.mxu0 %v3171
    %3468 = vmatprep.subr.bf16.mxu0 0
    %3469 = vmatpush2.bf16.msra.mxu0 %v3186
    %3470 = vmatprep.subr.bf16.mxu0 0
    %3471 = vmatpush2.bf16.msra.mxu0 %v3185
    %3472 = vmatprep.subr.bf16.mxu0 0
    %3473 = vmatpush2.bf16.msra.mxu0 %v3184
    %3474 = vmatprep.subr.bf16.mxu0 0
    %3475 = vmatpush2.bf16.msra.mxu0 %v3183
    %3476 = vmatprep.subr.bf16.mxu0 0
    %3477 = vmatpush2.bf16.msra.mxu0 %v3182
    %3478 = vmatprep.subr.bf16.mxu0 0
    %3479 = vmatpush2.bf16.msra.mxu0 %v3181
    %3480 = vmatprep.subr.bf16.mxu0 0
    %3481 = vmatpush2.bf16.msra.mxu0 %v3180
    %3482 = vmatprep.subr.bf16.mxu0 0
    %3483 = vmatpush2.bf16.msra.mxu0 %v3179
    %3484 = vmatprep.mubr.bf16.mxu0 %v2370
    %3485 = vmatmul.mubr.bf16.gmra.mxu0 %v2369
    %v3486 = vpop.f32.mrf.mxu0
    %v3487 = vadd.f32 %v3446, %v3486
    %v3488 = vpop.f32.mrf.mxu0
    %v3489 = vpop.f32.mrf.mxu0
    %v3490 = vadd.f32 %v3449, %v3489
    %v3491 = vpop.f32.mrf.mxu0
    %3492 = vdwg.mxu0
    %3493 = vmatprep.subr.bf16.mxu0 0
    %3494 = vmatpush1.bf16.msra.mxu0 %v3194
    %3495 = vmatprep.subr.bf16.mxu0 0
    %3496 = vmatpush1.bf16.msra.mxu0 %v3193
    %3497 = vmatprep.subr.bf16.mxu0 0
    %3498 = vmatpush1.bf16.msra.mxu0 %v3192
    %3499 = vmatprep.subr.bf16.mxu0 0
    %3500 = vmatpush1.bf16.msra.mxu0 %v3191
    %3501 = vmatprep.subr.bf16.mxu0 0
    %3502 = vmatpush1.bf16.msra.mxu0 %v3190
    %3503 = vmatprep.subr.bf16.mxu0 0
    %3504 = vmatpush1.bf16.msra.mxu0 %v3189
    %3505 = vmatprep.subr.bf16.mxu0 0
    %3506 = vmatpush1.bf16.msra.mxu0 %v3188
    %3507 = vmatprep.subr.bf16.mxu0 0
    %3508 = vmatpush1.bf16.msra.mxu0 %v3187
    %3509 = vmatprep.subr.bf16.mxu0 0
    %3510 = vmatpush2.bf16.msra.mxu0 %v3202
    %3511 = vmatprep.subr.bf16.mxu0 0
    %3512 = vmatpush2.bf16.msra.mxu0 %v3201
    %3513 = vmatprep.subr.bf16.mxu0 0
    %3514 = vmatpush2.bf16.msra.mxu0 %v3200
    %3515 = vmatprep.subr.bf16.mxu0 0
    %3516 = vmatpush2.bf16.msra.mxu0 %v3199
    %3517 = vmatprep.subr.bf16.mxu0 0
    %3518 = vmatpush2.bf16.msra.mxu0 %v3198
    %3519 = vmatprep.subr.bf16.mxu0 0
    %3520 = vmatpush2.bf16.msra.mxu0 %v3197
    %3521 = vmatprep.subr.bf16.mxu0 0
    %3522 = vmatpush2.bf16.msra.mxu0 %v3196
    %3523 = vmatprep.subr.bf16.mxu0 0
    %3524 = vmatpush2.bf16.msra.mxu0 %v3195
    %3525 = vmatprep.mubr.bf16.mxu0 %v2372
    %3526 = vmatmul.mubr.bf16.gmra.mxu0 %v2371
    %v3527 = vpop.f32.mrf.mxu0
    %v3528 = vadd.f32 %v3487, %v3527
    %v3529 = vpop.f32.mrf.mxu0
    %v3530 = vpop.f32.mrf.mxu0
    %v3531 = vadd.f32 %v3490, %v3530
    %v3532 = vpop.f32.mrf.mxu0
    %3533 = vdwg.mxu0
    %3534 = vmatprep.subr.bf16.mxu0 0
    %3535 = vmatpush1.bf16.msra.mxu0 %v3210
    %3536 = vmatprep.subr.bf16.mxu0 0
    %3537 = vmatpush1.bf16.msra.mxu0 %v3209
    %3538 = vmatprep.subr.bf16.mxu0 0
    %3539 = vmatpush1.bf16.msra.mxu0 %v3208
    %3540 = vmatprep.subr.bf16.mxu0 0
    %3541 = vmatpush1.bf16.msra.mxu0 %v3207
    %3542 = vmatprep.subr.bf16.mxu0 0
    %3543 = vmatpush1.bf16.msra.mxu0 %v3206
    %3544 = vmatprep.subr.bf16.mxu0 0
    %3545 = vmatpush1.bf16.msra.mxu0 %v3205
    %3546 = vmatprep.subr.bf16.mxu0 0
    %3547 = vmatpush1.bf16.msra.mxu0 %v3204
    %3548 = vmatprep.subr.bf16.mxu0 0
    %3549 = vmatpush1.bf16.msra.mxu0 %v3203
    %3550 = vmatprep.subr.bf16.mxu0 0
    %3551 = vmatpush2.bf16.msra.mxu0 %v3218
    %3552 = vmatprep.subr.bf16.mxu0 0
    %3553 = vmatpush2.bf16.msra.mxu0 %v3217
    %3554 = vmatprep.subr.bf16.mxu0 0
    %3555 = vmatpush2.bf16.msra.mxu0 %v3216
    %3556 = vmatprep.subr.bf16.mxu0 0
    %3557 = vmatpush2.bf16.msra.mxu0 %v3215
    %3558 = vmatprep.subr.bf16.mxu0 0
    %3559 = vmatpush2.bf16.msra.mxu0 %v3214
    %3560 = vmatprep.subr.bf16.mxu0 0
    %3561 = vmatpush2.bf16.msra.mxu0 %v3213
    %3562 = vmatprep.subr.bf16.mxu0 0
    %3563 = vmatpush2.bf16.msra.mxu0 %v3212
    %3564 = vmatprep.subr.bf16.mxu0 0
    %3565 = vmatpush2.bf16.msra.mxu0 %v3211
    %3566 = vmatprep.mubr.bf16.mxu0 %v2374
    %3567 = vmatmul.mubr.bf16.gmra.mxu0 %v2373
    %v3568 = vpop.f32.mrf.mxu0
    %v3569 = vadd.f32 %v3528, %v3568
    %v3570 = vpop.f32.mrf.mxu0
    %v3571 = vpop.f32.mrf.mxu0
    %v3572 = vadd.f32 %v3531, %v3571
    %v3573 = vpop.f32.mrf.mxu0
    %3574 = vdwg.mxu0
    %3575 = vmatprep.subr.bf16.mxu0 0
    %3576 = vmatpush1.bf16.msra.mxu0 %v3226
    %3577 = vmatprep.subr.bf16.mxu0 0
    %3578 = vmatpush1.bf16.msra.mxu0 %v3225
    %3579 = vmatprep.subr.bf16.mxu0 0
    %3580 = vmatpush1.bf16.msra.mxu0 %v3224
    %3581 = vmatprep.subr.bf16.mxu0 0
    %3582 = vmatpush1.bf16.msra.mxu0 %v3223
    %3583 = vmatprep.subr.bf16.mxu0 0
    %3584 = vmatpush1.bf16.msra.mxu0 %v3222
    %3585 = vmatprep.subr.bf16.mxu0 0
    %3586 = vmatpush1.bf16.msra.mxu0 %v3221
    %3587 = vmatprep.subr.bf16.mxu0 0
    %3588 = vmatpush1.bf16.msra.mxu0 %v3220
    %3589 = vmatprep.subr.bf16.mxu0 0
    %3590 = vmatpush1.bf16.msra.mxu0 %v3219
    %3591 = vmatprep.subr.bf16.mxu0 0
    %3592 = vmatpush2.bf16.msra.mxu0 %v3234
    %3593 = vmatprep.subr.bf16.mxu0 0
    %3594 = vmatpush2.bf16.msra.mxu0 %v3233
    %3595 = vmatprep.subr.bf16.mxu0 0
    %3596 = vmatpush2.bf16.msra.mxu0 %v3232
    %3597 = vmatprep.subr.bf16.mxu0 0
    %3598 = vmatpush2.bf16.msra.mxu0 %v3231
    %3599 = vmatprep.subr.bf16.mxu0 0
    %3600 = vmatpush2.bf16.msra.mxu0 %v3230
    %3601 = vmatprep.subr.bf16.mxu0 0
    %3602 = vmatpush2.bf16.msra.mxu0 %v3229
    %3603 = vmatprep.subr.bf16.mxu0 0
    %3604 = vmatpush2.bf16.msra.mxu0 %v3228
    %3605 = vmatprep.subr.bf16.mxu0 0
    %3606 = vmatpush2.bf16.msra.mxu0 %v3227
    %3607 = vmatprep.mubr.bf16.mxu0 %v2376
    %3608 = vmatmul.mubr.bf16.gmra.mxu0 %v2375
    %v3609 = vpop.f32.mrf.mxu0
    %v3610 = vadd.f32 %v3569, %v3609
    %v3611 = vpop.f32.mrf.mxu0
    %v3612 = vpop.f32.mrf.mxu0
    %v3613 = vadd.f32 %v3572, %v3612
    %v3614 = vpop.f32.mrf.mxu0
    %3615 = vdwg.mxu0
    %3616 = vmatprep.subr.bf16.mxu0 0
    %3617 = vmatpush1.bf16.msra.mxu0 %v3242
    %3618 = vmatprep.subr.bf16.mxu0 0
    %3619 = vmatpush1.bf16.msra.mxu0 %v3241
    %3620 = vmatprep.subr.bf16.mxu0 0
    %3621 = vmatpush1.bf16.msra.mxu0 %v3240
    %3622 = vmatprep.subr.bf16.mxu0 0
    %3623 = vmatpush1.bf16.msra.mxu0 %v3239
    %3624 = vmatprep.subr.bf16.mxu0 0
    %3625 = vmatpush1.bf16.msra.mxu0 %v3238
    %3626 = vmatprep.subr.bf16.mxu0 0
    %3627 = vmatpush1.bf16.msra.mxu0 %v3237
    %3628 = vmatprep.subr.bf16.mxu0 0
    %3629 = vmatpush1.bf16.msra.mxu0 %v3236
    %3630 = vmatprep.subr.bf16.mxu0 0
    %3631 = vmatpush1.bf16.msra.mxu0 %v3235
    %3632 = vmatprep.subr.bf16.mxu0 0
    %3633 = vmatpush2.bf16.msra.mxu0 %v3250
    %3634 = vmatprep.subr.bf16.mxu0 0
    %3635 = vmatpush2.bf16.msra.mxu0 %v3249
    %3636 = vmatprep.subr.bf16.mxu0 0
    %3637 = vmatpush2.bf16.msra.mxu0 %v3248
    %3638 = vmatprep.subr.bf16.mxu0 0
    %3639 = vmatpush2.bf16.msra.mxu0 %v3247
    %3640 = vmatprep.subr.bf16.mxu0 0
    %3641 = vmatpush2.bf16.msra.mxu0 %v3246
    %3642 = vmatprep.subr.bf16.mxu0 0
    %3643 = vmatpush2.bf16.msra.mxu0 %v3245
    %3644 = vmatprep.subr.bf16.mxu0 0
    %3645 = vmatpush2.bf16.msra.mxu0 %v3244
    %3646 = vmatprep.subr.bf16.mxu0 0
    %3647 = vmatpush2.bf16.msra.mxu0 %v3243
    %3648 = vmatprep.mubr.bf16.mxu0 %v2378
    %3649 = vmatmul.mubr.bf16.gmra.mxu0 %v2377
    %v3650 = vpop.f32.mrf.mxu0
    %v3651 = vadd.f32 %v3610, %v3650
    %v3652 = vpop.f32.mrf.mxu0
    %v3653 = vpop.f32.mrf.mxu0
    %v3654 = vadd.f32 %v3613, %v3653
    %v3655 = vpop.f32.mrf.mxu0
    %3656 = vdwg.mxu0
    %3657 = vmatprep.subr.bf16.mxu0 0
    %3658 = vmatpush1.bf16.msra.mxu0 %v3258
    %3659 = vmatprep.subr.bf16.mxu0 0
    %3660 = vmatpush1.bf16.msra.mxu0 %v3257
    %3661 = vmatprep.subr.bf16.mxu0 0
    %3662 = vmatpush1.bf16.msra.mxu0 %v3256
    %3663 = vmatprep.subr.bf16.mxu0 0
    %3664 = vmatpush1.bf16.msra.mxu0 %v3255
    %3665 = vmatprep.subr.bf16.mxu0 0
    %3666 = vmatpush1.bf16.msra.mxu0 %v3254
    %3667 = vmatprep.subr.bf16.mxu0 0
    %3668 = vmatpush1.bf16.msra.mxu0 %v3253
    %3669 = vmatprep.subr.bf16.mxu0 0
    %3670 = vmatpush1.bf16.msra.mxu0 %v3252
    %3671 = vmatprep.subr.bf16.mxu0 0
    %3672 = vmatpush1.bf16.msra.mxu0 %v3251
    %3673 = vmatprep.subr.bf16.mxu0 0
    %3674 = vmatpush2.bf16.msra.mxu0 %v3266
    %3675 = vmatprep.subr.bf16.mxu0 0
    %3676 = vmatpush2.bf16.msra.mxu0 %v3265
    %3677 = vmatprep.subr.bf16.mxu0 0
    %3678 = vmatpush2.bf16.msra.mxu0 %v3264
    %3679 = vmatprep.subr.bf16.mxu0 0
    %3680 = vmatpush2.bf16.msra.mxu0 %v3263
    %3681 = vmatprep.subr.bf16.mxu0 0
    %3682 = vmatpush2.bf16.msra.mxu0 %v3262
    %3683 = vmatprep.subr.bf16.mxu0 0
    %3684 = vmatpush2.bf16.msra.mxu0 %v3261
    %3685 = vmatprep.subr.bf16.mxu0 0
    %3686 = vmatpush2.bf16.msra.mxu0 %v3260
    %3687 = vmatprep.subr.bf16.mxu0 0
    %3688 = vmatpush2.bf16.msra.mxu0 %v3259
    %3689 = vmatprep.mubr.bf16.mxu0 %v2380
    %3690 = vmatmul.mubr.bf16.gmra.mxu0 %v2379
    %v3691 = vpop.f32.mrf.mxu0
    %v3692 = vadd.f32 %v3651, %v3691
    %v3693 = vpop.f32.mrf.mxu0
    %v3694 = vpop.f32.mrf.mxu0
    %v3695 = vadd.f32 %v3654, %v3694
    %v3696 = vpop.f32.mrf.mxu0
    %3697 = vdwg.mxu0
    %3698 = vmatprep.subr.bf16.mxu0 0
    %3699 = vmatpush1.bf16.msra.mxu0 %v3274
    %3700 = vmatprep.subr.bf16.mxu0 0
    %3701 = vmatpush1.bf16.msra.mxu0 %v3273
    %3702 = vmatprep.subr.bf16.mxu0 0
    %3703 = vmatpush1.bf16.msra.mxu0 %v3272
    %3704 = vmatprep.subr.bf16.mxu0 0
    %3705 = vmatpush1.bf16.msra.mxu0 %v3271
    %3706 = vmatprep.subr.bf16.mxu0 0
    %3707 = vmatpush1.bf16.msra.mxu0 %v3270
    %3708 = vmatprep.subr.bf16.mxu0 0
    %3709 = vmatpush1.bf16.msra.mxu0 %v3269
    %3710 = vmatprep.subr.bf16.mxu0 0
    %3711 = vmatpush1.bf16.msra.mxu0 %v3268
    %3712 = vmatprep.subr.bf16.mxu0 0
    %3713 = vmatpush1.bf16.msra.mxu0 %v3267
    %3714 = vmatprep.subr.bf16.mxu0 0
    %3715 = vmatpush2.bf16.msra.mxu0 %v3282
    %3716 = vmatprep.subr.bf16.mxu0 0
    %3717 = vmatpush2.bf16.msra.mxu0 %v3281
    %3718 = vmatprep.subr.bf16.mxu0 0
    %3719 = vmatpush2.bf16.msra.mxu0 %v3280
    %3720 = vmatprep.subr.bf16.mxu0 0
    %3721 = vmatpush2.bf16.msra.mxu0 %v3279
    %3722 = vmatprep.subr.bf16.mxu0 0
    %3723 = vmatpush2.bf16.msra.mxu0 %v3278
    %3724 = vmatprep.subr.bf16.mxu0 0
    %3725 = vmatpush2.bf16.msra.mxu0 %v3277
    %3726 = vmatprep.subr.bf16.mxu0 0
    %3727 = vmatpush2.bf16.msra.mxu0 %v3276
    %3728 = vmatprep.subr.bf16.mxu0 0
    %3729 = vmatpush2.bf16.msra.mxu0 %v3275
    %3730 = vmatprep.mubr.bf16.mxu0 %v2382
    %3731 = vmatmul.mubr.bf16.gmra.mxu0 %v2381
    %v3732 = vpop.f32.mrf.mxu0
    %v3733 = vadd.f32 %v3692, %v3732
    %v3734 = vpop.f32.mrf.mxu0
    %v3735 = vpop.f32.mrf.mxu0
    %v3736 = vadd.f32 %v3695, %v3735
    %v3737 = vpop.f32.mrf.mxu0
    %3738 = vdwg.mxu0
    %v3739 = vadd.f32 %v1709, %v3733
    %v3740 = vadd.f32 %v1710, %v3736
    %v3741 = vsel %vm145, %v3739, 0.0
    %3742 = vadd.xlane.f32.xlu0 %v3741
    %v3743 = vpop.xlane.xlu0 %3742
    %v3744 = vsel %vm145, %v3740, 0.0
    %3745 = vadd.xlane.f32.xlu0 %v3744
    %v3746 = vpop.xlane.xlu0 %3745
    %v3747 = vmul.f32 %v3743, %v1678
    %v3748 = vmul.f32 %v3746, %v1678
    %v3749 = vsub.f32 %v3739, %v3747
    %v3750 = vsub.f32 %v3740, %v3748
    %v3751 = vmul.f32 %v3749, %v3749
    %v3752 = vmul.f32 %v3750, %v3750
    %v3753 = vsel %vm145, %v3751, 0.0
    %3754 = vadd.xlane.f32.xlu0 %v3753
    %v3755 = vpop.xlane.xlu0 %3754
    %v3756 = vsel %vm145, %v3752, 0.0
    %3757 = vadd.xlane.f32.xlu0 %v3756
    %v3758 = vpop.xlane.xlu0 %3757
    %v3759 = vmul.f32 %v3755, %v1678
    %v3760 = vmul.f32 %v3758, %v1678
    %v3761 = vadd.f32 %v3759, 1e-05
    %v3762 = vadd.f32 %v3760, 1e-05
    %v3763 = vrsqrt.pop %v3761
    %v3764 = vrsqrt.pop %v3762
    %v3765 = vmul.f32 %v3749, %v3763
    %v3766 = vmul.f32 %v3750, %v3764
    %v3767 = vlaneseq
    %v3768 = vshrl.u32 %v3767, 7
    %v3769 = vsub.s32 4, %v3768
    %v3770 = vrot.slane %v35, %v3769
    %v3771 = vmul.f32 %v3765, %v3770
    %v3772 = vmul.f32 %v3766, %v3770
    %v3773 = vlaneseq
    %v3774 = vshrl.u32 %v3773, 7
    %v3775 = vsub.s32 5, %v3774
    %v3776 = vrot.slane %v35, %v3775
    %v3777 = vadd.f32 %v3771, %v3776
    %v3778 = vadd.f32 %v3772, %v3776
    %v3779 = vlaneseq
    %v3780 = vshrl.u32 %v3779, 7
    %v3781 = vsub.s32 6, %v3780
    %v3782 = vrot.slane %v35, %v3781
    %3787 = vrot.lane.b32.xlu0 %v1581, 96
    %v3788 = vpop.permute.xlu0 %3787
    %3789 = vrot.lane.b32.xlu0 %v1582, 96
    %v3790 = vpop.permute.xlu0 %3789
    %3791 = vrot.lane.b32.xlu0 %v1583, 96
    %v3792 = vpop.permute.xlu0 %3791
    %3793 = vrot.lane.b32.xlu0 %v1584, 96
    %v3794 = vpop.permute.xlu0 %3793
    %v3800 = vsel %vm145, %v3777, 0
    %v3803 = vsel %vm145, %v3778, 0
    %3805 = vmatprep.subr.mxu0 0.0
    %3806 = vmatpush1.msra.mxu0 0.0
    %3807 = vmatprep.subr.mxu0 0.0
    %3808 = vmatpush1.msra.mxu0 0.0
    %3809 = vmatprep.subr.mxu0 0.0
    %3810 = vmatpush1.msra.mxu0 0.0
    %3811 = vmatprep.subr.mxu0 0.0
    %3812 = vmatpush1.msra.mxu0 0.0
    %3813 = vmatprep.subr.mxu0 0.0
    %3814 = vmatpush1.msra.mxu0 0.0
    %3815 = vmatprep.subr.mxu0 0.0
    %3816 = vmatpush1.msra.mxu0 0.0
    %3817 = vmatprep.subr.mxu0 0.0
    %3818 = vmatpush1.msra.mxu0 0.0
    %3819 = vmatprep.subr.mxu0 0.0
    %3820 = vmatpush1.msra.mxu0 0.0
    %3821 = vmatprep.subr.mxu0 0.0
    %3822 = vmatpush1.msra.mxu0 0.0
    %3823 = vmatprep.subr.mxu0 0.0
    %3824 = vmatpush1.msra.mxu0 0.0
    %3825 = vmatprep.subr.mxu0 0.0
    %3826 = vmatpush1.msra.mxu0 0.0
    %3827 = vmatprep.subr.mxu0 0.0
    %3828 = vmatpush1.msra.mxu0 0.0
    %3829 = vmatprep.subr.mxu0 0.0
    %3830 = vmatpush1.msra.mxu0 %v3794
    %3831 = vmatprep.subr.mxu0 0.0
    %3832 = vmatpush1.msra.mxu0 %v3792
    %3833 = vmatprep.subr.mxu0 0.0
    %3834 = vmatpush1.msra.mxu0 %v3790
    %3835 = vmatprep.subr.mxu0 0.0
    %3836 = vmatpush1.msra.mxu0 %v3788
    %3837 = vmatprep.subr.mxu0 0.0
    %3838 = vmatpush2.msra.mxu0 0.0
    %3839 = vmatprep.subr.mxu0 0.0
    %3840 = vmatpush2.msra.mxu0 0.0
    %3841 = vmatprep.subr.mxu0 0.0
    %3842 = vmatpush2.msra.mxu0 0.0
    %3843 = vmatprep.subr.mxu0 0.0
    %3844 = vmatpush2.msra.mxu0 0.0
    %3845 = vmatprep.subr.mxu0 0.0
    %3846 = vmatpush2.msra.mxu0 0.0
    %3847 = vmatprep.subr.mxu0 0.0
    %3848 = vmatpush2.msra.mxu0 0.0
    %3849 = vmatprep.subr.mxu0 0.0
    %3850 = vmatpush2.msra.mxu0 0.0
    %3851 = vmatprep.subr.mxu0 0.0
    %3852 = vmatpush2.msra.mxu0 0.0
    %3853 = vmatprep.subr.mxu0 0.0
    %3854 = vmatpush2.msra.mxu0 0.0
    %3855 = vmatprep.subr.mxu0 0.0
    %3856 = vmatpush2.msra.mxu0 0.0
    %3857 = vmatprep.subr.mxu0 0.0
    %3858 = vmatpush2.msra.mxu0 0.0
    %3859 = vmatprep.subr.mxu0 0.0
    %3860 = vmatpush2.msra.mxu0 0.0
    %3861 = vmatprep.subr.mxu0 0.0
    %3862 = vmatpush2.msra.mxu0 0.0
    %3863 = vmatprep.subr.mxu0 0.0
    %3864 = vmatpush2.msra.mxu0 0.0
    %3865 = vmatprep.subr.mxu0 0.0
    %3866 = vmatpush2.msra.mxu0 0.0
    %3867 = vmatprep.subr.mxu0 0.0
    %3868 = vmatpush2.msra.mxu0 0.0
    %3869 = vmatprep.mubr.f32.mxu0 0.0
    %3870 = vmatmul.mubr.f32.gmra.mxu0 %v3800
    %v3871 = vpop.f32.mrf.mxu0
    %v3872 = vadd.f32 %v3782, %v3871
    %v3873 = vpop.f32.mrf.mxu0
    %3874 = vmatprep.mubr.f32.mxu0 0.0
    %3875 = vmatmul.mubr.f32.gmra.mxu0 %v3803
    %v3876 = vpop.f32.mrf.mxu0
    %v3877 = vadd.f32 %v3782, %v3876
    %v3878 = vpop.f32.mrf.mxu0
    %3879 = vdwg.mxu0
    %v3880 = vsel %vm52, %v3872, -inf
    %3881 = vmax.xlane.f32.xlu0 %v3880
    %v3882 = vpop.xlane.xlu0 %3881
    %v3883 = vsel %vm52, %v3877, -inf
    %3884 = vmax.xlane.f32.xlu0 %v3883
    %v3885 = vpop.xlane.xlu0 %3884
    %v3886 = vsub.f32 %v3872, %v3882
    %v3887 = vsub.f32 %v3877, %v3885
    %v3888 = vmul.f32 %v3886, 1.442695
    %v3889 = vpow.pop %v3888
    %v3890 = vmul.f32 %v3887, 1.442695
    %v3891 = vpow.pop %v3890
    %v3892 = vsel %vm52, %v3889, 0.0
    %3893 = vadd.xlane.f32.xlu0 %v3892
    %v3894 = vpop.xlane.xlu0 %3893
    %v3895 = vsel %vm52, %v3891, 0.0
    %3896 = vadd.xlane.f32.xlu0 %v3895
    %v3897 = vpop.xlane.xlu0 %3896
    %v3898 = vrcp.pop %v3894
    %v3899 = vmul.f32 %v3889, %v3898
    %v3900 = vrcp.pop %v3897
    %v3901 = vmul.f32 %v3891, %v3900
    %3902 = vst.msk [vmem:[#allocation2] sm:$0xff] %vm52, %v3899
    %3903 = vst.msk [vmem:[#allocation2 + $0x8] sm:$0xff] %vm52, %v3901
    // Predicated region
    $region34: #{tpu_custom_call.1} parent=1 // pred_check
      _
    $region35: #{tpu_custom_call.1} parent=1 // pred_check_branch
      %3905 = sbr.rel (0) target = $region37
    $region36: #{tpu_custom_call.1} parent=1 // pred_region
      %s3907 = ssub.s32 256, 256
      %3908 = vsyncadd [#allocation3], %s3907
      %s3909 = sshll.u32 [#allocation2], 4
      %s3910 = int_to_ptr.vmem [resolvable:$true] %s3909
      %3915 = dma.vmem_to_hbm [thread:$0]  %s3910, 256, %s8, [#allocation3], 128, 128, 8
    $region37: #{tpu_custom_call.1} parent=1 // pred_fallthru
      _
    // Predicated region
    $region38: #{tpu_custom_call.1} parent=1 // pred_check
      _
    $region39: #{tpu_custom_call.1} parent=1 // pred_check_branch
      %3917 = sbr.rel (0) target = $region41
    $region40: #{tpu_custom_call.1} parent=1 // pred_region
      %3918 = dma.done [#allocation3], 256
    $region41: #{tpu_custom_call.1} parent=1 // pred_fallthru
      _
    %3919 = vsyncpa [#allocation3], 1

</llo_original>
